<compile_context>
chip_gen: v6e
topology: v6e:2x2x1
jax: 0.10.0
libtpu: 0.0.40
codegen_flags: <defaults>
</compile_context>

<pallas_src>
import functools

import jax
import jax.numpy as jnp
from jax import lax
from jax.experimental import pallas as pl
from jax.experimental.pallas import tpu as pltpu


def _conv_kernel(x_ref, w_ref, b_ref, o_ref, xp_ref, rhs_ref, *,
                 nb, cin, h, w, kh, kw, stride, pad_h, pad_w, ho, wo,
                 compute_dtype):
    """One grid step: `nb` images of the batch.

    x_ref  : (nb, Cin, H, W)            input images (original dtype)
    w_ref  : (Cout, KH*KW*Cin)          folded weights (compute dtype)
    b_ref  : (Cout, 1)                  bias (f32)
    o_ref  : (nb, Cout, Ho*Wo)          output (lane-dense last dim, NCHW order)
    xp_ref : (Cin, Hp, Wp)              VMEM scratch: reflection-padded image
    rhs_ref: (KH*KW*Cin, nb*Ho*Wo)      VMEM scratch: im2col matrix (all nb images)
    """
    how = ho * wo
    w2 = w_ref[...]                       # (Cout, KH*KW*Cin), compute dtype
    bias = b_ref[...]                     # (Cout, 1), f32

    for b in range(nb):                   # static unroll, nb is small (<= 8)
        x = x_ref[b].astype(compute_dtype)            # (Cin, H, W)

        # ---- reflection pad into VMEM scratch (no HBM round trip) --------
        # centre block
        xp_ref[:, pl.ds(pad_h, h), pl.ds(pad_w, w)] = x
        # reflected rows (top / bottom), centre columns only
        for i in range(pad_h):
            xp_ref[:, pl.ds(i, 1), pl.ds(pad_w, w)] = (
                x[:, pad_h - i:pad_h - i + 1, :])
            xp_ref[:, pl.ds(pad_h + h + i, 1), pl.ds(pad_w, w)] = (
                x[:, h - 2 - i:h - 1 - i, :])
        # reflected columns (left / right), full padded height (covers corners)
        for j in range(pad_w):
            xp_ref[:, :, pl.ds(j, 1)] = xp_ref[:, :, pl.ds(2 * pad_w - j, 1)]
            xp_ref[:, :, pl.ds(pad_w + w + j, 1)] = (
                xp_ref[:, :, pl.ds(pad_w + w - 2 - j, 1)])

        # ---- im2col: fold all KH*KW taps into the shared contraction ------
        img_col0 = b * how
        for ho_i in range(ho):
            col0 = img_col0 + ho_i * wo
            r = ho_i * stride
            for i in range(kh):
                for j in range(kw):
                    cols = pl.ds(j, wo) if stride == 1 else pl.ds(j, wo, stride)
                    piece = xp_ref[:, pl.ds(r + i, 1), cols]      # (Cin, 1, Wo)
                    row0 = (i * kw + j) * cin
                    rhs_ref[pl.ds(row0, cin), pl.ds(col0, wo)] = piece[:, 0, :]

    # ---- single MXU matmul per grid step (all nb images), f32 accumulation
    acc = jnp.dot(w2, rhs_ref[...],
                  preferred_element_type=jnp.float32)             # (Cout, nb*Ho*Wo)
    acc = acc + bias                                              # one broadcast/step
    for b in range(nb):
        # aligned lane slice (multiple of Ho*Wo); lane-dense store
        o_ref[b] = acc[:, b * how:(b + 1) * how].astype(o_ref.dtype)


def _pick_batch_block(n, image_bytes, target_bytes=1 << 20, max_nb=8):
    """Images per grid step: enough bytes to amortize per-step overhead, but
    keep >= 2 grid steps (software pipeline / both v7x TensorCores), cap the
    static unroll, and divide the batch evenly."""
    nb = max(1, min(n, max_nb, target_bytes // max(image_bytes, 1)))
    while nb > 1 and n // nb < 2:
        nb -= 1
    while n % nb != 0:
        nb -= 1
    return nb


def conv_layer_pallas(x_nchw, weight_oihw, bias, *, stride,
                      compute_dtype=jnp.bfloat16, batch_block=None):
    """ReflectionPad2d(kernel_size // 2) + Conv2d(kernel_size, stride).

    Matches the PyTorch ConvLayer forward: NCHW input/output, OIHW weights.
    """
    n, cin, h, w = x_nchw.shape
    cout, cin_w, kh, kw = weight_oihw.shape
    assert cin == cin_w
    # ReflectionPad2d(kernel_size // 2); per-dim so non-square kernels stay sane.
    pad_h, pad_w = kh // 2, kw // 2
    assert pad_h < h and pad_w < w, "reflection pad must be smaller than image"

    hp, wp = h + 2 * pad_h, w + 2 * pad_w
    ho = (hp - kh) // stride + 1
    wo = (wp - kw) // stride + 1

    # Tiny weight/bias reshapes (one-time XLA ops).  The big activation tensor
    # is handed to the kernel untouched -- no transpose / pad HBM round trip.
    w2 = jnp.transpose(weight_oihw, (0, 2, 3, 1)).reshape(cout, kh * kw * cin)
    w2 = w2.astype(compute_dtype)
    b2 = bias.reshape(cout, 1).astype(jnp.float32)

    nb = batch_block or _pick_batch_block(
        n, cin * h * w * x_nchw.dtype.itemsize)
    assert n % nb == 0

    kernel = functools.partial(
        _conv_kernel, nb=nb, cin=cin, h=h, w=w, kh=kh, kw=kw, stride=stride,
        pad_h=pad_h, pad_w=pad_w, ho=ho, wo=wo, compute_dtype=compute_dtype)

    out = pl.pallas_call(
        kernel,
        out_shape=jax.ShapeDtypeStruct((n, cout, ho * wo), x_nchw.dtype),
        grid_spec=pltpu.PrefetchScalarGridSpec(
            num_scalar_prefetch=0,
            grid=(n // nb,),
            in_specs=[
                pl.BlockSpec((nb, cin, h, w), lambda b: (b, 0, 0, 0)),
                pl.BlockSpec((cout, kh * kw * cin), lambda b: (0, 0)),
                pl.BlockSpec((cout, 1), lambda b: (0, 0)),
            ],
            out_specs=pl.BlockSpec((nb, cout, ho * wo), lambda b: (b, 0, 0)),
            scratch_shapes=[
                pltpu.VMEM((cin, hp, wp), compute_dtype),                  # padded image
                pltpu.VMEM((kh * kw * cin, nb * ho * wo), compute_dtype),  # im2col
            ]),
        compiler_params=pltpu.CompilerParams(
            dimension_semantics=("parallel",)),
    )(x_nchw, w2, b2)

    # TODO(synk): for production-sized images add an H-tiling grid axis with
    # halo rows and set vmem_limit_bytes explicitly for v7x's 64 MiB VMEM.
    # Free reshape: (N, Cout, Ho*Wo) -> (N, Cout, Ho, Wo); already NCHW.
    return out.reshape(n, cout, ho, wo)


if __name__ == "__main__":
    # ConvLayer(in_channels=4, out_channels=8, kernel_size=3, stride=1)
    N, Cin, H, W = 2, 4, 16, 16
    Cout, K, STRIDE = 8, 3, 1

    key = jax.random.PRNGKey(0)
    kx, kw_, kb = jax.random.split(key, 3)
    x = jax.random.normal(kx, (N, Cin, H, W), dtype=jnp.float32)
    weight = 0.1 * jax.random.normal(kw_, (Cout, Cin, K, K), dtype=jnp.float32)  # OIHW
    bias = 0.1 * jax.random.normal(kb, (Cout,), dtype=jnp.float32)

    out = conv_layer_pallas(x, weight, bias, stride=STRIDE)
    out = jax.block_until_ready(out)

    # Reference: XLA conv on the reflection-padded input.  The kernel feeds
    # bf16 to the MXU (f32 accumulation), so compare against a reference
    # built from the same bf16-rounded operands.
    xq = x.astype(jnp.bfloat16).astype(jnp.float32)
    wq = weight.astype(jnp.bfloat16).astype(jnp.float32)
    pad = K // 2
    x_ref_pad = jnp.pad(xq, ((0, 0), (0, 0), (pad, pad), (pad, pad)),
                        mode="reflect")
    ref = lax.conv_general_dilated(
        x_ref_pad, wq, window_strides=(STRIDE, STRIDE), padding="VALID",
        dimension_numbers=("NCHW", "OIHW", "NCHW"),
        precision=lax.Precision.HIGHEST)
    ref = ref + bias[None, :, None, None]

    assert out.shape == ref.shape, (out.shape, ref.shape)
    max_err = float(jnp.max(jnp.abs(out - ref)))
    assert jnp.allclose(out, ref, atol=1e-2, rtol=1e-2), max_err

    print("KERNEL_OK")
</pallas_src>

<mosaic_0001>
module attributes {stable_mosaic.version = 11 : i64} {
  func.func @_conv_kernel(%arg0: i32, %arg1: memref<1x4x16x16xf32, #tpu.memory_space<vmem>>, %arg2: memref<8x36xbf16, #tpu.memory_space<vmem>>, %arg3: memref<8x1xf32, #tpu.memory_space<vmem>>, %arg4: memref<1x8x256xf32, #tpu.memory_space<vmem>>, %arg5: memref<4x18x18xbf16, #tpu.memory_space<vmem>>, %arg6: memref<36x256xbf16, #tpu.memory_space<vmem>>) attributes {dimension_semantics = [#tpu.dimension_semantics<parallel>], iteration_bounds = array<i64: 2>, scalar_prefetch = 0 : i64, scratch_operands = 2 : i64, tpu.core_type = #tpu.core_type<tc>, window_params = [{transform_indices = @transform_0, window_bounds = array<i64: 1, 4, 16, 16>}, {pipeline_mode = #tpu.pipeline_mode<synchronous>, transform_indices = @transform_1, window_bounds = array<i64: 8, 36>}, {pipeline_mode = #tpu.pipeline_mode<synchronous>, transform_indices = @transform_2, window_bounds = array<i64: 8, 1>}, {transform_indices = @transform_3, window_bounds = array<i64: 1, 8, 256>}]} {
    %c0 = arith.constant 0 : index
    %c0_0 = arith.constant 0 : index
    %0 = vector.load %arg2[%c0, %c0_0] : memref<8x36xbf16, #tpu.memory_space<vmem>>, vector<8x36xbf16>
    %c0_1 = arith.constant 0 : index
    %c0_2 = arith.constant 0 : index
    %1 = vector.load %arg3[%c0_1, %c0_2] : memref<8x1xf32, #tpu.memory_space<vmem>>, vector<8x1xf32>
    %c0_3 = arith.constant 0 : index
    %c0_4 = arith.constant 0 : index
    %c0_5 = arith.constant 0 : index
    %c0_6 = arith.constant 0 : index
    %2 = vector.load %arg1[%c0_3, %c0_4, %c0_5, %c0_6] : memref<1x4x16x16xf32, #tpu.memory_space<vmem>>, vector<1x4x16x16xf32>
    %3 = vector.shape_cast %2 : vector<1x4x16x16xf32> to vector<4x16x16xf32>
    %4 = arith.truncf %3 : vector<4x16x16xf32> to vector<4x16x16xbf16>
    %c0_7 = arith.constant 0 : index
    %c1 = arith.constant 1 : index
    %c1_8 = arith.constant 1 : index
    %5 = vector.load %arg5[%c0_7, %c1, %c1_8] : memref<4x18x18xbf16, #tpu.memory_space<vmem>>, vector<4x16x16xbf16>
    tpu.vector_store %arg5[%c0_7, %c1, %c1_8], %4 {strides = array<i32>} : memref<4x18x18xbf16, #tpu.memory_space<vmem>>, vector<4x16x16xbf16>,
    %6 = vector.extract_strided_slice %4 {offsets = [0, 1, 0], sizes = [4, 1, 16], strides = [1, 1, 1]} : vector<4x16x16xbf16> to vector<4x1x16xbf16>
    %c0_9 = arith.constant 0 : index
    %c0_10 = arith.constant 0 : index
    %c1_11 = arith.constant 1 : index
    %7 = vector.load %arg5[%c0_9, %c0_10, %c1_11] : memref<4x18x18xbf16, #tpu.memory_space<vmem>>, vector<4x1x16xbf16>
    tpu.vector_store %arg5[%c0_9, %c0_10, %c1_11], %6 {strides = array<i32>} : memref<4x18x18xbf16, #tpu.memory_space<vmem>>, vector<4x1x16xbf16>,
    %8 = vector.extract_strided_slice %4 {offsets = [0, 14, 0], sizes = [4, 1, 16], strides = [1, 1, 1]} : vector<4x16x16xbf16> to vector<4x1x16xbf16>
    %c0_12 = arith.constant 0 : index
    %c17 = arith.constant 17 : index
    %c1_13 = arith.constant 1 : index
    %9 = vector.load %arg5[%c0_12, %c17, %c1_13] : memref<4x18x18xbf16, #tpu.memory_space<vmem>>, vector<4x1x16xbf16>
    tpu.vector_store %arg5[%c0_12, %c17, %c1_13], %8 {strides = array<i32>} : memref<4x18x18xbf16, #tpu.memory_space<vmem>>, vector<4x1x16xbf16>,
    %c0_14 = arith.constant 0 : index
    %c0_15 = arith.constant 0 : index
    %c2 = arith.constant 2 : index
    %10 = vector.load %arg5[%c0_14, %c0_15, %c2] : memref<4x18x18xbf16, #tpu.memory_space<vmem>>, vector<4x18x1xbf16>
    %c0_16 = arith.constant 0 : index
    %c0_17 = arith.constant 0 : index
    %c0_18 = arith.constant 0 : index
    %11 = vector.load %arg5[%c0_16, %c0_17, %c0_18] : memref<4x18x18xbf16, #tpu.memory_space<vmem>>, vector<4x18x1xbf16>
    tpu.vector_store %arg5[%c0_16, %c0_17, %c0_18], %10 {strides = array<i32>} : memref<4x18x18xbf16, #tpu.memory_space<vmem>>, vector<4x18x1xbf16>,
    %c0_19 = arith.constant 0 : index
    %c0_20 = arith.constant 0 : index
    %c15 = arith.constant 15 : index
    %12 = vector.load %arg5[%c0_19, %c0_20, %c15] : memref<4x18x18xbf16, #tpu.memory_space<vmem>>, vector<4x18x1xbf16>
    %c0_21 = arith.constant 0 : index
    %c0_22 = arith.constant 0 : index
    %c17_23 = arith.constant 17 : index
    %13 = vector.load %arg5[%c0_21, %c0_22, %c17_23] : memref<4x18x18xbf16, #tpu.memory_space<vmem>>, vector<4x18x1xbf16>
    tpu.vector_store %arg5[%c0_21, %c0_22, %c17_23], %12 {strides = array<i32>} : memref<4x18x18xbf16, #tpu.memory_space<vmem>>, vector<4x18x1xbf16>,
    %c0_24 = arith.constant 0 : index
    %c0_25 = arith.constant 0 : index
    %c0_26 = arith.constant 0 : index
    %14 = vector.load %arg5[%c0_24, %c0_25, %c0_26] : memref<4x18x18xbf16, #tpu.memory_space<vmem>>, vector<4x1x16xbf16>
    %15 = vector.shape_cast %14 : vector<4x1x16xbf16> to vector<4x16xbf16>
    %c0_27 = arith.constant 0 : index
    %c0_28 = arith.constant 0 : index
    %16 = vector.load %arg6[%c0_27, %c0_28] : memref<36x256xbf16, #tpu.memory_space<vmem>>, vector<4x16xbf16>
    tpu.vector_store %arg6[%c0_27, %c0_28], %15 {strides = array<i32>} : memref<36x256xbf16, #tpu.memory_space<vmem>>, vector<4x16xbf16>,
    %c0_29 = arith.constant 0 : index
    %c0_30 = arith.constant 0 : index
    %c1_31 = arith.constant 1 : index
    %17 = vector.load %arg5[%c0_29, %c0_30, %c1_31] : memref<4x18x18xbf16, #tpu.memory_space<vmem>>, vector<4x1x16xbf16>
    %18 = vector.shape_cast %17 : vector<4x1x16xbf16> to vector<4x16xbf16>
    %c4 = arith.constant 4 : index
    %c0_32 = arith.constant 0 : index
    %19 = vector.load %arg6[%c4, %c0_32] : memref<36x256xbf16, #tpu.memory_space<vmem>>, vector<4x16xbf16>
    tpu.vector_store %arg6[%c4, %c0_32], %18 {strides = array<i32>} : memref<36x256xbf16, #tpu.memory_space<vmem>>, vector<4x16xbf16>,
    %c0_33 = arith.constant 0 : index
    %c0_34 = arith.constant 0 : index
    %c2_35 = arith.constant 2 : index
    %20 = vector.load %arg5[%c0_33, %c0_34, %c2_35] : memref<4x18x18xbf16, #tpu.memory_space<vmem>>, vector<4x1x16xbf16>
    %21 = vector.shape_cast %20 : vector<4x1x16xbf16> to vector<4x16xbf16>
    %c8 = arith.constant 8 : index
    %c0_36 = arith.constant 0 : index
    %22 = vector.load %arg6[%c8, %c0_36] : memref<36x256xbf16, #tpu.memory_space<vmem>>, vector<4x16xbf16>
    tpu.vector_store %arg6[%c8, %c0_36], %21 {strides = array<i32>} : memref<36x256xbf16, #tpu.memory_space<vmem>>, vector<4x16xbf16>,
    %c0_37 = arith.constant 0 : index
    %c1_38 = arith.constant 1 : index
    %c0_39 = arith.constant 0 : index
    %23 = vector.load %arg5[%c0_37, %c1_38, %c0_39] : memref<4x18x18xbf16, #tpu.memory_space<vmem>>, vector<4x1x16xbf16>
    %24 = vector.shape_cast %23 : vector<4x1x16xbf16> to vector<4x16xbf16>
    %c12 = arith.constant 12 : index
    %c0_40 = arith.constant 0 : index
    %25 = vector.load %arg6[%c12, %c0_40] : memref<36x256xbf16, #tpu.memory_space<vmem>>, vector<4x16xbf16>
    tpu.vector_store %arg6[%c12, %c0_40], %24 {strides = array<i32>} : memref<36x256xbf16, #tpu.memory_space<vmem>>, vector<4x16xbf16>,
    %c0_41 = arith.constant 0 : index
    %c1_42 = arith.constant 1 : index
    %c1_43 = arith.constant 1 : index
    %26 = vector.load %arg5[%c0_41, %c1_42, %c1_43] : memref<4x18x18xbf16, #tpu.memory_space<vmem>>, vector<4x1x16xbf16>
    %27 = vector.shape_cast %26 : vector<4x1x16xbf16> to vector<4x16xbf16>
    %c16 = arith.constant 16 : index
    %c0_44 = arith.constant 0 : index
    %28 = vector.load %arg6[%c16, %c0_44] : memref<36x256xbf16, #tpu.memory_space<vmem>>, vector<4x16xbf16>
    tpu.vector_store %arg6[%c16, %c0_44], %27 {strides = array<i32>} : memref<36x256xbf16, #tpu.memory_space<vmem>>, vector<4x16xbf16>,
    %c0_45 = arith.constant 0 : index
    %c1_46 = arith.constant 1 : index
    %c2_47 = arith.constant 2 : index
    %29 = vector.load %arg5[%c0_45, %c1_46, %c2_47] : memref<4x18x18xbf16, #tpu.memory_space<vmem>>, vector<4x1x16xbf16>
    %30 = vector.shape_cast %29 : vector<4x1x16xbf16> to vector<4x16xbf16>
    %c20 = arith.constant 20 : index
    %c0_48 = arith.constant 0 : index
    %31 = vector.load %arg6[%c20, %c0_48] : memref<36x256xbf16, #tpu.memory_space<vmem>>, vector<4x16xbf16>
    tpu.vector_store %arg6[%c20, %c0_48], %30 {strides = array<i32>} : memref<36x256xbf16, #tpu.memory_space<vmem>>, vector<4x16xbf16>,
    %c0_49 = arith.constant 0 : index
    %c2_50 = arith.constant 2 : index
    %c0_51 = arith.constant 0 : index
    %32 = vector.load %arg5[%c0_49, %c2_50, %c0_51] : memref<4x18x18xbf16, #tpu.memory_space<vmem>>, vector<4x1x16xbf16>
    %33 = vector.shape_cast %32 : vector<4x1x16xbf16> to vector<4x16xbf16>
    %c24 = arith.constant 24 : index
    %c0_52 = arith.constant 0 : index
    %34 = vector.load %arg6[%c24, %c0_52] : memref<36x256xbf16, #tpu.memory_space<vmem>>, vector<4x16xbf16>
    tpu.vector_store %arg6[%c24, %c0_52], %33 {strides = array<i32>} : memref<36x256xbf16, #tpu.memory_space<vmem>>, vector<4x16xbf16>,
    %c0_53 = arith.constant 0 : index
    %c2_54 = arith.constant 2 : index
    %c1_55 = arith.constant 1 : index
    %35 = vector.load %arg5[%c0_53, %c2_54, %c1_55] : memref<4x18x18xbf16, #tpu.memory_space<vmem>>, vector<4x1x16xbf16>
    %36 = vector.shape_cast %35 : vector<4x1x16xbf16> to vector<4x16xbf16>
    %c28 = arith.constant 28 : index
    %c0_56 = arith.constant 0 : index
    %37 = vector.load %arg6[%c28, %c0_56] : memref<36x256xbf16, #tpu.memory_space<vmem>>, vector<4x16xbf16>
    tpu.vector_store %arg6[%c28, %c0_56], %36 {strides = array<i32>} : memref<36x256xbf16, #tpu.memory_space<vmem>>, vector<4x16xbf16>,
    %c0_57 = arith.constant 0 : index
    %c2_58 = arith.constant 2 : index
    %c2_59 = arith.constant 2 : index
    %38 = vector.load %arg5[%c0_57, %c2_58, %c2_59] : memref<4x18x18xbf16, #tpu.memory_space<vmem>>, vector<4x1x16xbf16>
    %39 = vector.shape_cast %38 : vector<4x1x16xbf16> to vector<4x16xbf16>
    %c32 = arith.constant 32 : index
    %c0_60 = arith.constant 0 : index
    %40 = vector.load %arg6[%c32, %c0_60] : memref<36x256xbf16, #tpu.memory_space<vmem>>, vector<4x16xbf16>
    tpu.vector_store %arg6[%c32, %c0_60], %39 {strides = array<i32>} : memref<36x256xbf16, #tpu.memory_space<vmem>>, vector<4x16xbf16>,
    %c0_61 = arith.constant 0 : index
    %c1_62 = arith.constant 1 : index
    %c0_63 = arith.constant 0 : index
    %41 = vector.load %arg5[%c0_61, %c1_62, %c0_63] : memref<4x18x18xbf16, #tpu.memory_space<vmem>>, vector<4x1x16xbf16>
    %42 = vector.shape_cast %41 : vector<4x1x16xbf16> to vector<4x16xbf16>
    %c0_64 = arith.constant 0 : index
    %c16_65 = arith.constant 16 : index
    %43 = vector.load %arg6[%c0_64, %c16_65] : memref<36x256xbf16, #tpu.memory_space<vmem>>, vector<4x16xbf16>
    tpu.vector_store %arg6[%c0_64, %c16_65], %42 {strides = array<i32>} : memref<36x256xbf16, #tpu.memory_space<vmem>>, vector<4x16xbf16>,
    %c0_66 = arith.constant 0 : index
    %c1_67 = arith.constant 1 : index
    %c1_68 = arith.constant 1 : index
    %44 = vector.load %arg5[%c0_66, %c1_67, %c1_68] : memref<4x18x18xbf16, #tpu.memory_space<vmem>>, vector<4x1x16xbf16>
    %45 = vector.shape_cast %44 : vector<4x1x16xbf16> to vector<4x16xbf16>
    %c4_69 = arith.constant 4 : index
    %c16_70 = arith.constant 16 : index
    %46 = vector.load %arg6[%c4_69, %c16_70] : memref<36x256xbf16, #tpu.memory_space<vmem>>, vector<4x16xbf16>
    tpu.vector_store %arg6[%c4_69, %c16_70], %45 {strides = array<i32>} : memref<36x256xbf16, #tpu.memory_space<vmem>>, vector<4x16xbf16>,
    %c0_71 = arith.constant 0 : index
    %c1_72 = arith.constant 1 : index
    %c2_73 = arith.constant 2 : index
    %47 = vector.load %arg5[%c0_71, %c1_72, %c2_73] : memref<4x18x18xbf16, #tpu.memory_space<vmem>>, vector<4x1x16xbf16>
    %48 = vector.shape_cast %47 : vector<4x1x16xbf16> to vector<4x16xbf16>
    %c8_74 = arith.constant 8 : index
    %c16_75 = arith.constant 16 : index
    %49 = vector.load %arg6[%c8_74, %c16_75] : memref<36x256xbf16, #tpu.memory_space<vmem>>, vector<4x16xbf16>
    tpu.vector_store %arg6[%c8_74, %c16_75], %48 {strides = array<i32>} : memref<36x256xbf16, #tpu.memory_space<vmem>>, vector<4x16xbf16>,
    %c0_76 = arith.constant 0 : index
    %c2_77 = arith.constant 2 : index
    %c0_78 = arith.constant 0 : index
    %50 = vector.load %arg5[%c0_76, %c2_77, %c0_78] : memref<4x18x18xbf16, #tpu.memory_space<vmem>>, vector<4x1x16xbf16>
    %51 = vector.shape_cast %50 : vector<4x1x16xbf16> to vector<4x16xbf16>
    %c12_79 = arith.constant 12 : index
    %c16_80 = arith.constant 16 : index
    %52 = vector.load %arg6[%c12_79, %c16_80] : memref<36x256xbf16, #tpu.memory_space<vmem>>, vector<4x16xbf16>
    tpu.vector_store %arg6[%c12_79, %c16_80], %51 {strides = array<i32>} : memref<36x256xbf16, #tpu.memory_space<vmem>>, vector<4x16xbf16>,
    %c0_81 = arith.constant 0 : index
    %c2_82 = arith.constant 2 : index
    %c1_83 = arith.constant 1 : index
    %53 = vector.load %arg5[%c0_81, %c2_82, %c1_83] : memref<4x18x18xbf16, #tpu.memory_space<vmem>>, vector<4x1x16xbf16>
    %54 = vector.shape_cast %53 : vector<4x1x16xbf16> to vector<4x16xbf16>
    %c16_84 = arith.constant 16 : index
    %c16_85 = arith.constant 16 : index
    %55 = vector.load %arg6[%c16_84, %c16_85] : memref<36x256xbf16, #tpu.memory_space<vmem>>, vector<4x16xbf16>
    tpu.vector_store %arg6[%c16_84, %c16_85], %54 {strides = array<i32>} : memref<36x256xbf16, #tpu.memory_space<vmem>>, vector<4x16xbf16>,
    %c0_86 = arith.constant 0 : index
    %c2_87 = arith.constant 2 : index
    %c2_88 = arith.constant 2 : index
    %56 = vector.load %arg5[%c0_86, %c2_87, %c2_88] : memref<4x18x18xbf16, #tpu.memory_space<vmem>>, vector<4x1x16xbf16>
    %57 = vector.shape_cast %56 : vector<4x1x16xbf16> to vector<4x16xbf16>
    %c20_89 = arith.constant 20 : index
    %c16_90 = arith.constant 16 : index
    %58 = vector.load %arg6[%c20_89, %c16_90] : memref<36x256xbf16, #tpu.memory_space<vmem>>, vector<4x16xbf16>
    tpu.vector_store %arg6[%c20_89, %c16_90], %57 {strides = array<i32>} : memref<36x256xbf16, #tpu.memory_space<vmem>>, vector<4x16xbf16>,
    %c0_91 = arith.constant 0 : index
    %c3 = arith.constant 3 : index
    %c0_92 = arith.constant 0 : index
    %59 = vector.load %arg5[%c0_91, %c3, %c0_92] : memref<4x18x18xbf16, #tpu.memory_space<vmem>>, vector<4x1x16xbf16>
    %60 = vector.shape_cast %59 : vector<4x1x16xbf16> to vector<4x16xbf16>
    %c24_93 = arith.constant 24 : index
    %c16_94 = arith.constant 16 : index
    %61 = vector.load %arg6[%c24_93, %c16_94] : memref<36x256xbf16, #tpu.memory_space<vmem>>, vector<4x16xbf16>
    tpu.vector_store %arg6[%c24_93, %c16_94], %60 {strides = array<i32>} : memref<36x256xbf16, #tpu.memory_space<vmem>>, vector<4x16xbf16>,
    %c0_95 = arith.constant 0 : index
    %c3_96 = arith.constant 3 : index
    %c1_97 = arith.constant 1 : index
    %62 = vector.load %arg5[%c0_95, %c3_96, %c1_97] : memref<4x18x18xbf16, #tpu.memory_space<vmem>>, vector<4x1x16xbf16>
    %63 = vector.shape_cast %62 : vector<4x1x16xbf16> to vector<4x16xbf16>
    %c28_98 = arith.constant 28 : index
    %c16_99 = arith.constant 16 : index
    %64 = vector.load %arg6[%c28_98, %c16_99] : memref<36x256xbf16, #tpu.memory_space<vmem>>, vector<4x16xbf16>
    tpu.vector_store %arg6[%c28_98, %c16_99], %63 {strides = array<i32>} : memref<36x256xbf16, #tpu.memory_space<vmem>>, vector<4x16xbf16>,
    %c0_100 = arith.constant 0 : index
    %c3_101 = arith.constant 3 : index
    %c2_102 = arith.constant 2 : index
    %65 = vector.load %arg5[%c0_100, %c3_101, %c2_102] : memref<4x18x18xbf16, #tpu.memory_space<vmem>>, vector<4x1x16xbf16>
    %66 = vector.shape_cast %65 : vector<4x1x16xbf16> to vector<4x16xbf16>
    %c32_103 = arith.constant 32 : index
    %c16_104 = arith.constant 16 : index
    %67 = vector.load %arg6[%c32_103, %c16_104] : memref<36x256xbf16, #tpu.memory_space<vmem>>, vector<4x16xbf16>
    tpu.vector_store %arg6[%c32_103, %c16_104], %66 {strides = array<i32>} : memref<36x256xbf16, #tpu.memory_space<vmem>>, vector<4x16xbf16>,
    %c0_105 = arith.constant 0 : index
    %c2_106 = arith.constant 2 : index
    %c0_107 = arith.constant 0 : index
    %68 = vector.load %arg5[%c0_105, %c2_106, %c0_107] : memref<4x18x18xbf16, #tpu.memory_space<vmem>>, vector<4x1x16xbf16>
    %69 = vector.shape_cast %68 : vector<4x1x16xbf16> to vector<4x16xbf16>
    %c0_108 = arith.constant 0 : index
    %c32_109 = arith.constant 32 : index
    %70 = vector.load %arg6[%c0_108, %c32_109] : memref<36x256xbf16, #tpu.memory_space<vmem>>, vector<4x16xbf16>
    tpu.vector_store %arg6[%c0_108, %c32_109], %69 {strides = array<i32>} : memref<36x256xbf16, #tpu.memory_space<vmem>>, vector<4x16xbf16>,
    %c0_110 = arith.constant 0 : index
    %c2_111 = arith.constant 2 : index
    %c1_112 = arith.constant 1 : index
    %71 = vector.load %arg5[%c0_110, %c2_111, %c1_112] : memref<4x18x18xbf16, #tpu.memory_space<vmem>>, vector<4x1x16xbf16>
    %72 = vector.shape_cast %71 : vector<4x1x16xbf16> to vector<4x16xbf16>
    %c4_113 = arith.constant 4 : index
    %c32_114 = arith.constant 32 : index
    %73 = vector.load %arg6[%c4_113, %c32_114] : memref<36x256xbf16, #tpu.memory_space<vmem>>, vector<4x16xbf16>
    tpu.vector_store %arg6[%c4_113, %c32_114], %72 {strides = array<i32>} : memref<36x256xbf16, #tpu.memory_space<vmem>>, vector<4x16xbf16>,
    %c0_115 = arith.constant 0 : index
    %c2_116 = arith.constant 2 : index
    %c2_117 = arith.constant 2 : index
    %74 = vector.load %arg5[%c0_115, %c2_116, %c2_117] : memref<4x18x18xbf16, #tpu.memory_space<vmem>>, vector<4x1x16xbf16>
    %75 = vector.shape_cast %74 : vector<4x1x16xbf16> to vector<4x16xbf16>
    %c8_118 = arith.constant 8 : index
    %c32_119 = arith.constant 32 : index
    %76 = vector.load %arg6[%c8_118, %c32_119] : memref<36x256xbf16, #tpu.memory_space<vmem>>, vector<4x16xbf16>
    tpu.vector_store %arg6[%c8_118, %c32_119], %75 {strides = array<i32>} : memref<36x256xbf16, #tpu.memory_space<vmem>>, vector<4x16xbf16>,
    %c0_120 = arith.constant 0 : index
    %c3_121 = arith.constant 3 : index
    %c0_122 = arith.constant 0 : index
    %77 = vector.load %arg5[%c0_120, %c3_121, %c0_122] : memref<4x18x18xbf16, #tpu.memory_space<vmem>>, vector<4x1x16xbf16>
    %78 = vector.shape_cast %77 : vector<4x1x16xbf16> to vector<4x16xbf16>
    %c12_123 = arith.constant 12 : index
    %c32_124 = arith.constant 32 : index
    %79 = vector.load %arg6[%c12_123, %c32_124] : memref<36x256xbf16, #tpu.memory_space<vmem>>, vector<4x16xbf16>
    tpu.vector_store %arg6[%c12_123, %c32_124], %78 {strides = array<i32>} : memref<36x256xbf16, #tpu.memory_space<vmem>>, vector<4x16xbf16>,
    %c0_125 = arith.constant 0 : index
    %c3_126 = arith.constant 3 : index
    %c1_127 = arith.constant 1 : index
    %80 = vector.load %arg5[%c0_125, %c3_126, %c1_127] : memref<4x18x18xbf16, #tpu.memory_space<vmem>>, vector<4x1x16xbf16>
    %81 = vector.shape_cast %80 : vector<4x1x16xbf16> to vector<4x16xbf16>
    %c16_128 = arith.constant 16 : index
    %c32_129 = arith.constant 32 : index
    %82 = vector.load %arg6[%c16_128, %c32_129] : memref<36x256xbf16, #tpu.memory_space<vmem>>, vector<4x16xbf16>
    tpu.vector_store %arg6[%c16_128, %c32_129], %81 {strides = array<i32>} : memref<36x256xbf16, #tpu.memory_space<vmem>>, vector<4x16xbf16>,
    %c0_130 = arith.constant 0 : index
    %c3_131 = arith.constant 3 : index
    %c2_132 = arith.constant 2 : index
    %83 = vector.load %arg5[%c0_130, %c3_131, %c2_132] : memref<4x18x18xbf16, #tpu.memory_space<vmem>>, vector<4x1x16xbf16>
    %84 = vector.shape_cast %83 : vector<4x1x16xbf16> to vector<4x16xbf16>
    %c20_133 = arith.constant 20 : index
    %c32_134 = arith.constant 32 : index
    %85 = vector.load %arg6[%c20_133, %c32_134] : memref<36x256xbf16, #tpu.memory_space<vmem>>, vector<4x16xbf16>
    tpu.vector_store %arg6[%c20_133, %c32_134], %84 {strides = array<i32>} : memref<36x256xbf16, #tpu.memory_space<vmem>>, vector<4x16xbf16>,
    %c0_135 = arith.constant 0 : index
    %c4_136 = arith.constant 4 : index
    %c0_137 = arith.constant 0 : index
    %86 = vector.load %arg5[%c0_135, %c4_136, %c0_137] : memref<4x18x18xbf16, #tpu.memory_space<vmem>>, vector<4x1x16xbf16>
    %87 = vector.shape_cast %86 : vector<4x1x16xbf16> to vector<4x16xbf16>
    %c24_138 = arith.constant 24 : index
    %c32_139 = arith.constant 32 : index
    %88 = vector.load %arg6[%c24_138, %c32_139] : memref<36x256xbf16, #tpu.memory_space<vmem>>, vector<4x16xbf16>
    tpu.vector_store %arg6[%c24_138, %c32_139], %87 {strides = array<i32>} : memref<36x256xbf16, #tpu.memory_space<vmem>>, vector<4x16xbf16>,
    %c0_140 = arith.constant 0 : index
    %c4_141 = arith.constant 4 : index
    %c1_142 = arith.constant 1 : index
    %89 = vector.load %arg5[%c0_140, %c4_141, %c1_142] : memref<4x18x18xbf16, #tpu.memory_space<vmem>>, vector<4x1x16xbf16>
    %90 = vector.shape_cast %89 : vector<4x1x16xbf16> to vector<4x16xbf16>
    %c28_143 = arith.constant 28 : index
    %c32_144 = arith.constant 32 : index
    %91 = vector.load %arg6[%c28_143, %c32_144] : memref<36x256xbf16, #tpu.memory_space<vmem>>, vector<4x16xbf16>
    tpu.vector_store %arg6[%c28_143, %c32_144], %90 {strides = array<i32>} : memref<36x256xbf16, #tpu.memory_space<vmem>>, vector<4x16xbf16>,
    %c0_145 = arith.constant 0 : index
    %c4_146 = arith.constant 4 : index
    %c2_147 = arith.constant 2 : index
    %92 = vector.load %arg5[%c0_145, %c4_146, %c2_147] : memref<4x18x18xbf16, #tpu.memory_space<vmem>>, vector<4x1x16xbf16>
    %93 = vector.shape_cast %92 : vector<4x1x16xbf16> to vector<4x16xbf16>
    %c32_148 = arith.constant 32 : index
    %c32_149 = arith.constant 32 : index
    %94 = vector.load %arg6[%c32_148, %c32_149] : memref<36x256xbf16, #tpu.memory_space<vmem>>, vector<4x16xbf16>
    tpu.vector_store %arg6[%c32_148, %c32_149], %93 {strides = array<i32>} : memref<36x256xbf16, #tpu.memory_space<vmem>>, vector<4x16xbf16>,
    %c0_150 = arith.constant 0 : index
    %c3_151 = arith.constant 3 : index
    %c0_152 = arith.constant 0 : index
    %95 = vector.load %arg5[%c0_150, %c3_151, %c0_152] : memref<4x18x18xbf16, #tpu.memory_space<vmem>>, vector<4x1x16xbf16>
    %96 = vector.shape_cast %95 : vector<4x1x16xbf16> to vector<4x16xbf16>
    %c0_153 = arith.constant 0 : index
    %c48 = arith.constant 48 : index
    %97 = vector.load %arg6[%c0_153, %c48] : memref<36x256xbf16, #tpu.memory_space<vmem>>, vector<4x16xbf16>
    tpu.vector_store %arg6[%c0_153, %c48], %96 {strides = array<i32>} : memref<36x256xbf16, #tpu.memory_space<vmem>>, vector<4x16xbf16>,
    %c0_154 = arith.constant 0 : index
    %c3_155 = arith.constant 3 : index
    %c1_156 = arith.constant 1 : index
    %98 = vector.load %arg5[%c0_154, %c3_155, %c1_156] : memref<4x18x18xbf16, #tpu.memory_space<vmem>>, vector<4x1x16xbf16>
    %99 = vector.shape_cast %98 : vector<4x1x16xbf16> to vector<4x16xbf16>
    %c4_157 = arith.constant 4 : index
    %c48_158 = arith.constant 48 : index
    %100 = vector.load %arg6[%c4_157, %c48_158] : memref<36x256xbf16, #tpu.memory_space<vmem>>, vector<4x16xbf16>
    tpu.vector_store %arg6[%c4_157, %c48_158], %99 {strides = array<i32>} : memref<36x256xbf16, #tpu.memory_space<vmem>>, vector<4x16xbf16>,
    %c0_159 = arith.constant 0 : index
    %c3_160 = arith.constant 3 : index
    %c2_161 = arith.constant 2 : index
    %101 = vector.load %arg5[%c0_159, %c3_160, %c2_161] : memref<4x18x18xbf16, #tpu.memory_space<vmem>>, vector<4x1x16xbf16>
    %102 = vector.shape_cast %101 : vector<4x1x16xbf16> to vector<4x16xbf16>
    %c8_162 = arith.constant 8 : index
    %c48_163 = arith.constant 48 : index
    %103 = vector.load %arg6[%c8_162, %c48_163] : memref<36x256xbf16, #tpu.memory_space<vmem>>, vector<4x16xbf16>
    tpu.vector_store %arg6[%c8_162, %c48_163], %102 {strides = array<i32>} : memref<36x256xbf16, #tpu.memory_space<vmem>>, vector<4x16xbf16>,
    %c0_164 = arith.constant 0 : index
    %c4_165 = arith.constant 4 : index
    %c0_166 = arith.constant 0 : index
    %104 = vector.load %arg5[%c0_164, %c4_165, %c0_166] : memref<4x18x18xbf16, #tpu.memory_space<vmem>>, vector<4x1x16xbf16>
    %105 = vector.shape_cast %104 : vector<4x1x16xbf16> to vector<4x16xbf16>
    %c12_167 = arith.constant 12 : index
    %c48_168 = arith.constant 48 : index
    %106 = vector.load %arg6[%c12_167, %c48_168] : memref<36x256xbf16, #tpu.memory_space<vmem>>, vector<4x16xbf16>
    tpu.vector_store %arg6[%c12_167, %c48_168], %105 {strides = array<i32>} : memref<36x256xbf16, #tpu.memory_space<vmem>>, vector<4x16xbf16>,
    %c0_169 = arith.constant 0 : index
    %c4_170 = arith.constant 4 : index
    %c1_171 = arith.constant 1 : index
    %107 = vector.load %arg5[%c0_169, %c4_170, %c1_171] : memref<4x18x18xbf16, #tpu.memory_space<vmem>>, vector<4x1x16xbf16>
    %108 = vector.shape_cast %107 : vector<4x1x16xbf16> to vector<4x16xbf16>
    %c16_172 = arith.constant 16 : index
    %c48_173 = arith.constant 48 : index
    %109 = vector.load %arg6[%c16_172, %c48_173] : memref<36x256xbf16, #tpu.memory_space<vmem>>, vector<4x16xbf16>
    tpu.vector_store %arg6[%c16_172, %c48_173], %108 {strides = array<i32>} : memref<36x256xbf16, #tpu.memory_space<vmem>>, vector<4x16xbf16>,
    %c0_174 = arith.constant 0 : index
    %c4_175 = arith.constant 4 : index
    %c2_176 = arith.constant 2 : index
    %110 = vector.load %arg5[%c0_174, %c4_175, %c2_176] : memref<4x18x18xbf16, #tpu.memory_space<vmem>>, vector<4x1x16xbf16>
    %111 = vector.shape_cast %110 : vector<4x1x16xbf16> to vector<4x16xbf16>
    %c20_177 = arith.constant 20 : index
    %c48_178 = arith.constant 48 : index
    %112 = vector.load %arg6[%c20_177, %c48_178] : memref<36x256xbf16, #tpu.memory_space<vmem>>, vector<4x16xbf16>
    tpu.vector_store %arg6[%c20_177, %c48_178], %111 {strides = array<i32>} : memref<36x256xbf16, #tpu.memory_space<vmem>>, vector<4x16xbf16>,
    %c0_179 = arith.constant 0 : index
    %c5 = arith.constant 5 : index
    %c0_180 = arith.constant 0 : index
    %113 = vector.load %arg5[%c0_179, %c5, %c0_180] : memref<4x18x18xbf16, #tpu.memory_space<vmem>>, vector<4x1x16xbf16>
    %114 = vector.shape_cast %113 : vector<4x1x16xbf16> to vector<4x16xbf16>
    %c24_181 = arith.constant 24 : index
    %c48_182 = arith.constant 48 : index
    %115 = vector.load %arg6[%c24_181, %c48_182] : memref<36x256xbf16, #tpu.memory_space<vmem>>, vector<4x16xbf16>
    tpu.vector_store %arg6[%c24_181, %c48_182], %114 {strides = array<i32>} : memref<36x256xbf16, #tpu.memory_space<vmem>>, vector<4x16xbf16>,
    %c0_183 = arith.constant 0 : index
    %c5_184 = arith.constant 5 : index
    %c1_185 = arith.constant 1 : index
    %116 = vector.load %arg5[%c0_183, %c5_184, %c1_185] : memref<4x18x18xbf16, #tpu.memory_space<vmem>>, vector<4x1x16xbf16>
    %117 = vector.shape_cast %116 : vector<4x1x16xbf16> to vector<4x16xbf16>
    %c28_186 = arith.constant 28 : index
    %c48_187 = arith.constant 48 : index
    %118 = vector.load %arg6[%c28_186, %c48_187] : memref<36x256xbf16, #tpu.memory_space<vmem>>, vector<4x16xbf16>
    tpu.vector_store %arg6[%c28_186, %c48_187], %117 {strides = array<i32>} : memref<36x256xbf16, #tpu.memory_space<vmem>>, vector<4x16xbf16>,
    %c0_188 = arith.constant 0 : index
    %c5_189 = arith.constant 5 : index
    %c2_190 = arith.constant 2 : index
    %119 = vector.load %arg5[%c0_188, %c5_189, %c2_190] : memref<4x18x18xbf16, #tpu.memory_space<vmem>>, vector<4x1x16xbf16>
    %120 = vector.shape_cast %119 : vector<4x1x16xbf16> to vector<4x16xbf16>
    %c32_191 = arith.constant 32 : index
    %c48_192 = arith.constant 48 : index
    %121 = vector.load %arg6[%c32_191, %c48_192] : memref<36x256xbf16, #tpu.memory_space<vmem>>, vector<4x16xbf16>
    tpu.vector_store %arg6[%c32_191, %c48_192], %120 {strides = array<i32>} : memref<36x256xbf16, #tpu.memory_space<vmem>>, vector<4x16xbf16>,
    %c0_193 = arith.constant 0 : index
    %c4_194 = arith.constant 4 : index
    %c0_195 = arith.constant 0 : index
    %122 = vector.load %arg5[%c0_193, %c4_194, %c0_195] : memref<4x18x18xbf16, #tpu.memory_space<vmem>>, vector<4x1x16xbf16>
    %123 = vector.shape_cast %122 : vector<4x1x16xbf16> to vector<4x16xbf16>
    %c0_196 = arith.constant 0 : index
    %c64 = arith.constant 64 : index
    %124 = vector.load %arg6[%c0_196, %c64] : memref<36x256xbf16, #tpu.memory_space<vmem>>, vector<4x16xbf16>
    tpu.vector_store %arg6[%c0_196, %c64], %123 {strides = array<i32>} : memref<36x256xbf16, #tpu.memory_space<vmem>>, vector<4x16xbf16>,
    %c0_197 = arith.constant 0 : index
    %c4_198 = arith.constant 4 : index
    %c1_199 = arith.constant 1 : index
    %125 = vector.load %arg5[%c0_197, %c4_198, %c1_199] : memref<4x18x18xbf16, #tpu.memory_space<vmem>>, vector<4x1x16xbf16>
    %126 = vector.shape_cast %125 : vector<4x1x16xbf16> to vector<4x16xbf16>
    %c4_200 = arith.constant 4 : index
    %c64_201 = arith.constant 64 : index
    %127 = vector.load %arg6[%c4_200, %c64_201] : memref<36x256xbf16, #tpu.memory_space<vmem>>, vector<4x16xbf16>
    tpu.vector_store %arg6[%c4_200, %c64_201], %126 {strides = array<i32>} : memref<36x256xbf16, #tpu.memory_space<vmem>>, vector<4x16xbf16>,
    %c0_202 = arith.constant 0 : index
    %c4_203 = arith.constant 4 : index
    %c2_204 = arith.constant 2 : index
    %128 = vector.load %arg5[%c0_202, %c4_203, %c2_204] : memref<4x18x18xbf16, #tpu.memory_space<vmem>>, vector<4x1x16xbf16>
    %129 = vector.shape_cast %128 : vector<4x1x16xbf16> to vector<4x16xbf16>
    %c8_205 = arith.constant 8 : index
    %c64_206 = arith.constant 64 : index
    %130 = vector.load %arg6[%c8_205, %c64_206] : memref<36x256xbf16, #tpu.memory_space<vmem>>, vector<4x16xbf16>
    tpu.vector_store %arg6[%c8_205, %c64_206], %129 {strides = array<i32>} : memref<36x256xbf16, #tpu.memory_space<vmem>>, vector<4x16xbf16>,
    %c0_207 = arith.constant 0 : index
    %c5_208 = arith.constant 5 : index
    %c0_209 = arith.constant 0 : index
    %131 = vector.load %arg5[%c0_207, %c5_208, %c0_209] : memref<4x18x18xbf16, #tpu.memory_space<vmem>>, vector<4x1x16xbf16>
    %132 = vector.shape_cast %131 : vector<4x1x16xbf16> to vector<4x16xbf16>
    %c12_210 = arith.constant 12 : index
    %c64_211 = arith.constant 64 : index
    %133 = vector.load %arg6[%c12_210, %c64_211] : memref<36x256xbf16, #tpu.memory_space<vmem>>, vector<4x16xbf16>
    tpu.vector_store %arg6[%c12_210, %c64_211], %132 {strides = array<i32>} : memref<36x256xbf16, #tpu.memory_space<vmem>>, vector<4x16xbf16>,
    %c0_212 = arith.constant 0 : index
    %c5_213 = arith.constant 5 : index
    %c1_214 = arith.constant 1 : index
    %134 = vector.load %arg5[%c0_212, %c5_213, %c1_214] : memref<4x18x18xbf16, #tpu.memory_space<vmem>>, vector<4x1x16xbf16>
    %135 = vector.shape_cast %134 : vector<4x1x16xbf16> to vector<4x16xbf16>
    %c16_215 = arith.constant 16 : index
    %c64_216 = arith.constant 64 : index
    %136 = vector.load %arg6[%c16_215, %c64_216] : memref<36x256xbf16, #tpu.memory_space<vmem>>, vector<4x16xbf16>
    tpu.vector_store %arg6[%c16_215, %c64_216], %135 {strides = array<i32>} : memref<36x256xbf16, #tpu.memory_space<vmem>>, vector<4x16xbf16>,
    %c0_217 = arith.constant 0 : index
    %c5_218 = arith.constant 5 : index
    %c2_219 = arith.constant 2 : index
    %137 = vector.load %arg5[%c0_217, %c5_218, %c2_219] : memref<4x18x18xbf16, #tpu.memory_space<vmem>>, vector<4x1x16xbf16>
    %138 = vector.shape_cast %137 : vector<4x1x16xbf16> to vector<4x16xbf16>
    %c20_220 = arith.constant 20 : index
    %c64_221 = arith.constant 64 : index
    %139 = vector.load %arg6[%c20_220, %c64_221] : memref<36x256xbf16, #tpu.memory_space<vmem>>, vector<4x16xbf16>
    tpu.vector_store %arg6[%c20_220, %c64_221], %138 {strides = array<i32>} : memref<36x256xbf16, #tpu.memory_space<vmem>>, vector<4x16xbf16>,
    %c0_222 = arith.constant 0 : index
    %c6 = arith.constant 6 : index
    %c0_223 = arith.constant 0 : index
    %140 = vector.load %arg5[%c0_222, %c6, %c0_223] : memref<4x18x18xbf16, #tpu.memory_space<vmem>>, vector<4x1x16xbf16>
    %141 = vector.shape_cast %140 : vector<4x1x16xbf16> to vector<4x16xbf16>
    %c24_224 = arith.constant 24 : index
    %c64_225 = arith.constant 64 : index
    %142 = vector.load %arg6[%c24_224, %c64_225] : memref<36x256xbf16, #tpu.memory_space<vmem>>, vector<4x16xbf16>
    tpu.vector_store %arg6[%c24_224, %c64_225], %141 {strides = array<i32>} : memref<36x256xbf16, #tpu.memory_space<vmem>>, vector<4x16xbf16>,
    %c0_226 = arith.constant 0 : index
    %c6_227 = arith.constant 6 : index
    %c1_228 = arith.constant 1 : index
    %143 = vector.load %arg5[%c0_226, %c6_227, %c1_228] : memref<4x18x18xbf16, #tpu.memory_space<vmem>>, vector<4x1x16xbf16>
    %144 = vector.shape_cast %143 : vector<4x1x16xbf16> to vector<4x16xbf16>
    %c28_229 = arith.constant 28 : index
    %c64_230 = arith.constant 64 : index
    %145 = vector.load %arg6[%c28_229, %c64_230] : memref<36x256xbf16, #tpu.memory_space<vmem>>, vector<4x16xbf16>
    tpu.vector_store %arg6[%c28_229, %c64_230], %144 {strides = array<i32>} : memref<36x256xbf16, #tpu.memory_space<vmem>>, vector<4x16xbf16>,
    %c0_231 = arith.constant 0 : index
    %c6_232 = arith.constant 6 : index
    %c2_233 = arith.constant 2 : index
    %146 = vector.load %arg5[%c0_231, %c6_232, %c2_233] : memref<4x18x18xbf16, #tpu.memory_space<vmem>>, vector<4x1x16xbf16>
    %147 = vector.shape_cast %146 : vector<4x1x16xbf16> to vector<4x16xbf16>
    %c32_234 = arith.constant 32 : index
    %c64_235 = arith.constant 64 : index
    %148 = vector.load %arg6[%c32_234, %c64_235] : memref<36x256xbf16, #tpu.memory_space<vmem>>, vector<4x16xbf16>
    tpu.vector_store %arg6[%c32_234, %c64_235], %147 {strides = array<i32>} : memref<36x256xbf16, #tpu.memory_space<vmem>>, vector<4x16xbf16>,
    %c0_236 = arith.constant 0 : index
    %c5_237 = arith.constant 5 : index
    %c0_238 = arith.constant 0 : index
    %149 = vector.load %arg5[%c0_236, %c5_237, %c0_238] : memref<4x18x18xbf16, #tpu.memory_space<vmem>>, vector<4x1x16xbf16>
    %150 = vector.shape_cast %149 : vector<4x1x16xbf16> to vector<4x16xbf16>
    %c0_239 = arith.constant 0 : index
    %c80 = arith.constant 80 : index
    %151 = vector.load %arg6[%c0_239, %c80] : memref<36x256xbf16, #tpu.memory_space<vmem>>, vector<4x16xbf16>
    tpu.vector_store %arg6[%c0_239, %c80], %150 {strides = array<i32>} : memref<36x256xbf16, #tpu.memory_space<vmem>>, vector<4x16xbf16>,
    %c0_240 = arith.constant 0 : index
    %c5_241 = arith.constant 5 : index
    %c1_242 = arith.constant 1 : index
    %152 = vector.load %arg5[%c0_240, %c5_241, %c1_242] : memref<4x18x18xbf16, #tpu.memory_space<vmem>>, vector<4x1x16xbf16>
    %153 = vector.shape_cast %152 : vector<4x1x16xbf16> to vector<4x16xbf16>
    %c4_243 = arith.constant 4 : index
    %c80_244 = arith.constant 80 : index
    %154 = vector.load %arg6[%c4_243, %c80_244] : memref<36x256xbf16, #tpu.memory_space<vmem>>, vector<4x16xbf16>
    tpu.vector_store %arg6[%c4_243, %c80_244], %153 {strides = array<i32>} : memref<36x256xbf16, #tpu.memory_space<vmem>>, vector<4x16xbf16>,
    %c0_245 = arith.constant 0 : index
    %c5_246 = arith.constant 5 : index
    %c2_247 = arith.constant 2 : index
    %155 = vector.load %arg5[%c0_245, %c5_246, %c2_247] : memref<4x18x18xbf16, #tpu.memory_space<vmem>>, vector<4x1x16xbf16>
    %156 = vector.shape_cast %155 : vector<4x1x16xbf16> to vector<4x16xbf16>
    %c8_248 = arith.constant 8 : index
    %c80_249 = arith.constant 80 : index
    %157 = vector.load %arg6[%c8_248, %c80_249] : memref<36x256xbf16, #tpu.memory_space<vmem>>, vector<4x16xbf16>
    tpu.vector_store %arg6[%c8_248, %c80_249], %156 {strides = array<i32>} : memref<36x256xbf16, #tpu.memory_space<vmem>>, vector<4x16xbf16>,
    %c0_250 = arith.constant 0 : index
    %c6_251 = arith.constant 6 : index
    %c0_252 = arith.constant 0 : index
    %158 = vector.load %arg5[%c0_250, %c6_251, %c0_252] : memref<4x18x18xbf16, #tpu.memory_space<vmem>>, vector<4x1x16xbf16>
    %159 = vector.shape_cast %158 : vector<4x1x16xbf16> to vector<4x16xbf16>
    %c12_253 = arith.constant 12 : index
    %c80_254 = arith.constant 80 : index
    %160 = vector.load %arg6[%c12_253, %c80_254] : memref<36x256xbf16, #tpu.memory_space<vmem>>, vector<4x16xbf16>
    tpu.vector_store %arg6[%c12_253, %c80_254], %159 {strides = array<i32>} : memref<36x256xbf16, #tpu.memory_space<vmem>>, vector<4x16xbf16>,
    %c0_255 = arith.constant 0 : index
    %c6_256 = arith.constant 6 : index
    %c1_257 = arith.constant 1 : index
    %161 = vector.load %arg5[%c0_255, %c6_256, %c1_257] : memref<4x18x18xbf16, #tpu.memory_space<vmem>>, vector<4x1x16xbf16>
    %162 = vector.shape_cast %161 : vector<4x1x16xbf16> to vector<4x16xbf16>
    %c16_258 = arith.constant 16 : index
    %c80_259 = arith.constant 80 : index
    %163 = vector.load %arg6[%c16_258, %c80_259] : memref<36x256xbf16, #tpu.memory_space<vmem>>, vector<4x16xbf16>
    tpu.vector_store %arg6[%c16_258, %c80_259], %162 {strides = array<i32>} : memref<36x256xbf16, #tpu.memory_space<vmem>>, vector<4x16xbf16>,
    %c0_260 = arith.constant 0 : index
    %c6_261 = arith.constant 6 : index
    %c2_262 = arith.constant 2 : index
    %164 = vector.load %arg5[%c0_260, %c6_261, %c2_262] : memref<4x18x18xbf16, #tpu.memory_space<vmem>>, vector<4x1x16xbf16>
    %165 = vector.shape_cast %164 : vector<4x1x16xbf16> to vector<4x16xbf16>
    %c20_263 = arith.constant 20 : index
    %c80_264 = arith.constant 80 : index
    %166 = vector.load %arg6[%c20_263, %c80_264] : memref<36x256xbf16, #tpu.memory_space<vmem>>, vector<4x16xbf16>
    tpu.vector_store %arg6[%c20_263, %c80_264], %165 {strides = array<i32>} : memref<36x256xbf16, #tpu.memory_space<vmem>>, vector<4x16xbf16>,
    %c0_265 = arith.constant 0 : index
    %c7 = arith.constant 7 : index
    %c0_266 = arith.constant 0 : index
    %167 = vector.load %arg5[%c0_265, %c7, %c0_266] : memref<4x18x18xbf16, #tpu.memory_space<vmem>>, vector<4x1x16xbf16>
    %168 = vector.shape_cast %167 : vector<4x1x16xbf16> to vector<4x16xbf16>
    %c24_267 = arith.constant 24 : index
    %c80_268 = arith.constant 80 : index
    %169 = vector.load %arg6[%c24_267, %c80_268] : memref<36x256xbf16, #tpu.memory_space<vmem>>, vector<4x16xbf16>
    tpu.vector_store %arg6[%c24_267, %c80_268], %168 {strides = array<i32>} : memref<36x256xbf16, #tpu.memory_space<vmem>>, vector<4x16xbf16>,
    %c0_269 = arith.constant 0 : index
    %c7_270 = arith.constant 7 : index
    %c1_271 = arith.constant 1 : index
    %170 = vector.load %arg5[%c0_269, %c7_270, %c1_271] : memref<4x18x18xbf16, #tpu.memory_space<vmem>>, vector<4x1x16xbf16>
    %171 = vector.shape_cast %170 : vector<4x1x16xbf16> to vector<4x16xbf16>
    %c28_272 = arith.constant 28 : index
    %c80_273 = arith.constant 80 : index
    %172 = vector.load %arg6[%c28_272, %c80_273] : memref<36x256xbf16, #tpu.memory_space<vmem>>, vector<4x16xbf16>
    tpu.vector_store %arg6[%c28_272, %c80_273], %171 {strides = array<i32>} : memref<36x256xbf16, #tpu.memory_space<vmem>>, vector<4x16xbf16>,
    %c0_274 = arith.constant 0 : index
    %c7_275 = arith.constant 7 : index
    %c2_276 = arith.constant 2 : index
    %173 = vector.load %arg5[%c0_274, %c7_275, %c2_276] : memref<4x18x18xbf16, #tpu.memory_space<vmem>>, vector<4x1x16xbf16>
    %174 = vector.shape_cast %173 : vector<4x1x16xbf16> to vector<4x16xbf16>
    %c32_277 = arith.constant 32 : index
    %c80_278 = arith.constant 80 : index
    %175 = vector.load %arg6[%c32_277, %c80_278] : memref<36x256xbf16, #tpu.memory_space<vmem>>, vector<4x16xbf16>
    tpu.vector_store %arg6[%c32_277, %c80_278], %174 {strides = array<i32>} : memref<36x256xbf16, #tpu.memory_space<vmem>>, vector<4x16xbf16>,
    %c0_279 = arith.constant 0 : index
    %c6_280 = arith.constant 6 : index
    %c0_281 = arith.constant 0 : index
    %176 = vector.load %arg5[%c0_279, %c6_280, %c0_281] : memref<4x18x18xbf16, #tpu.memory_space<vmem>>, vector<4x1x16xbf16>
    %177 = vector.shape_cast %176 : vector<4x1x16xbf16> to vector<4x16xbf16>
    %c0_282 = arith.constant 0 : index
    %c96 = arith.constant 96 : index
    %178 = vector.load %arg6[%c0_282, %c96] : memref<36x256xbf16, #tpu.memory_space<vmem>>, vector<4x16xbf16>
    tpu.vector_store %arg6[%c0_282, %c96], %177 {strides = array<i32>} : memref<36x256xbf16, #tpu.memory_space<vmem>>, vector<4x16xbf16>,
    %c0_283 = arith.constant 0 : index
    %c6_284 = arith.constant 6 : index
    %c1_285 = arith.constant 1 : index
    %179 = vector.load %arg5[%c0_283, %c6_284, %c1_285] : memref<4x18x18xbf16, #tpu.memory_space<vmem>>, vector<4x1x16xbf16>
    %180 = vector.shape_cast %179 : vector<4x1x16xbf16> to vector<4x16xbf16>
    %c4_286 = arith.constant 4 : index
    %c96_287 = arith.constant 96 : index
    %181 = vector.load %arg6[%c4_286, %c96_287] : memref<36x256xbf16, #tpu.memory_space<vmem>>, vector<4x16xbf16>
    tpu.vector_store %arg6[%c4_286, %c96_287], %180 {strides = array<i32>} : memref<36x256xbf16, #tpu.memory_space<vmem>>, vector<4x16xbf16>,
    %c0_288 = arith.constant 0 : index
    %c6_289 = arith.constant 6 : index
    %c2_290 = arith.constant 2 : index
    %182 = vector.load %arg5[%c0_288, %c6_289, %c2_290] : memref<4x18x18xbf16, #tpu.memory_space<vmem>>, vector<4x1x16xbf16>
    %183 = vector.shape_cast %182 : vector<4x1x16xbf16> to vector<4x16xbf16>
    %c8_291 = arith.constant 8 : index
    %c96_292 = arith.constant 96 : index
    %184 = vector.load %arg6[%c8_291, %c96_292] : memref<36x256xbf16, #tpu.memory_space<vmem>>, vector<4x16xbf16>
    tpu.vector_store %arg6[%c8_291, %c96_292], %183 {strides = array<i32>} : memref<36x256xbf16, #tpu.memory_space<vmem>>, vector<4x16xbf16>,
    %c0_293 = arith.constant 0 : index
    %c7_294 = arith.constant 7 : index
    %c0_295 = arith.constant 0 : index
    %185 = vector.load %arg5[%c0_293, %c7_294, %c0_295] : memref<4x18x18xbf16, #tpu.memory_space<vmem>>, vector<4x1x16xbf16>
    %186 = vector.shape_cast %185 : vector<4x1x16xbf16> to vector<4x16xbf16>
    %c12_296 = arith.constant 12 : index
    %c96_297 = arith.constant 96 : index
    %187 = vector.load %arg6[%c12_296, %c96_297] : memref<36x256xbf16, #tpu.memory_space<vmem>>, vector<4x16xbf16>
    tpu.vector_store %arg6[%c12_296, %c96_297], %186 {strides = array<i32>} : memref<36x256xbf16, #tpu.memory_space<vmem>>, vector<4x16xbf16>,
    %c0_298 = arith.constant 0 : index
    %c7_299 = arith.constant 7 : index
    %c1_300 = arith.constant 1 : index
    %188 = vector.load %arg5[%c0_298, %c7_299, %c1_300] : memref<4x18x18xbf16, #tpu.memory_space<vmem>>, vector<4x1x16xbf16>
    %189 = vector.shape_cast %188 : vector<4x1x16xbf16> to vector<4x16xbf16>
    %c16_301 = arith.constant 16 : index
    %c96_302 = arith.constant 96 : index
    %190 = vector.load %arg6[%c16_301, %c96_302] : memref<36x256xbf16, #tpu.memory_space<vmem>>, vector<4x16xbf16>
    tpu.vector_store %arg6[%c16_301, %c96_302], %189 {strides = array<i32>} : memref<36x256xbf16, #tpu.memory_space<vmem>>, vector<4x16xbf16>,
    %c0_303 = arith.constant 0 : index
    %c7_304 = arith.constant 7 : index
    %c2_305 = arith.constant 2 : index
    %191 = vector.load %arg5[%c0_303, %c7_304, %c2_305] : memref<4x18x18xbf16, #tpu.memory_space<vmem>>, vector<4x1x16xbf16>
    %192 = vector.shape_cast %191 : vector<4x1x16xbf16> to vector<4x16xbf16>
    %c20_306 = arith.constant 20 : index
    %c96_307 = arith.constant 96 : index
    %193 = vector.load %arg6[%c20_306, %c96_307] : memref<36x256xbf16, #tpu.memory_space<vmem>>, vector<4x16xbf16>
    tpu.vector_store %arg6[%c20_306, %c96_307], %192 {strides = array<i32>} : memref<36x256xbf16, #tpu.memory_space<vmem>>, vector<4x16xbf16>,
    %c0_308 = arith.constant 0 : index
    %c8_309 = arith.constant 8 : index
    %c0_310 = arith.constant 0 : index
    %194 = vector.load %arg5[%c0_308, %c8_309, %c0_310] : memref<4x18x18xbf16, #tpu.memory_space<vmem>>, vector<4x1x16xbf16>
    %195 = vector.shape_cast %194 : vector<4x1x16xbf16> to vector<4x16xbf16>
    %c24_311 = arith.constant 24 : index
    %c96_312 = arith.constant 96 : index
    %196 = vector.load %arg6[%c24_311, %c96_312] : memref<36x256xbf16, #tpu.memory_space<vmem>>, vector<4x16xbf16>
    tpu.vector_store %arg6[%c24_311, %c96_312], %195 {strides = array<i32>} : memref<36x256xbf16, #tpu.memory_space<vmem>>, vector<4x16xbf16>,
    %c0_313 = arith.constant 0 : index
    %c8_314 = arith.constant 8 : index
    %c1_315 = arith.constant 1 : index
    %197 = vector.load %arg5[%c0_313, %c8_314, %c1_315] : memref<4x18x18xbf16, #tpu.memory_space<vmem>>, vector<4x1x16xbf16>
    %198 = vector.shape_cast %197 : vector<4x1x16xbf16> to vector<4x16xbf16>
    %c28_316 = arith.constant 28 : index
    %c96_317 = arith.constant 96 : index
    %199 = vector.load %arg6[%c28_316, %c96_317] : memref<36x256xbf16, #tpu.memory_space<vmem>>, vector<4x16xbf16>
    tpu.vector_store %arg6[%c28_316, %c96_317], %198 {strides = array<i32>} : memref<36x256xbf16, #tpu.memory_space<vmem>>, vector<4x16xbf16>,
    %c0_318 = arith.constant 0 : index
    %c8_319 = arith.constant 8 : index
    %c2_320 = arith.constant 2 : index
    %200 = vector.load %arg5[%c0_318, %c8_319, %c2_320] : memref<4x18x18xbf16, #tpu.memory_space<vmem>>, vector<4x1x16xbf16>
    %201 = vector.shape_cast %200 : vector<4x1x16xbf16> to vector<4x16xbf16>
    %c32_321 = arith.constant 32 : index
    %c96_322 = arith.constant 96 : index
    %202 = vector.load %arg6[%c32_321, %c96_322] : memref<36x256xbf16, #tpu.memory_space<vmem>>, vector<4x16xbf16>
    tpu.vector_store %arg6[%c32_321, %c96_322], %201 {strides = array<i32>} : memref<36x256xbf16, #tpu.memory_space<vmem>>, vector<4x16xbf16>,
    %c0_323 = arith.constant 0 : index
    %c7_324 = arith.constant 7 : index
    %c0_325 = arith.constant 0 : index
    %203 = vector.load %arg5[%c0_323, %c7_324, %c0_325] : memref<4x18x18xbf16, #tpu.memory_space<vmem>>, vector<4x1x16xbf16>
    %204 = vector.shape_cast %203 : vector<4x1x16xbf16> to vector<4x16xbf16>
    %c0_326 = arith.constant 0 : index
    %c112 = arith.constant 112 : index
    %205 = vector.load %arg6[%c0_326, %c112] : memref<36x256xbf16, #tpu.memory_space<vmem>>, vector<4x16xbf16>
    tpu.vector_store %arg6[%c0_326, %c112], %204 {strides = array<i32>} : memref<36x256xbf16, #tpu.memory_space<vmem>>, vector<4x16xbf16>,
    %c0_327 = arith.constant 0 : index
    %c7_328 = arith.constant 7 : index
    %c1_329 = arith.constant 1 : index
    %206 = vector.load %arg5[%c0_327, %c7_328, %c1_329] : memref<4x18x18xbf16, #tpu.memory_space<vmem>>, vector<4x1x16xbf16>
    %207 = vector.shape_cast %206 : vector<4x1x16xbf16> to vector<4x16xbf16>
    %c4_330 = arith.constant 4 : index
    %c112_331 = arith.constant 112 : index
    %208 = vector.load %arg6[%c4_330, %c112_331] : memref<36x256xbf16, #tpu.memory_space<vmem>>, vector<4x16xbf16>
    tpu.vector_store %arg6[%c4_330, %c112_331], %207 {strides = array<i32>} : memref<36x256xbf16, #tpu.memory_space<vmem>>, vector<4x16xbf16>,
    %c0_332 = arith.constant 0 : index
    %c7_333 = arith.constant 7 : index
    %c2_334 = arith.constant 2 : index
    %209 = vector.load %arg5[%c0_332, %c7_333, %c2_334] : memref<4x18x18xbf16, #tpu.memory_space<vmem>>, vector<4x1x16xbf16>
    %210 = vector.shape_cast %209 : vector<4x1x16xbf16> to vector<4x16xbf16>
    %c8_335 = arith.constant 8 : index
    %c112_336 = arith.constant 112 : index
    %211 = vector.load %arg6[%c8_335, %c112_336] : memref<36x256xbf16, #tpu.memory_space<vmem>>, vector<4x16xbf16>
    tpu.vector_store %arg6[%c8_335, %c112_336], %210 {strides = array<i32>} : memref<36x256xbf16, #tpu.memory_space<vmem>>, vector<4x16xbf16>,
    %c0_337 = arith.constant 0 : index
    %c8_338 = arith.constant 8 : index
    %c0_339 = arith.constant 0 : index
    %212 = vector.load %arg5[%c0_337, %c8_338, %c0_339] : memref<4x18x18xbf16, #tpu.memory_space<vmem>>, vector<4x1x16xbf16>
    %213 = vector.shape_cast %212 : vector<4x1x16xbf16> to vector<4x16xbf16>
    %c12_340 = arith.constant 12 : index
    %c112_341 = arith.constant 112 : index
    %214 = vector.load %arg6[%c12_340, %c112_341] : memref<36x256xbf16, #tpu.memory_space<vmem>>, vector<4x16xbf16>
    tpu.vector_store %arg6[%c12_340, %c112_341], %213 {strides = array<i32>} : memref<36x256xbf16, #tpu.memory_space<vmem>>, vector<4x16xbf16>,
    %c0_342 = arith.constant 0 : index
    %c8_343 = arith.constant 8 : index
    %c1_344 = arith.constant 1 : index
    %215 = vector.load %arg5[%c0_342, %c8_343, %c1_344] : memref<4x18x18xbf16, #tpu.memory_space<vmem>>, vector<4x1x16xbf16>
    %216 = vector.shape_cast %215 : vector<4x1x16xbf16> to vector<4x16xbf16>
    %c16_345 = arith.constant 16 : index
    %c112_346 = arith.constant 112 : index
    %217 = vector.load %arg6[%c16_345, %c112_346] : memref<36x256xbf16, #tpu.memory_space<vmem>>, vector<4x16xbf16>
    tpu.vector_store %arg6[%c16_345, %c112_346], %216 {strides = array<i32>} : memref<36x256xbf16, #tpu.memory_space<vmem>>, vector<4x16xbf16>,
    %c0_347 = arith.constant 0 : index
    %c8_348 = arith.constant 8 : index
    %c2_349 = arith.constant 2 : index
    %218 = vector.load %arg5[%c0_347, %c8_348, %c2_349] : memref<4x18x18xbf16, #tpu.memory_space<vmem>>, vector<4x1x16xbf16>
    %219 = vector.shape_cast %218 : vector<4x1x16xbf16> to vector<4x16xbf16>
    %c20_350 = arith.constant 20 : index
    %c112_351 = arith.constant 112 : index
    %220 = vector.load %arg6[%c20_350, %c112_351] : memref<36x256xbf16, #tpu.memory_space<vmem>>, vector<4x16xbf16>
    tpu.vector_store %arg6[%c20_350, %c112_351], %219 {strides = array<i32>} : memref<36x256xbf16, #tpu.memory_space<vmem>>, vector<4x16xbf16>,
    %c0_352 = arith.constant 0 : index
    %c9 = arith.constant 9 : index
    %c0_353 = arith.constant 0 : index
    %221 = vector.load %arg5[%c0_352, %c9, %c0_353] : memref<4x18x18xbf16, #tpu.memory_space<vmem>>, vector<4x1x16xbf16>
    %222 = vector.shape_cast %221 : vector<4x1x16xbf16> to vector<4x16xbf16>
    %c24_354 = arith.constant 24 : index
    %c112_355 = arith.constant 112 : index
    %223 = vector.load %arg6[%c24_354, %c112_355] : memref<36x256xbf16, #tpu.memory_space<vmem>>, vector<4x16xbf16>
    tpu.vector_store %arg6[%c24_354, %c112_355], %222 {strides = array<i32>} : memref<36x256xbf16, #tpu.memory_space<vmem>>, vector<4x16xbf16>,
    %c0_356 = arith.constant 0 : index
    %c9_357 = arith.constant 9 : index
    %c1_358 = arith.constant 1 : index
    %224 = vector.load %arg5[%c0_356, %c9_357, %c1_358] : memref<4x18x18xbf16, #tpu.memory_space<vmem>>, vector<4x1x16xbf16>
    %225 = vector.shape_cast %224 : vector<4x1x16xbf16> to vector<4x16xbf16>
    %c28_359 = arith.constant 28 : index
    %c112_360 = arith.constant 112 : index
    %226 = vector.load %arg6[%c28_359, %c112_360] : memref<36x256xbf16, #tpu.memory_space<vmem>>, vector<4x16xbf16>
    tpu.vector_store %arg6[%c28_359, %c112_360], %225 {strides = array<i32>} : memref<36x256xbf16, #tpu.memory_space<vmem>>, vector<4x16xbf16>,
    %c0_361 = arith.constant 0 : index
    %c9_362 = arith.constant 9 : index
    %c2_363 = arith.constant 2 : index
    %227 = vector.load %arg5[%c0_361, %c9_362, %c2_363] : memref<4x18x18xbf16, #tpu.memory_space<vmem>>, vector<4x1x16xbf16>
    %228 = vector.shape_cast %227 : vector<4x1x16xbf16> to vector<4x16xbf16>
    %c32_364 = arith.constant 32 : index
    %c112_365 = arith.constant 112 : index
    %229 = vector.load %arg6[%c32_364, %c112_365] : memref<36x256xbf16, #tpu.memory_space<vmem>>, vector<4x16xbf16>
    tpu.vector_store %arg6[%c32_364, %c112_365], %228 {strides = array<i32>} : memref<36x256xbf16, #tpu.memory_space<vmem>>, vector<4x16xbf16>,
    %c0_366 = arith.constant 0 : index
    %c8_367 = arith.constant 8 : index
    %c0_368 = arith.constant 0 : index
    %230 = vector.load %arg5[%c0_366, %c8_367, %c0_368] : memref<4x18x18xbf16, #tpu.memory_space<vmem>>, vector<4x1x16xbf16>
    %231 = vector.shape_cast %230 : vector<4x1x16xbf16> to vector<4x16xbf16>
    %c0_369 = arith.constant 0 : index
    %c128 = arith.constant 128 : index
    %232 = vector.load %arg6[%c0_369, %c128] : memref<36x256xbf16, #tpu.memory_space<vmem>>, vector<4x16xbf16>
    tpu.vector_store %arg6[%c0_369, %c128], %231 {strides = array<i32>} : memref<36x256xbf16, #tpu.memory_space<vmem>>, vector<4x16xbf16>,
    %c0_370 = arith.constant 0 : index
    %c8_371 = arith.constant 8 : index
    %c1_372 = arith.constant 1 : index
    %233 = vector.load %arg5[%c0_370, %c8_371, %c1_372] : memref<4x18x18xbf16, #tpu.memory_space<vmem>>, vector<4x1x16xbf16>
    %234 = vector.shape_cast %233 : vector<4x1x16xbf16> to vector<4x16xbf16>
    %c4_373 = arith.constant 4 : index
    %c128_374 = arith.constant 128 : index
    %235 = vector.load %arg6[%c4_373, %c128_374] : memref<36x256xbf16, #tpu.memory_space<vmem>>, vector<4x16xbf16>
    tpu.vector_store %arg6[%c4_373, %c128_374], %234 {strides = array<i32>} : memref<36x256xbf16, #tpu.memory_space<vmem>>, vector<4x16xbf16>,
    %c0_375 = arith.constant 0 : index
    %c8_376 = arith.constant 8 : index
    %c2_377 = arith.constant 2 : index
    %236 = vector.load %arg5[%c0_375, %c8_376, %c2_377] : memref<4x18x18xbf16, #tpu.memory_space<vmem>>, vector<4x1x16xbf16>
    %237 = vector.shape_cast %236 : vector<4x1x16xbf16> to vector<4x16xbf16>
    %c8_378 = arith.constant 8 : index
    %c128_379 = arith.constant 128 : index
    %238 = vector.load %arg6[%c8_378, %c128_379] : memref<36x256xbf16, #tpu.memory_space<vmem>>, vector<4x16xbf16>
    tpu.vector_store %arg6[%c8_378, %c128_379], %237 {strides = array<i32>} : memref<36x256xbf16, #tpu.memory_space<vmem>>, vector<4x16xbf16>,
    %c0_380 = arith.constant 0 : index
    %c9_381 = arith.constant 9 : index
    %c0_382 = arith.constant 0 : index
    %239 = vector.load %arg5[%c0_380, %c9_381, %c0_382] : memref<4x18x18xbf16, #tpu.memory_space<vmem>>, vector<4x1x16xbf16>
    %240 = vector.shape_cast %239 : vector<4x1x16xbf16> to vector<4x16xbf16>
    %c12_383 = arith.constant 12 : index
    %c128_384 = arith.constant 128 : index
    %241 = vector.load %arg6[%c12_383, %c128_384] : memref<36x256xbf16, #tpu.memory_space<vmem>>, vector<4x16xbf16>
    tpu.vector_store %arg6[%c12_383, %c128_384], %240 {strides = array<i32>} : memref<36x256xbf16, #tpu.memory_space<vmem>>, vector<4x16xbf16>,
    %c0_385 = arith.constant 0 : index
    %c9_386 = arith.constant 9 : index
    %c1_387 = arith.constant 1 : index
    %242 = vector.load %arg5[%c0_385, %c9_386, %c1_387] : memref<4x18x18xbf16, #tpu.memory_space<vmem>>, vector<4x1x16xbf16>
    %243 = vector.shape_cast %242 : vector<4x1x16xbf16> to vector<4x16xbf16>
    %c16_388 = arith.constant 16 : index
    %c128_389 = arith.constant 128 : index
    %244 = vector.load %arg6[%c16_388, %c128_389] : memref<36x256xbf16, #tpu.memory_space<vmem>>, vector<4x16xbf16>
    tpu.vector_store %arg6[%c16_388, %c128_389], %243 {strides = array<i32>} : memref<36x256xbf16, #tpu.memory_space<vmem>>, vector<4x16xbf16>,
    %c0_390 = arith.constant 0 : index
    %c9_391 = arith.constant 9 : index
    %c2_392 = arith.constant 2 : index
    %245 = vector.load %arg5[%c0_390, %c9_391, %c2_392] : memref<4x18x18xbf16, #tpu.memory_space<vmem>>, vector<4x1x16xbf16>
    %246 = vector.shape_cast %245 : vector<4x1x16xbf16> to vector<4x16xbf16>
    %c20_393 = arith.constant 20 : index
    %c128_394 = arith.constant 128 : index
    %247 = vector.load %arg6[%c20_393, %c128_394] : memref<36x256xbf16, #tpu.memory_space<vmem>>, vector<4x16xbf16>
    tpu.vector_store %arg6[%c20_393, %c128_394], %246 {strides = array<i32>} : memref<36x256xbf16, #tpu.memory_space<vmem>>, vector<4x16xbf16>,
    %c0_395 = arith.constant 0 : index
    %c10 = arith.constant 10 : index
    %c0_396 = arith.constant 0 : index
    %248 = vector.load %arg5[%c0_395, %c10, %c0_396] : memref<4x18x18xbf16, #tpu.memory_space<vmem>>, vector<4x1x16xbf16>
    %249 = vector.shape_cast %248 : vector<4x1x16xbf16> to vector<4x16xbf16>
    %c24_397 = arith.constant 24 : index
    %c128_398 = arith.constant 128 : index
    %250 = vector.load %arg6[%c24_397, %c128_398] : memref<36x256xbf16, #tpu.memory_space<vmem>>, vector<4x16xbf16>
    tpu.vector_store %arg6[%c24_397, %c128_398], %249 {strides = array<i32>} : memref<36x256xbf16, #tpu.memory_space<vmem>>, vector<4x16xbf16>,
    %c0_399 = arith.constant 0 : index
    %c10_400 = arith.constant 10 : index
    %c1_401 = arith.constant 1 : index
    %251 = vector.load %arg5[%c0_399, %c10_400, %c1_401] : memref<4x18x18xbf16, #tpu.memory_space<vmem>>, vector<4x1x16xbf16>
    %252 = vector.shape_cast %251 : vector<4x1x16xbf16> to vector<4x16xbf16>
    %c28_402 = arith.constant 28 : index
    %c128_403 = arith.constant 128 : index
    %253 = vector.load %arg6[%c28_402, %c128_403] : memref<36x256xbf16, #tpu.memory_space<vmem>>, vector<4x16xbf16>
    tpu.vector_store %arg6[%c28_402, %c128_403], %252 {strides = array<i32>} : memref<36x256xbf16, #tpu.memory_space<vmem>>, vector<4x16xbf16>,
    %c0_404 = arith.constant 0 : index
    %c10_405 = arith.constant 10 : index
    %c2_406 = arith.constant 2 : index
    %254 = vector.load %arg5[%c0_404, %c10_405, %c2_406] : memref<4x18x18xbf16, #tpu.memory_space<vmem>>, vector<4x1x16xbf16>
    %255 = vector.shape_cast %254 : vector<4x1x16xbf16> to vector<4x16xbf16>
    %c32_407 = arith.constant 32 : index
    %c128_408 = arith.constant 128 : index
    %256 = vector.load %arg6[%c32_407, %c128_408] : memref<36x256xbf16, #tpu.memory_space<vmem>>, vector<4x16xbf16>
    tpu.vector_store %arg6[%c32_407, %c128_408], %255 {strides = array<i32>} : memref<36x256xbf16, #tpu.memory_space<vmem>>, vector<4x16xbf16>,
    %c0_409 = arith.constant 0 : index
    %c9_410 = arith.constant 9 : index
    %c0_411 = arith.constant 0 : index
    %257 = vector.load %arg5[%c0_409, %c9_410, %c0_411] : memref<4x18x18xbf16, #tpu.memory_space<vmem>>, vector<4x1x16xbf16>
    %258 = vector.shape_cast %257 : vector<4x1x16xbf16> to vector<4x16xbf16>
    %c0_412 = arith.constant 0 : index
    %c144 = arith.constant 144 : index
    %259 = vector.load %arg6[%c0_412, %c144] : memref<36x256xbf16, #tpu.memory_space<vmem>>, vector<4x16xbf16>
    tpu.vector_store %arg6[%c0_412, %c144], %258 {strides = array<i32>} : memref<36x256xbf16, #tpu.memory_space<vmem>>, vector<4x16xbf16>,
    %c0_413 = arith.constant 0 : index
    %c9_414 = arith.constant 9 : index
    %c1_415 = arith.constant 1 : index
    %260 = vector.load %arg5[%c0_413, %c9_414, %c1_415] : memref<4x18x18xbf16, #tpu.memory_space<vmem>>, vector<4x1x16xbf16>
    %261 = vector.shape_cast %260 : vector<4x1x16xbf16> to vector<4x16xbf16>
    %c4_416 = arith.constant 4 : index
    %c144_417 = arith.constant 144 : index
    %262 = vector.load %arg6[%c4_416, %c144_417] : memref<36x256xbf16, #tpu.memory_space<vmem>>, vector<4x16xbf16>
    tpu.vector_store %arg6[%c4_416, %c144_417], %261 {strides = array<i32>} : memref<36x256xbf16, #tpu.memory_space<vmem>>, vector<4x16xbf16>,
    %c0_418 = arith.constant 0 : index
    %c9_419 = arith.constant 9 : index
    %c2_420 = arith.constant 2 : index
    %263 = vector.load %arg5[%c0_418, %c9_419, %c2_420] : memref<4x18x18xbf16, #tpu.memory_space<vmem>>, vector<4x1x16xbf16>
    %264 = vector.shape_cast %263 : vector<4x1x16xbf16> to vector<4x16xbf16>
    %c8_421 = arith.constant 8 : index
    %c144_422 = arith.constant 144 : index
    %265 = vector.load %arg6[%c8_421, %c144_422] : memref<36x256xbf16, #tpu.memory_space<vmem>>, vector<4x16xbf16>
    tpu.vector_store %arg6[%c8_421, %c144_422], %264 {strides = array<i32>} : memref<36x256xbf16, #tpu.memory_space<vmem>>, vector<4x16xbf16>,
    %c0_423 = arith.constant 0 : index
    %c10_424 = arith.constant 10 : index
    %c0_425 = arith.constant 0 : index
    %266 = vector.load %arg5[%c0_423, %c10_424, %c0_425] : memref<4x18x18xbf16, #tpu.memory_space<vmem>>, vector<4x1x16xbf16>
    %267 = vector.shape_cast %266 : vector<4x1x16xbf16> to vector<4x16xbf16>
    %c12_426 = arith.constant 12 : index
    %c144_427 = arith.constant 144 : index
    %268 = vector.load %arg6[%c12_426, %c144_427] : memref<36x256xbf16, #tpu.memory_space<vmem>>, vector<4x16xbf16>
    tpu.vector_store %arg6[%c12_426, %c144_427], %267 {strides = array<i32>} : memref<36x256xbf16, #tpu.memory_space<vmem>>, vector<4x16xbf16>,
    %c0_428 = arith.constant 0 : index
    %c10_429 = arith.constant 10 : index
    %c1_430 = arith.constant 1 : index
    %269 = vector.load %arg5[%c0_428, %c10_429, %c1_430] : memref<4x18x18xbf16, #tpu.memory_space<vmem>>, vector<4x1x16xbf16>
    %270 = vector.shape_cast %269 : vector<4x1x16xbf16> to vector<4x16xbf16>
    %c16_431 = arith.constant 16 : index
    %c144_432 = arith.constant 144 : index
    %271 = vector.load %arg6[%c16_431, %c144_432] : memref<36x256xbf16, #tpu.memory_space<vmem>>, vector<4x16xbf16>
    tpu.vector_store %arg6[%c16_431, %c144_432], %270 {strides = array<i32>} : memref<36x256xbf16, #tpu.memory_space<vmem>>, vector<4x16xbf16>,
    %c0_433 = arith.constant 0 : index
    %c10_434 = arith.constant 10 : index
    %c2_435 = arith.constant 2 : index
    %272 = vector.load %arg5[%c0_433, %c10_434, %c2_435] : memref<4x18x18xbf16, #tpu.memory_space<vmem>>, vector<4x1x16xbf16>
    %273 = vector.shape_cast %272 : vector<4x1x16xbf16> to vector<4x16xbf16>
    %c20_436 = arith.constant 20 : index
    %c144_437 = arith.constant 144 : index
    %274 = vector.load %arg6[%c20_436, %c144_437] : memref<36x256xbf16, #tpu.memory_space<vmem>>, vector<4x16xbf16>
    tpu.vector_store %arg6[%c20_436, %c144_437], %273 {strides = array<i32>} : memref<36x256xbf16, #tpu.memory_space<vmem>>, vector<4x16xbf16>,
    %c0_438 = arith.constant 0 : index
    %c11 = arith.constant 11 : index
    %c0_439 = arith.constant 0 : index
    %275 = vector.load %arg5[%c0_438, %c11, %c0_439] : memref<4x18x18xbf16, #tpu.memory_space<vmem>>, vector<4x1x16xbf16>
    %276 = vector.shape_cast %275 : vector<4x1x16xbf16> to vector<4x16xbf16>
    %c24_440 = arith.constant 24 : index
    %c144_441 = arith.constant 144 : index
    %277 = vector.load %arg6[%c24_440, %c144_441] : memref<36x256xbf16, #tpu.memory_space<vmem>>, vector<4x16xbf16>
    tpu.vector_store %arg6[%c24_440, %c144_441], %276 {strides = array<i32>} : memref<36x256xbf16, #tpu.memory_space<vmem>>, vector<4x16xbf16>,
    %c0_442 = arith.constant 0 : index
    %c11_443 = arith.constant 11 : index
    %c1_444 = arith.constant 1 : index
    %278 = vector.load %arg5[%c0_442, %c11_443, %c1_444] : memref<4x18x18xbf16, #tpu.memory_space<vmem>>, vector<4x1x16xbf16>
    %279 = vector.shape_cast %278 : vector<4x1x16xbf16> to vector<4x16xbf16>
    %c28_445 = arith.constant 28 : index
    %c144_446 = arith.constant 144 : index
    %280 = vector.load %arg6[%c28_445, %c144_446] : memref<36x256xbf16, #tpu.memory_space<vmem>>, vector<4x16xbf16>
    tpu.vector_store %arg6[%c28_445, %c144_446], %279 {strides = array<i32>} : memref<36x256xbf16, #tpu.memory_space<vmem>>, vector<4x16xbf16>,
    %c0_447 = arith.constant 0 : index
    %c11_448 = arith.constant 11 : index
    %c2_449 = arith.constant 2 : index
    %281 = vector.load %arg5[%c0_447, %c11_448, %c2_449] : memref<4x18x18xbf16, #tpu.memory_space<vmem>>, vector<4x1x16xbf16>
    %282 = vector.shape_cast %281 : vector<4x1x16xbf16> to vector<4x16xbf16>
    %c32_450 = arith.constant 32 : index
    %c144_451 = arith.constant 144 : index
    %283 = vector.load %arg6[%c32_450, %c144_451] : memref<36x256xbf16, #tpu.memory_space<vmem>>, vector<4x16xbf16>
    tpu.vector_store %arg6[%c32_450, %c144_451], %282 {strides = array<i32>} : memref<36x256xbf16, #tpu.memory_space<vmem>>, vector<4x16xbf16>,
    %c0_452 = arith.constant 0 : index
    %c10_453 = arith.constant 10 : index
    %c0_454 = arith.constant 0 : index
    %284 = vector.load %arg5[%c0_452, %c10_453, %c0_454] : memref<4x18x18xbf16, #tpu.memory_space<vmem>>, vector<4x1x16xbf16>
    %285 = vector.shape_cast %284 : vector<4x1x16xbf16> to vector<4x16xbf16>
    %c0_455 = arith.constant 0 : index
    %c160 = arith.constant 160 : index
    %286 = vector.load %arg6[%c0_455, %c160] : memref<36x256xbf16, #tpu.memory_space<vmem>>, vector<4x16xbf16>
    tpu.vector_store %arg6[%c0_455, %c160], %285 {strides = array<i32>} : memref<36x256xbf16, #tpu.memory_space<vmem>>, vector<4x16xbf16>,
    %c0_456 = arith.constant 0 : index
    %c10_457 = arith.constant 10 : index
    %c1_458 = arith.constant 1 : index
    %287 = vector.load %arg5[%c0_456, %c10_457, %c1_458] : memref<4x18x18xbf16, #tpu.memory_space<vmem>>, vector<4x1x16xbf16>
    %288 = vector.shape_cast %287 : vector<4x1x16xbf16> to vector<4x16xbf16>
    %c4_459 = arith.constant 4 : index
    %c160_460 = arith.constant 160 : index
    %289 = vector.load %arg6[%c4_459, %c160_460] : memref<36x256xbf16, #tpu.memory_space<vmem>>, vector<4x16xbf16>
    tpu.vector_store %arg6[%c4_459, %c160_460], %288 {strides = array<i32>} : memref<36x256xbf16, #tpu.memory_space<vmem>>, vector<4x16xbf16>,
    %c0_461 = arith.constant 0 : index
    %c10_462 = arith.constant 10 : index
    %c2_463 = arith.constant 2 : index
    %290 = vector.load %arg5[%c0_461, %c10_462, %c2_463] : memref<4x18x18xbf16, #tpu.memory_space<vmem>>, vector<4x1x16xbf16>
    %291 = vector.shape_cast %290 : vector<4x1x16xbf16> to vector<4x16xbf16>
    %c8_464 = arith.constant 8 : index
    %c160_465 = arith.constant 160 : index
    %292 = vector.load %arg6[%c8_464, %c160_465] : memref<36x256xbf16, #tpu.memory_space<vmem>>, vector<4x16xbf16>
    tpu.vector_store %arg6[%c8_464, %c160_465], %291 {strides = array<i32>} : memref<36x256xbf16, #tpu.memory_space<vmem>>, vector<4x16xbf16>,
    %c0_466 = arith.constant 0 : index
    %c11_467 = arith.constant 11 : index
    %c0_468 = arith.constant 0 : index
    %293 = vector.load %arg5[%c0_466, %c11_467, %c0_468] : memref<4x18x18xbf16, #tpu.memory_space<vmem>>, vector<4x1x16xbf16>
    %294 = vector.shape_cast %293 : vector<4x1x16xbf16> to vector<4x16xbf16>
    %c12_469 = arith.constant 12 : index
    %c160_470 = arith.constant 160 : index
    %295 = vector.load %arg6[%c12_469, %c160_470] : memref<36x256xbf16, #tpu.memory_space<vmem>>, vector<4x16xbf16>
    tpu.vector_store %arg6[%c12_469, %c160_470], %294 {strides = array<i32>} : memref<36x256xbf16, #tpu.memory_space<vmem>>, vector<4x16xbf16>,
    %c0_471 = arith.constant 0 : index
    %c11_472 = arith.constant 11 : index
    %c1_473 = arith.constant 1 : index
    %296 = vector.load %arg5[%c0_471, %c11_472, %c1_473] : memref<4x18x18xbf16, #tpu.memory_space<vmem>>, vector<4x1x16xbf16>
    %297 = vector.shape_cast %296 : vector<4x1x16xbf16> to vector<4x16xbf16>
    %c16_474 = arith.constant 16 : index
    %c160_475 = arith.constant 160 : index
    %298 = vector.load %arg6[%c16_474, %c160_475] : memref<36x256xbf16, #tpu.memory_space<vmem>>, vector<4x16xbf16>
    tpu.vector_store %arg6[%c16_474, %c160_475], %297 {strides = array<i32>} : memref<36x256xbf16, #tpu.memory_space<vmem>>, vector<4x16xbf16>,
    %c0_476 = arith.constant 0 : index
    %c11_477 = arith.constant 11 : index
    %c2_478 = arith.constant 2 : index
    %299 = vector.load %arg5[%c0_476, %c11_477, %c2_478] : memref<4x18x18xbf16, #tpu.memory_space<vmem>>, vector<4x1x16xbf16>
    %300 = vector.shape_cast %299 : vector<4x1x16xbf16> to vector<4x16xbf16>
    %c20_479 = arith.constant 20 : index
    %c160_480 = arith.constant 160 : index
    %301 = vector.load %arg6[%c20_479, %c160_480] : memref<36x256xbf16, #tpu.memory_space<vmem>>, vector<4x16xbf16>
    tpu.vector_store %arg6[%c20_479, %c160_480], %300 {strides = array<i32>} : memref<36x256xbf16, #tpu.memory_space<vmem>>, vector<4x16xbf16>,
    %c0_481 = arith.constant 0 : index
    %c12_482 = arith.constant 12 : index
    %c0_483 = arith.constant 0 : index
    %302 = vector.load %arg5[%c0_481, %c12_482, %c0_483] : memref<4x18x18xbf16, #tpu.memory_space<vmem>>, vector<4x1x16xbf16>
    %303 = vector.shape_cast %302 : vector<4x1x16xbf16> to vector<4x16xbf16>
    %c24_484 = arith.constant 24 : index
    %c160_485 = arith.constant 160 : index
    %304 = vector.load %arg6[%c24_484, %c160_485] : memref<36x256xbf16, #tpu.memory_space<vmem>>, vector<4x16xbf16>
    tpu.vector_store %arg6[%c24_484, %c160_485], %303 {strides = array<i32>} : memref<36x256xbf16, #tpu.memory_space<vmem>>, vector<4x16xbf16>,
    %c0_486 = arith.constant 0 : index
    %c12_487 = arith.constant 12 : index
    %c1_488 = arith.constant 1 : index
    %305 = vector.load %arg5[%c0_486, %c12_487, %c1_488] : memref<4x18x18xbf16, #tpu.memory_space<vmem>>, vector<4x1x16xbf16>
    %306 = vector.shape_cast %305 : vector<4x1x16xbf16> to vector<4x16xbf16>
    %c28_489 = arith.constant 28 : index
    %c160_490 = arith.constant 160 : index
    %307 = vector.load %arg6[%c28_489, %c160_490] : memref<36x256xbf16, #tpu.memory_space<vmem>>, vector<4x16xbf16>
    tpu.vector_store %arg6[%c28_489, %c160_490], %306 {strides = array<i32>} : memref<36x256xbf16, #tpu.memory_space<vmem>>, vector<4x16xbf16>,
    %c0_491 = arith.constant 0 : index
    %c12_492 = arith.constant 12 : index
    %c2_493 = arith.constant 2 : index
    %308 = vector.load %arg5[%c0_491, %c12_492, %c2_493] : memref<4x18x18xbf16, #tpu.memory_space<vmem>>, vector<4x1x16xbf16>
    %309 = vector.shape_cast %308 : vector<4x1x16xbf16> to vector<4x16xbf16>
    %c32_494 = arith.constant 32 : index
    %c160_495 = arith.constant 160 : index
    %310 = vector.load %arg6[%c32_494, %c160_495] : memref<36x256xbf16, #tpu.memory_space<vmem>>, vector<4x16xbf16>
    tpu.vector_store %arg6[%c32_494, %c160_495], %309 {strides = array<i32>} : memref<36x256xbf16, #tpu.memory_space<vmem>>, vector<4x16xbf16>,
    %c0_496 = arith.constant 0 : index
    %c11_497 = arith.constant 11 : index
    %c0_498 = arith.constant 0 : index
    %311 = vector.load %arg5[%c0_496, %c11_497, %c0_498] : memref<4x18x18xbf16, #tpu.memory_space<vmem>>, vector<4x1x16xbf16>
    %312 = vector.shape_cast %311 : vector<4x1x16xbf16> to vector<4x16xbf16>
    %c0_499 = arith.constant 0 : index
    %c176 = arith.constant 176 : index
    %313 = vector.load %arg6[%c0_499, %c176] : memref<36x256xbf16, #tpu.memory_space<vmem>>, vector<4x16xbf16>
    tpu.vector_store %arg6[%c0_499, %c176], %312 {strides = array<i32>} : memref<36x256xbf16, #tpu.memory_space<vmem>>, vector<4x16xbf16>,
    %c0_500 = arith.constant 0 : index
    %c11_501 = arith.constant 11 : index
    %c1_502 = arith.constant 1 : index
    %314 = vector.load %arg5[%c0_500, %c11_501, %c1_502] : memref<4x18x18xbf16, #tpu.memory_space<vmem>>, vector<4x1x16xbf16>
    %315 = vector.shape_cast %314 : vector<4x1x16xbf16> to vector<4x16xbf16>
    %c4_503 = arith.constant 4 : index
    %c176_504 = arith.constant 176 : index
    %316 = vector.load %arg6[%c4_503, %c176_504] : memref<36x256xbf16, #tpu.memory_space<vmem>>, vector<4x16xbf16>
    tpu.vector_store %arg6[%c4_503, %c176_504], %315 {strides = array<i32>} : memref<36x256xbf16, #tpu.memory_space<vmem>>, vector<4x16xbf16>,
    %c0_505 = arith.constant 0 : index
    %c11_506 = arith.constant 11 : index
    %c2_507 = arith.constant 2 : index
    %317 = vector.load %arg5[%c0_505, %c11_506, %c2_507] : memref<4x18x18xbf16, #tpu.memory_space<vmem>>, vector<4x1x16xbf16>
    %318 = vector.shape_cast %317 : vector<4x1x16xbf16> to vector<4x16xbf16>
    %c8_508 = arith.constant 8 : index
    %c176_509 = arith.constant 176 : index
    %319 = vector.load %arg6[%c8_508, %c176_509] : memref<36x256xbf16, #tpu.memory_space<vmem>>, vector<4x16xbf16>
    tpu.vector_store %arg6[%c8_508, %c176_509], %318 {strides = array<i32>} : memref<36x256xbf16, #tpu.memory_space<vmem>>, vector<4x16xbf16>,
    %c0_510 = arith.constant 0 : index
    %c12_511 = arith.constant 12 : index
    %c0_512 = arith.constant 0 : index
    %320 = vector.load %arg5[%c0_510, %c12_511, %c0_512] : memref<4x18x18xbf16, #tpu.memory_space<vmem>>, vector<4x1x16xbf16>
    %321 = vector.shape_cast %320 : vector<4x1x16xbf16> to vector<4x16xbf16>
    %c12_513 = arith.constant 12 : index
    %c176_514 = arith.constant 176 : index
    %322 = vector.load %arg6[%c12_513, %c176_514] : memref<36x256xbf16, #tpu.memory_space<vmem>>, vector<4x16xbf16>
    tpu.vector_store %arg6[%c12_513, %c176_514], %321 {strides = array<i32>} : memref<36x256xbf16, #tpu.memory_space<vmem>>, vector<4x16xbf16>,
    %c0_515 = arith.constant 0 : index
    %c12_516 = arith.constant 12 : index
    %c1_517 = arith.constant 1 : index
    %323 = vector.load %arg5[%c0_515, %c12_516, %c1_517] : memref<4x18x18xbf16, #tpu.memory_space<vmem>>, vector<4x1x16xbf16>
    %324 = vector.shape_cast %323 : vector<4x1x16xbf16> to vector<4x16xbf16>
    %c16_518 = arith.constant 16 : index
    %c176_519 = arith.constant 176 : index
    %325 = vector.load %arg6[%c16_518, %c176_519] : memref<36x256xbf16, #tpu.memory_space<vmem>>, vector<4x16xbf16>
    tpu.vector_store %arg6[%c16_518, %c176_519], %324 {strides = array<i32>} : memref<36x256xbf16, #tpu.memory_space<vmem>>, vector<4x16xbf16>,
    %c0_520 = arith.constant 0 : index
    %c12_521 = arith.constant 12 : index
    %c2_522 = arith.constant 2 : index
    %326 = vector.load %arg5[%c0_520, %c12_521, %c2_522] : memref<4x18x18xbf16, #tpu.memory_space<vmem>>, vector<4x1x16xbf16>
    %327 = vector.shape_cast %326 : vector<4x1x16xbf16> to vector<4x16xbf16>
    %c20_523 = arith.constant 20 : index
    %c176_524 = arith.constant 176 : index
    %328 = vector.load %arg6[%c20_523, %c176_524] : memref<36x256xbf16, #tpu.memory_space<vmem>>, vector<4x16xbf16>
    tpu.vector_store %arg6[%c20_523, %c176_524], %327 {strides = array<i32>} : memref<36x256xbf16, #tpu.memory_space<vmem>>, vector<4x16xbf16>,
    %c0_525 = arith.constant 0 : index
    %c13 = arith.constant 13 : index
    %c0_526 = arith.constant 0 : index
    %329 = vector.load %arg5[%c0_525, %c13, %c0_526] : memref<4x18x18xbf16, #tpu.memory_space<vmem>>, vector<4x1x16xbf16>
    %330 = vector.shape_cast %329 : vector<4x1x16xbf16> to vector<4x16xbf16>
    %c24_527 = arith.constant 24 : index
    %c176_528 = arith.constant 176 : index
    %331 = vector.load %arg6[%c24_527, %c176_528] : memref<36x256xbf16, #tpu.memory_space<vmem>>, vector<4x16xbf16>
    tpu.vector_store %arg6[%c24_527, %c176_528], %330 {strides = array<i32>} : memref<36x256xbf16, #tpu.memory_space<vmem>>, vector<4x16xbf16>,
    %c0_529 = arith.constant 0 : index
    %c13_530 = arith.constant 13 : index
    %c1_531 = arith.constant 1 : index
    %332 = vector.load %arg5[%c0_529, %c13_530, %c1_531] : memref<4x18x18xbf16, #tpu.memory_space<vmem>>, vector<4x1x16xbf16>
    %333 = vector.shape_cast %332 : vector<4x1x16xbf16> to vector<4x16xbf16>
    %c28_532 = arith.constant 28 : index
    %c176_533 = arith.constant 176 : index
    %334 = vector.load %arg6[%c28_532, %c176_533] : memref<36x256xbf16, #tpu.memory_space<vmem>>, vector<4x16xbf16>
    tpu.vector_store %arg6[%c28_532, %c176_533], %333 {strides = array<i32>} : memref<36x256xbf16, #tpu.memory_space<vmem>>, vector<4x16xbf16>,
    %c0_534 = arith.constant 0 : index
    %c13_535 = arith.constant 13 : index
    %c2_536 = arith.constant 2 : index
    %335 = vector.load %arg5[%c0_534, %c13_535, %c2_536] : memref<4x18x18xbf16, #tpu.memory_space<vmem>>, vector<4x1x16xbf16>
    %336 = vector.shape_cast %335 : vector<4x1x16xbf16> to vector<4x16xbf16>
    %c32_537 = arith.constant 32 : index
    %c176_538 = arith.constant 176 : index
    %337 = vector.load %arg6[%c32_537, %c176_538] : memref<36x256xbf16, #tpu.memory_space<vmem>>, vector<4x16xbf16>
    tpu.vector_store %arg6[%c32_537, %c176_538], %336 {strides = array<i32>} : memref<36x256xbf16, #tpu.memory_space<vmem>>, vector<4x16xbf16>,
    %c0_539 = arith.constant 0 : index
    %c12_540 = arith.constant 12 : index
    %c0_541 = arith.constant 0 : index
    %338 = vector.load %arg5[%c0_539, %c12_540, %c0_541] : memref<4x18x18xbf16, #tpu.memory_space<vmem>>, vector<4x1x16xbf16>
    %339 = vector.shape_cast %338 : vector<4x1x16xbf16> to vector<4x16xbf16>
    %c0_542 = arith.constant 0 : index
    %c192 = arith.constant 192 : index
    %340 = vector.load %arg6[%c0_542, %c192] : memref<36x256xbf16, #tpu.memory_space<vmem>>, vector<4x16xbf16>
    tpu.vector_store %arg6[%c0_542, %c192], %339 {strides = array<i32>} : memref<36x256xbf16, #tpu.memory_space<vmem>>, vector<4x16xbf16>,
    %c0_543 = arith.constant 0 : index
    %c12_544 = arith.constant 12 : index
    %c1_545 = arith.constant 1 : index
    %341 = vector.load %arg5[%c0_543, %c12_544, %c1_545] : memref<4x18x18xbf16, #tpu.memory_space<vmem>>, vector<4x1x16xbf16>
    %342 = vector.shape_cast %341 : vector<4x1x16xbf16> to vector<4x16xbf16>
    %c4_546 = arith.constant 4 : index
    %c192_547 = arith.constant 192 : index
    %343 = vector.load %arg6[%c4_546, %c192_547] : memref<36x256xbf16, #tpu.memory_space<vmem>>, vector<4x16xbf16>
    tpu.vector_store %arg6[%c4_546, %c192_547], %342 {strides = array<i32>} : memref<36x256xbf16, #tpu.memory_space<vmem>>, vector<4x16xbf16>,
    %c0_548 = arith.constant 0 : index
    %c12_549 = arith.constant 12 : index
    %c2_550 = arith.constant 2 : index
    %344 = vector.load %arg5[%c0_548, %c12_549, %c2_550] : memref<4x18x18xbf16, #tpu.memory_space<vmem>>, vector<4x1x16xbf16>
    %345 = vector.shape_cast %344 : vector<4x1x16xbf16> to vector<4x16xbf16>
    %c8_551 = arith.constant 8 : index
    %c192_552 = arith.constant 192 : index
    %346 = vector.load %arg6[%c8_551, %c192_552] : memref<36x256xbf16, #tpu.memory_space<vmem>>, vector<4x16xbf16>
    tpu.vector_store %arg6[%c8_551, %c192_552], %345 {strides = array<i32>} : memref<36x256xbf16, #tpu.memory_space<vmem>>, vector<4x16xbf16>,
    %c0_553 = arith.constant 0 : index
    %c13_554 = arith.constant 13 : index
    %c0_555 = arith.constant 0 : index
    %347 = vector.load %arg5[%c0_553, %c13_554, %c0_555] : memref<4x18x18xbf16, #tpu.memory_space<vmem>>, vector<4x1x16xbf16>
    %348 = vector.shape_cast %347 : vector<4x1x16xbf16> to vector<4x16xbf16>
    %c12_556 = arith.constant 12 : index
    %c192_557 = arith.constant 192 : index
    %349 = vector.load %arg6[%c12_556, %c192_557] : memref<36x256xbf16, #tpu.memory_space<vmem>>, vector<4x16xbf16>
    tpu.vector_store %arg6[%c12_556, %c192_557], %348 {strides = array<i32>} : memref<36x256xbf16, #tpu.memory_space<vmem>>, vector<4x16xbf16>,
    %c0_558 = arith.constant 0 : index
    %c13_559 = arith.constant 13 : index
    %c1_560 = arith.constant 1 : index
    %350 = vector.load %arg5[%c0_558, %c13_559, %c1_560] : memref<4x18x18xbf16, #tpu.memory_space<vmem>>, vector<4x1x16xbf16>
    %351 = vector.shape_cast %350 : vector<4x1x16xbf16> to vector<4x16xbf16>
    %c16_561 = arith.constant 16 : index
    %c192_562 = arith.constant 192 : index
    %352 = vector.load %arg6[%c16_561, %c192_562] : memref<36x256xbf16, #tpu.memory_space<vmem>>, vector<4x16xbf16>
    tpu.vector_store %arg6[%c16_561, %c192_562], %351 {strides = array<i32>} : memref<36x256xbf16, #tpu.memory_space<vmem>>, vector<4x16xbf16>,
    %c0_563 = arith.constant 0 : index
    %c13_564 = arith.constant 13 : index
    %c2_565 = arith.constant 2 : index
    %353 = vector.load %arg5[%c0_563, %c13_564, %c2_565] : memref<4x18x18xbf16, #tpu.memory_space<vmem>>, vector<4x1x16xbf16>
    %354 = vector.shape_cast %353 : vector<4x1x16xbf16> to vector<4x16xbf16>
    %c20_566 = arith.constant 20 : index
    %c192_567 = arith.constant 192 : index
    %355 = vector.load %arg6[%c20_566, %c192_567] : memref<36x256xbf16, #tpu.memory_space<vmem>>, vector<4x16xbf16>
    tpu.vector_store %arg6[%c20_566, %c192_567], %354 {strides = array<i32>} : memref<36x256xbf16, #tpu.memory_space<vmem>>, vector<4x16xbf16>,
    %c0_568 = arith.constant 0 : index
    %c14 = arith.constant 14 : index
    %c0_569 = arith.constant 0 : index
    %356 = vector.load %arg5[%c0_568, %c14, %c0_569] : memref<4x18x18xbf16, #tpu.memory_space<vmem>>, vector<4x1x16xbf16>
    %357 = vector.shape_cast %356 : vector<4x1x16xbf16> to vector<4x16xbf16>
    %c24_570 = arith.constant 24 : index
    %c192_571 = arith.constant 192 : index
    %358 = vector.load %arg6[%c24_570, %c192_571] : memref<36x256xbf16, #tpu.memory_space<vmem>>, vector<4x16xbf16>
    tpu.vector_store %arg6[%c24_570, %c192_571], %357 {strides = array<i32>} : memref<36x256xbf16, #tpu.memory_space<vmem>>, vector<4x16xbf16>,
    %c0_572 = arith.constant 0 : index
    %c14_573 = arith.constant 14 : index
    %c1_574 = arith.constant 1 : index
    %359 = vector.load %arg5[%c0_572, %c14_573, %c1_574] : memref<4x18x18xbf16, #tpu.memory_space<vmem>>, vector<4x1x16xbf16>
    %360 = vector.shape_cast %359 : vector<4x1x16xbf16> to vector<4x16xbf16>
    %c28_575 = arith.constant 28 : index
    %c192_576 = arith.constant 192 : index
    %361 = vector.load %arg6[%c28_575, %c192_576] : memref<36x256xbf16, #tpu.memory_space<vmem>>, vector<4x16xbf16>
    tpu.vector_store %arg6[%c28_575, %c192_576], %360 {strides = array<i32>} : memref<36x256xbf16, #tpu.memory_space<vmem>>, vector<4x16xbf16>,
    %c0_577 = arith.constant 0 : index
    %c14_578 = arith.constant 14 : index
    %c2_579 = arith.constant 2 : index
    %362 = vector.load %arg5[%c0_577, %c14_578, %c2_579] : memref<4x18x18xbf16, #tpu.memory_space<vmem>>, vector<4x1x16xbf16>
    %363 = vector.shape_cast %362 : vector<4x1x16xbf16> to vector<4x16xbf16>
    %c32_580 = arith.constant 32 : index
    %c192_581 = arith.constant 192 : index
    %364 = vector.load %arg6[%c32_580, %c192_581] : memref<36x256xbf16, #tpu.memory_space<vmem>>, vector<4x16xbf16>
    tpu.vector_store %arg6[%c32_580, %c192_581], %363 {strides = array<i32>} : memref<36x256xbf16, #tpu.memory_space<vmem>>, vector<4x16xbf16>,
    %c0_582 = arith.constant 0 : index
    %c13_583 = arith.constant 13 : index
    %c0_584 = arith.constant 0 : index
    %365 = vector.load %arg5[%c0_582, %c13_583, %c0_584] : memref<4x18x18xbf16, #tpu.memory_space<vmem>>, vector<4x1x16xbf16>
    %366 = vector.shape_cast %365 : vector<4x1x16xbf16> to vector<4x16xbf16>
    %c0_585 = arith.constant 0 : index
    %c208 = arith.constant 208 : index
    %367 = vector.load %arg6[%c0_585, %c208] : memref<36x256xbf16, #tpu.memory_space<vmem>>, vector<4x16xbf16>
    tpu.vector_store %arg6[%c0_585, %c208], %366 {strides = array<i32>} : memref<36x256xbf16, #tpu.memory_space<vmem>>, vector<4x16xbf16>,
    %c0_586 = arith.constant 0 : index
    %c13_587 = arith.constant 13 : index
    %c1_588 = arith.constant 1 : index
    %368 = vector.load %arg5[%c0_586, %c13_587, %c1_588] : memref<4x18x18xbf16, #tpu.memory_space<vmem>>, vector<4x1x16xbf16>
    %369 = vector.shape_cast %368 : vector<4x1x16xbf16> to vector<4x16xbf16>
    %c4_589 = arith.constant 4 : index
    %c208_590 = arith.constant 208 : index
    %370 = vector.load %arg6[%c4_589, %c208_590] : memref<36x256xbf16, #tpu.memory_space<vmem>>, vector<4x16xbf16>
    tpu.vector_store %arg6[%c4_589, %c208_590], %369 {strides = array<i32>} : memref<36x256xbf16, #tpu.memory_space<vmem>>, vector<4x16xbf16>,
    %c0_591 = arith.constant 0 : index
    %c13_592 = arith.constant 13 : index
    %c2_593 = arith.constant 2 : index
    %371 = vector.load %arg5[%c0_591, %c13_592, %c2_593] : memref<4x18x18xbf16, #tpu.memory_space<vmem>>, vector<4x1x16xbf16>
    %372 = vector.shape_cast %371 : vector<4x1x16xbf16> to vector<4x16xbf16>
    %c8_594 = arith.constant 8 : index
    %c208_595 = arith.constant 208 : index
    %373 = vector.load %arg6[%c8_594, %c208_595] : memref<36x256xbf16, #tpu.memory_space<vmem>>, vector<4x16xbf16>
    tpu.vector_store %arg6[%c8_594, %c208_595], %372 {strides = array<i32>} : memref<36x256xbf16, #tpu.memory_space<vmem>>, vector<4x16xbf16>,
    %c0_596 = arith.constant 0 : index
    %c14_597 = arith.constant 14 : index
    %c0_598 = arith.constant 0 : index
    %374 = vector.load %arg5[%c0_596, %c14_597, %c0_598] : memref<4x18x18xbf16, #tpu.memory_space<vmem>>, vector<4x1x16xbf16>
    %375 = vector.shape_cast %374 : vector<4x1x16xbf16> to vector<4x16xbf16>
    %c12_599 = arith.constant 12 : index
    %c208_600 = arith.constant 208 : index
    %376 = vector.load %arg6[%c12_599, %c208_600] : memref<36x256xbf16, #tpu.memory_space<vmem>>, vector<4x16xbf16>
    tpu.vector_store %arg6[%c12_599, %c208_600], %375 {strides = array<i32>} : memref<36x256xbf16, #tpu.memory_space<vmem>>, vector<4x16xbf16>,
    %c0_601 = arith.constant 0 : index
    %c14_602 = arith.constant 14 : index
    %c1_603 = arith.constant 1 : index
    %377 = vector.load %arg5[%c0_601, %c14_602, %c1_603] : memref<4x18x18xbf16, #tpu.memory_space<vmem>>, vector<4x1x16xbf16>
    %378 = vector.shape_cast %377 : vector<4x1x16xbf16> to vector<4x16xbf16>
    %c16_604 = arith.constant 16 : index
    %c208_605 = arith.constant 208 : index
    %379 = vector.load %arg6[%c16_604, %c208_605] : memref<36x256xbf16, #tpu.memory_space<vmem>>, vector<4x16xbf16>
    tpu.vector_store %arg6[%c16_604, %c208_605], %378 {strides = array<i32>} : memref<36x256xbf16, #tpu.memory_space<vmem>>, vector<4x16xbf16>,
    %c0_606 = arith.constant 0 : index
    %c14_607 = arith.constant 14 : index
    %c2_608 = arith.constant 2 : index
    %380 = vector.load %arg5[%c0_606, %c14_607, %c2_608] : memref<4x18x18xbf16, #tpu.memory_space<vmem>>, vector<4x1x16xbf16>
    %381 = vector.shape_cast %380 : vector<4x1x16xbf16> to vector<4x16xbf16>
    %c20_609 = arith.constant 20 : index
    %c208_610 = arith.constant 208 : index
    %382 = vector.load %arg6[%c20_609, %c208_610] : memref<36x256xbf16, #tpu.memory_space<vmem>>, vector<4x16xbf16>
    tpu.vector_store %arg6[%c20_609, %c208_610], %381 {strides = array<i32>} : memref<36x256xbf16, #tpu.memory_space<vmem>>, vector<4x16xbf16>,
    %c0_611 = arith.constant 0 : index
    %c15_612 = arith.constant 15 : index
    %c0_613 = arith.constant 0 : index
    %383 = vector.load %arg5[%c0_611, %c15_612, %c0_613] : memref<4x18x18xbf16, #tpu.memory_space<vmem>>, vector<4x1x16xbf16>
    %384 = vector.shape_cast %383 : vector<4x1x16xbf16> to vector<4x16xbf16>
    %c24_614 = arith.constant 24 : index
    %c208_615 = arith.constant 208 : index
    %385 = vector.load %arg6[%c24_614, %c208_615] : memref<36x256xbf16, #tpu.memory_space<vmem>>, vector<4x16xbf16>
    tpu.vector_store %arg6[%c24_614, %c208_615], %384 {strides = array<i32>} : memref<36x256xbf16, #tpu.memory_space<vmem>>, vector<4x16xbf16>,
    %c0_616 = arith.constant 0 : index
    %c15_617 = arith.constant 15 : index
    %c1_618 = arith.constant 1 : index
    %386 = vector.load %arg5[%c0_616, %c15_617, %c1_618] : memref<4x18x18xbf16, #tpu.memory_space<vmem>>, vector<4x1x16xbf16>
    %387 = vector.shape_cast %386 : vector<4x1x16xbf16> to vector<4x16xbf16>
    %c28_619 = arith.constant 28 : index
    %c208_620 = arith.constant 208 : index
    %388 = vector.load %arg6[%c28_619, %c208_620] : memref<36x256xbf16, #tpu.memory_space<vmem>>, vector<4x16xbf16>
    tpu.vector_store %arg6[%c28_619, %c208_620], %387 {strides = array<i32>} : memref<36x256xbf16, #tpu.memory_space<vmem>>, vector<4x16xbf16>,
    %c0_621 = arith.constant 0 : index
    %c15_622 = arith.constant 15 : index
    %c2_623 = arith.constant 2 : index
    %389 = vector.load %arg5[%c0_621, %c15_622, %c2_623] : memref<4x18x18xbf16, #tpu.memory_space<vmem>>, vector<4x1x16xbf16>
    %390 = vector.shape_cast %389 : vector<4x1x16xbf16> to vector<4x16xbf16>
    %c32_624 = arith.constant 32 : index
    %c208_625 = arith.constant 208 : index
    %391 = vector.load %arg6[%c32_624, %c208_625] : memref<36x256xbf16, #tpu.memory_space<vmem>>, vector<4x16xbf16>
    tpu.vector_store %arg6[%c32_624, %c208_625], %390 {strides = array<i32>} : memref<36x256xbf16, #tpu.memory_space<vmem>>, vector<4x16xbf16>,
    %c0_626 = arith.constant 0 : index
    %c14_627 = arith.constant 14 : index
    %c0_628 = arith.constant 0 : index
    %392 = vector.load %arg5[%c0_626, %c14_627, %c0_628] : memref<4x18x18xbf16, #tpu.memory_space<vmem>>, vector<4x1x16xbf16>
    %393 = vector.shape_cast %392 : vector<4x1x16xbf16> to vector<4x16xbf16>
    %c0_629 = arith.constant 0 : index
    %c224 = arith.constant 224 : index
    %394 = vector.load %arg6[%c0_629, %c224] : memref<36x256xbf16, #tpu.memory_space<vmem>>, vector<4x16xbf16>
    tpu.vector_store %arg6[%c0_629, %c224], %393 {strides = array<i32>} : memref<36x256xbf16, #tpu.memory_space<vmem>>, vector<4x16xbf16>,
    %c0_630 = arith.constant 0 : index
    %c14_631 = arith.constant 14 : index
    %c1_632 = arith.constant 1 : index
    %395 = vector.load %arg5[%c0_630, %c14_631, %c1_632] : memref<4x18x18xbf16, #tpu.memory_space<vmem>>, vector<4x1x16xbf16>
    %396 = vector.shape_cast %395 : vector<4x1x16xbf16> to vector<4x16xbf16>
    %c4_633 = arith.constant 4 : index
    %c224_634 = arith.constant 224 : index
    %397 = vector.load %arg6[%c4_633, %c224_634] : memref<36x256xbf16, #tpu.memory_space<vmem>>, vector<4x16xbf16>
    tpu.vector_store %arg6[%c4_633, %c224_634], %396 {strides = array<i32>} : memref<36x256xbf16, #tpu.memory_space<vmem>>, vector<4x16xbf16>,
    %c0_635 = arith.constant 0 : index
    %c14_636 = arith.constant 14 : index
    %c2_637 = arith.constant 2 : index
    %398 = vector.load %arg5[%c0_635, %c14_636, %c2_637] : memref<4x18x18xbf16, #tpu.memory_space<vmem>>, vector<4x1x16xbf16>
    %399 = vector.shape_cast %398 : vector<4x1x16xbf16> to vector<4x16xbf16>
    %c8_638 = arith.constant 8 : index
    %c224_639 = arith.constant 224 : index
    %400 = vector.load %arg6[%c8_638, %c224_639] : memref<36x256xbf16, #tpu.memory_space<vmem>>, vector<4x16xbf16>
    tpu.vector_store %arg6[%c8_638, %c224_639], %399 {strides = array<i32>} : memref<36x256xbf16, #tpu.memory_space<vmem>>, vector<4x16xbf16>,
    %c0_640 = arith.constant 0 : index
    %c15_641 = arith.constant 15 : index
    %c0_642 = arith.constant 0 : index
    %401 = vector.load %arg5[%c0_640, %c15_641, %c0_642] : memref<4x18x18xbf16, #tpu.memory_space<vmem>>, vector<4x1x16xbf16>
    %402 = vector.shape_cast %401 : vector<4x1x16xbf16> to vector<4x16xbf16>
    %c12_643 = arith.constant 12 : index
    %c224_644 = arith.constant 224 : index
    %403 = vector.load %arg6[%c12_643, %c224_644] : memref<36x256xbf16, #tpu.memory_space<vmem>>, vector<4x16xbf16>
    tpu.vector_store %arg6[%c12_643, %c224_644], %402 {strides = array<i32>} : memref<36x256xbf16, #tpu.memory_space<vmem>>, vector<4x16xbf16>,
    %c0_645 = arith.constant 0 : index
    %c15_646 = arith.constant 15 : index
    %c1_647 = arith.constant 1 : index
    %404 = vector.load %arg5[%c0_645, %c15_646, %c1_647] : memref<4x18x18xbf16, #tpu.memory_space<vmem>>, vector<4x1x16xbf16>
    %405 = vector.shape_cast %404 : vector<4x1x16xbf16> to vector<4x16xbf16>
    %c16_648 = arith.constant 16 : index
    %c224_649 = arith.constant 224 : index
    %406 = vector.load %arg6[%c16_648, %c224_649] : memref<36x256xbf16, #tpu.memory_space<vmem>>, vector<4x16xbf16>
    tpu.vector_store %arg6[%c16_648, %c224_649], %405 {strides = array<i32>} : memref<36x256xbf16, #tpu.memory_space<vmem>>, vector<4x16xbf16>,
    %c0_650 = arith.constant 0 : index
    %c15_651 = arith.constant 15 : index
    %c2_652 = arith.constant 2 : index
    %407 = vector.load %arg5[%c0_650, %c15_651, %c2_652] : memref<4x18x18xbf16, #tpu.memory_space<vmem>>, vector<4x1x16xbf16>
    %408 = vector.shape_cast %407 : vector<4x1x16xbf16> to vector<4x16xbf16>
    %c20_653 = arith.constant 20 : index
    %c224_654 = arith.constant 224 : index
    %409 = vector.load %arg6[%c20_653, %c224_654] : memref<36x256xbf16, #tpu.memory_space<vmem>>, vector<4x16xbf16>
    tpu.vector_store %arg6[%c20_653, %c224_654], %408 {strides = array<i32>} : memref<36x256xbf16, #tpu.memory_space<vmem>>, vector<4x16xbf16>,
    %c0_655 = arith.constant 0 : index
    %c16_656 = arith.constant 16 : index
    %c0_657 = arith.constant 0 : index
    %410 = vector.load %arg5[%c0_655, %c16_656, %c0_657] : memref<4x18x18xbf16, #tpu.memory_space<vmem>>, vector<4x1x16xbf16>
    %411 = vector.shape_cast %410 : vector<4x1x16xbf16> to vector<4x16xbf16>
    %c24_658 = arith.constant 24 : index
    %c224_659 = arith.constant 224 : index
    %412 = vector.load %arg6[%c24_658, %c224_659] : memref<36x256xbf16, #tpu.memory_space<vmem>>, vector<4x16xbf16>
    tpu.vector_store %arg6[%c24_658, %c224_659], %411 {strides = array<i32>} : memref<36x256xbf16, #tpu.memory_space<vmem>>, vector<4x16xbf16>,
    %c0_660 = arith.constant 0 : index
    %c16_661 = arith.constant 16 : index
    %c1_662 = arith.constant 1 : index
    %413 = vector.load %arg5[%c0_660, %c16_661, %c1_662] : memref<4x18x18xbf16, #tpu.memory_space<vmem>>, vector<4x1x16xbf16>
    %414 = vector.shape_cast %413 : vector<4x1x16xbf16> to vector<4x16xbf16>
    %c28_663 = arith.constant 28 : index
    %c224_664 = arith.constant 224 : index
    %415 = vector.load %arg6[%c28_663, %c224_664] : memref<36x256xbf16, #tpu.memory_space<vmem>>, vector<4x16xbf16>
    tpu.vector_store %arg6[%c28_663, %c224_664], %414 {strides = array<i32>} : memref<36x256xbf16, #tpu.memory_space<vmem>>, vector<4x16xbf16>,
    %c0_665 = arith.constant 0 : index
    %c16_666 = arith.constant 16 : index
    %c2_667 = arith.constant 2 : index
    %416 = vector.load %arg5[%c0_665, %c16_666, %c2_667] : memref<4x18x18xbf16, #tpu.memory_space<vmem>>, vector<4x1x16xbf16>
    %417 = vector.shape_cast %416 : vector<4x1x16xbf16> to vector<4x16xbf16>
    %c32_668 = arith.constant 32 : index
    %c224_669 = arith.constant 224 : index
    %418 = vector.load %arg6[%c32_668, %c224_669] : memref<36x256xbf16, #tpu.memory_space<vmem>>, vector<4x16xbf16>
    tpu.vector_store %arg6[%c32_668, %c224_669], %417 {strides = array<i32>} : memref<36x256xbf16, #tpu.memory_space<vmem>>, vector<4x16xbf16>,
    %c0_670 = arith.constant 0 : index
    %c15_671 = arith.constant 15 : index
    %c0_672 = arith.constant 0 : index
    %419 = vector.load %arg5[%c0_670, %c15_671, %c0_672] : memref<4x18x18xbf16, #tpu.memory_space<vmem>>, vector<4x1x16xbf16>
    %420 = vector.shape_cast %419 : vector<4x1x16xbf16> to vector<4x16xbf16>
    %c0_673 = arith.constant 0 : index
    %c240 = arith.constant 240 : index
    %421 = vector.load %arg6[%c0_673, %c240] : memref<36x256xbf16, #tpu.memory_space<vmem>>, vector<4x16xbf16>
    tpu.vector_store %arg6[%c0_673, %c240], %420 {strides = array<i32>} : memref<36x256xbf16, #tpu.memory_space<vmem>>, vector<4x16xbf16>,
    %c0_674 = arith.constant 0 : index
    %c15_675 = arith.constant 15 : index
    %c1_676 = arith.constant 1 : index
    %422 = vector.load %arg5[%c0_674, %c15_675, %c1_676] : memref<4x18x18xbf16, #tpu.memory_space<vmem>>, vector<4x1x16xbf16>
    %423 = vector.shape_cast %422 : vector<4x1x16xbf16> to vector<4x16xbf16>
    %c4_677 = arith.constant 4 : index
    %c240_678 = arith.constant 240 : index
    %424 = vector.load %arg6[%c4_677, %c240_678] : memref<36x256xbf16, #tpu.memory_space<vmem>>, vector<4x16xbf16>
    tpu.vector_store %arg6[%c4_677, %c240_678], %423 {strides = array<i32>} : memref<36x256xbf16, #tpu.memory_space<vmem>>, vector<4x16xbf16>,
    %c0_679 = arith.constant 0 : index
    %c15_680 = arith.constant 15 : index
    %c2_681 = arith.constant 2 : index
    %425 = vector.load %arg5[%c0_679, %c15_680, %c2_681] : memref<4x18x18xbf16, #tpu.memory_space<vmem>>, vector<4x1x16xbf16>
    %426 = vector.shape_cast %425 : vector<4x1x16xbf16> to vector<4x16xbf16>
    %c8_682 = arith.constant 8 : index
    %c240_683 = arith.constant 240 : index
    %427 = vector.load %arg6[%c8_682, %c240_683] : memref<36x256xbf16, #tpu.memory_space<vmem>>, vector<4x16xbf16>
    tpu.vector_store %arg6[%c8_682, %c240_683], %426 {strides = array<i32>} : memref<36x256xbf16, #tpu.memory_space<vmem>>, vector<4x16xbf16>,
    %c0_684 = arith.constant 0 : index
    %c16_685 = arith.constant 16 : index
    %c0_686 = arith.constant 0 : index
    %428 = vector.load %arg5[%c0_684, %c16_685, %c0_686] : memref<4x18x18xbf16, #tpu.memory_space<vmem>>, vector<4x1x16xbf16>
    %429 = vector.shape_cast %428 : vector<4x1x16xbf16> to vector<4x16xbf16>
    %c12_687 = arith.constant 12 : index
    %c240_688 = arith.constant 240 : index
    %430 = vector.load %arg6[%c12_687, %c240_688] : memref<36x256xbf16, #tpu.memory_space<vmem>>, vector<4x16xbf16>
    tpu.vector_store %arg6[%c12_687, %c240_688], %429 {strides = array<i32>} : memref<36x256xbf16, #tpu.memory_space<vmem>>, vector<4x16xbf16>,
    %c0_689 = arith.constant 0 : index
    %c16_690 = arith.constant 16 : index
    %c1_691 = arith.constant 1 : index
    %431 = vector.load %arg5[%c0_689, %c16_690, %c1_691] : memref<4x18x18xbf16, #tpu.memory_space<vmem>>, vector<4x1x16xbf16>
    %432 = vector.shape_cast %431 : vector<4x1x16xbf16> to vector<4x16xbf16>
    %c16_692 = arith.constant 16 : index
    %c240_693 = arith.constant 240 : index
    %433 = vector.load %arg6[%c16_692, %c240_693] : memref<36x256xbf16, #tpu.memory_space<vmem>>, vector<4x16xbf16>
    tpu.vector_store %arg6[%c16_692, %c240_693], %432 {strides = array<i32>} : memref<36x256xbf16, #tpu.memory_space<vmem>>, vector<4x16xbf16>,
    %c0_694 = arith.constant 0 : index
    %c16_695 = arith.constant 16 : index
    %c2_696 = arith.constant 2 : index
    %434 = vector.load %arg5[%c0_694, %c16_695, %c2_696] : memref<4x18x18xbf16, #tpu.memory_space<vmem>>, vector<4x1x16xbf16>
    %435 = vector.shape_cast %434 : vector<4x1x16xbf16> to vector<4x16xbf16>
    %c20_697 = arith.constant 20 : index
    %c240_698 = arith.constant 240 : index
    %436 = vector.load %arg6[%c20_697, %c240_698] : memref<36x256xbf16, #tpu.memory_space<vmem>>, vector<4x16xbf16>
    tpu.vector_store %arg6[%c20_697, %c240_698], %435 {strides = array<i32>} : memref<36x256xbf16, #tpu.memory_space<vmem>>, vector<4x16xbf16>,
    %c0_699 = arith.constant 0 : index
    %c17_700 = arith.constant 17 : index
    %c0_701 = arith.constant 0 : index
    %437 = vector.load %arg5[%c0_699, %c17_700, %c0_701] : memref<4x18x18xbf16, #tpu.memory_space<vmem>>, vector<4x1x16xbf16>
    %438 = vector.shape_cast %437 : vector<4x1x16xbf16> to vector<4x16xbf16>
    %c24_702 = arith.constant 24 : index
    %c240_703 = arith.constant 240 : index
    %439 = vector.load %arg6[%c24_702, %c240_703] : memref<36x256xbf16, #tpu.memory_space<vmem>>, vector<4x16xbf16>
    tpu.vector_store %arg6[%c24_702, %c240_703], %438 {strides = array<i32>} : memref<36x256xbf16, #tpu.memory_space<vmem>>, vector<4x16xbf16>,
    %c0_704 = arith.constant 0 : index
    %c17_705 = arith.constant 17 : index
    %c1_706 = arith.constant 1 : index
    %440 = vector.load %arg5[%c0_704, %c17_705, %c1_706] : memref<4x18x18xbf16, #tpu.memory_space<vmem>>, vector<4x1x16xbf16>
    %441 = vector.shape_cast %440 : vector<4x1x16xbf16> to vector<4x16xbf16>
    %c28_707 = arith.constant 28 : index
    %c240_708 = arith.constant 240 : index
    %442 = vector.load %arg6[%c28_707, %c240_708] : memref<36x256xbf16, #tpu.memory_space<vmem>>, vector<4x16xbf16>
    tpu.vector_store %arg6[%c28_707, %c240_708], %441 {strides = array<i32>} : memref<36x256xbf16, #tpu.memory_space<vmem>>, vector<4x16xbf16>,
    %c0_709 = arith.constant 0 : index
    %c17_710 = arith.constant 17 : index
    %c2_711 = arith.constant 2 : index
    %443 = vector.load %arg5[%c0_709, %c17_710, %c2_711] : memref<4x18x18xbf16, #tpu.memory_space<vmem>>, vector<4x1x16xbf16>
    %444 = vector.shape_cast %443 : vector<4x1x16xbf16> to vector<4x16xbf16>
    %c32_712 = arith.constant 32 : index
    %c240_713 = arith.constant 240 : index
    %445 = vector.load %arg6[%c32_712, %c240_713] : memref<36x256xbf16, #tpu.memory_space<vmem>>, vector<4x16xbf16>
    tpu.vector_store %arg6[%c32_712, %c240_713], %444 {strides = array<i32>} : memref<36x256xbf16, #tpu.memory_space<vmem>>, vector<4x16xbf16>,
    %c0_714 = arith.constant 0 : index
    %c0_715 = arith.constant 0 : index
    %446 = vector.load %arg6[%c0_714, %c0_715] : memref<36x256xbf16, #tpu.memory_space<vmem>>, vector<36x256xbf16>
    %cst = arith.constant dense<0.000000e+00> : vector<8x256xf32>
    %447 = tpu.matmul %0, %446, %cst {dimension_numbers = #tpu.dot_dimension_numbers<[1], [0], [0], [1], [0, 0, 1, 1], [], []>} : vector<8x36xbf16>, vector<36x256xbf16>, vector<8x256xf32> -> vector<8x256xf32>
    %448 = vector.broadcast %1 : vector<8x1xf32> to vector<8x256xf32>
    %449 = arith.addf %447, %448 : vector<8x256xf32>
    %c0_716 = arith.constant 0 : index
    %c0_717 = arith.constant 0 : index
    %c0_718 = arith.constant 0 : index
    %450 = vector.load %arg4[%c0_716, %c0_717, %c0_718] : memref<1x8x256xf32, #tpu.memory_space<vmem>>, vector<1x8x256xf32>
    %451 = vector.shape_cast %450 : vector<1x8x256xf32> to vector<8x256xf32>
    %452 = vector.shape_cast %449 : vector<8x256xf32> to vector<1x8x256xf32>
    tpu.vector_store %arg4[%c0_716, %c0_717, %c0_718], %452 {strides = array<i32>} : memref<1x8x256xf32, #tpu.memory_space<vmem>>, vector<1x8x256xf32>,
    return
  }
  func.func @transform_0(%arg0: i32) -> (i32, i32, i32, i32) {
    %c0_i32 = arith.constant 0 : i32
    %c0_i32_0 = arith.constant 0 : i32
    %c0_i32_1 = arith.constant 0 : i32
    %c0_i32_2 = arith.constant 0 : i32
    return %arg0, %c0_i32, %c0_i32_0, %c0_i32_1 : i32, i32, i32, i32
  }
  func.func @transform_1(%arg0: i32) -> (i32, i32) {
    %c0_i32 = arith.constant 0 : i32
    %c0_i32_0 = arith.constant 0 : i32
    %c0_i32_1 = arith.constant 0 : i32
    return %c0_i32, %c0_i32_0 : i32, i32
  }
  func.func @transform_2(%arg0: i32) -> (i32, i32) {
    %c0_i32 = arith.constant 0 : i32
    %c0_i32_0 = arith.constant 0 : i32
    %c0_i32_1 = arith.constant 0 : i32
    return %c0_i32, %c0_i32_0 : i32, i32
  }
  func.func @transform_3(%arg0: i32) -> (i32, i32, i32) {
    %c0_i32 = arith.constant 0 : i32
    %c0_i32_0 = arith.constant 0 : i32
    %c0_i32_1 = arith.constant 0 : i32
    return %arg0, %c0_i32, %c0_i32_0 : i32, i32, i32
  }
}

</mosaic_0001>

<llo_original>
// kernel: tpu_custom_call.1
$region0: #{tpu_custom_call.1}
  #allocation0 [shape = 'u32[]', space=smem, size = 0x4, offset = 0x4, fixed_abs, tag = 'smem constant byte address 0x4 - core index']
  #allocation1 [shape = 'u32[144,128]{1,0:T(1,128)}', space=vmem, size = 0x12000, scoped, tag = 'internal scratch']
  #allocation2 [shape = 'bf16[4,18,18]{2,1,0:T(8,128)(2,1)}', space=vmem, size = 0x6000, scoped, tag = 'scratch operand']
  #allocation3 [shape = 'bf16[36,256]{1,0:T(8,128)(2,1)}', space=vmem, size = 0x5000, scoped, tag = 'scratch operand']
  %s0 = inlined_call_operand.hbm [shape: f32[2,4,16,16], index: 0, kind: input, shape index: {}]
  %s1 = inlined_call_operand.vmem [shape: bf16[8,36], index: 1, kind: input, shape index: {}]
  %s2 = inlined_call_operand.vmem [shape: f32[8,1], index: 2, kind: input, shape index: {}]
  %s3 = inlined_call_operand.hbm [shape: f32[2,8,256], index: 3, kind: output, shape index: {}]
  %s4 = sld [smem:[#allocation0]]
  $region49: #{tpu_custom_call.1} parent=0
    _
  %s6 = ssub.s32 1, %s4
  %s7 = scalar_select 0, %s6, %s4
  $region1: #{tpu_custom_call.1} parent=0
    #allocation4 [shape = 'u8[65536]{0}', space=vmem, size = 0x10000, scoped, tag = 'input window, operand 0']
    #allocation5 [shape = 's32[2]{0}', space=sflag, size = 0x8, scoped, tag = 'scoped memory for tpu_custom_call.1']
    #allocation6 [shape = 's32[2]{0}', space=sflag, size = 0x8, scoped, tag = 'scoped memory for tpu_custom_call.1']
    #allocation7 [shape = 'u8[16384]{0}', space=vmem, size = 0x4000, scoped, tag = 'output window, operand 0']
    %8 = vsyncpa [#allocation5], 0
    %s9 = scalar_lea.sflag [#allocation5], 1
    %10 = vsyncpa %s9, 0
    %11 = vsyncpa [#allocation6], 0
    %s12 = scalar_lea.sflag [#allocation6], 1
    %13 = vsyncpa %s12, 0
    loop: start=0, step=1, limit=4
    $region2: #{tpu_custom_call.1} parent=1 // loop_pre_header
      _
    $region3: #{tpu_custom_call.1} parent=1 // loop_header
      %s15 = sphi 0, %s19
      %p16 = scmp.ge.s32.totalorder %s15, 4
      %s25 = sphi 0, %s27
      %s28 = sphi 0, %s25
      %s29 = sphi 0, %s28
      %s45 = sphi 0, %s29
      %s49 = sphi 0, %s49
      %s51 = sphi 0, %s49
      %s52 = sphi 0, %s51
      %s66 = sphi 0, %s52
      %s70 = sphi 0, %s70
      %s72 = sphi 0, %s70
      %s73 = sphi 0, %s72
      %s87 = sphi 0, %s73
      %s93 = sphi 0, %s95
      %s96 = sphi 0, %s93
      %s97 = sphi 0, %s96
      %s113 = sphi 0, %s97
    $region4: #{tpu_custom_call.1} parent=1 // loop_header_branch
      %18 = sbr.rel (%p16) target = $region8
    $region5: #{tpu_custom_call.1} parent=1 // loop_body
      %s20 = ssub.s32 %s15, 1
      %s21 = ssub.s32 %s15, 2
      %s22 = sadd.s32 %s15, 1
      %s23 = ssub.s32 %s15, %s22
      %p24 = scmp.eq.s32.totalorder %s23, 0
      %s26 = sadd.s32 %s25, 1
      %s27 = scalar_select %p24, %s25, %s26
      %p30 = pneg %p24
      %p31 = scmp.eq.s32.totalorder %s15, 1
      %p32 = por %p30, %p31
      %p33 = scmp.ne.s32.totalorder %s25, %s28
      %p34 = scmp.eq.s32.totalorder %s15, 0
      %p35 = por %p33, %p34
      %p36 = scmp.ne.s32.totalorder %s25, %s28
      %p37 = scmp.eq.s32.totalorder %s20, 1
      %p38 = por %p36, %p37
      %p39 = scmp.ne.s32.totalorder %s28, %s29
      %p40 = scmp.eq.s32.totalorder %s20, 0
      %p41 = por %p39, %p40
      %p42 = scmp.ne.s32.totalorder %s28, %s29
      %p43 = scmp.eq.s32.totalorder %s21, 1
      %p44 = por %p42, %p43
      %p46 = scmp.ne.s32.totalorder %s29, %s45
      %p47 = scmp.eq.s32.totalorder %s21, 0
      %p48 = por %p46, %p47
      %s50 = sadd.s32 %s49, 1
      %p53 = scmp.eq.s32.totalorder %s15, 1
      %p54 = scmp.ne.s32.totalorder %s49, %s51
      %p55 = scmp.eq.s32.totalorder %s15, 0
      %p56 = por %p54, %p55
      %p57 = scmp.ne.s32.totalorder %s49, %s51
      %p58 = scmp.eq.s32.totalorder %s20, 1
      %p59 = por %p57, %p58
      %p60 = scmp.ne.s32.totalorder %s51, %s52
      %p61 = scmp.eq.s32.totalorder %s20, 0
      %p62 = por %p60, %p61
      %p63 = scmp.ne.s32.totalorder %s51, %s52
      %p64 = scmp.eq.s32.totalorder %s21, 1
      %p65 = por %p63, %p64
      %p67 = scmp.ne.s32.totalorder %s52, %s66
      %p68 = scmp.eq.s32.totalorder %s21, 0
      %p69 = por %p67, %p68
      %s71 = sadd.s32 %s70, 1
      %p74 = scmp.eq.s32.totalorder %s15, 1
      %p75 = scmp.ne.s32.totalorder %s70, %s72
      %p76 = scmp.eq.s32.totalorder %s15, 0
      %p77 = por %p75, %p76
      %p78 = scmp.ne.s32.totalorder %s70, %s72
      %p79 = scmp.eq.s32.totalorder %s20, 1
      %p80 = por %p78, %p79
      %p81 = scmp.ne.s32.totalorder %s72, %s73
      %p82 = scmp.eq.s32.totalorder %s20, 0
      %p83 = por %p81, %p82
      %p84 = scmp.ne.s32.totalorder %s72, %s73
      %p85 = scmp.eq.s32.totalorder %s21, 1
      %p86 = por %p84, %p85
      %p88 = scmp.ne.s32.totalorder %s73, %s87
      %p89 = scmp.eq.s32.totalorder %s21, 0
      %p90 = por %p88, %p89
      %s91 = ssub.s32 %s15, %s22
      %p92 = scmp.eq.s32.totalorder %s91, 0
      %s94 = sadd.s32 %s93, 1
      %s95 = scalar_select %p92, %s93, %s94
      %p98 = pneg %p92
      %p99 = scmp.eq.s32.totalorder %s15, 1
      %p100 = por %p98, %p99
      %p101 = scmp.ne.s32.totalorder %s93, %s96
      %p102 = scmp.eq.s32.totalorder %s15, 0
      %p103 = por %p101, %p102
      %p104 = scmp.ne.s32.totalorder %s93, %s96
      %p105 = scmp.eq.s32.totalorder %s20, 1
      %p106 = por %p104, %p105
      %p107 = scmp.ne.s32.totalorder %s96, %s97
      %p108 = scmp.eq.s32.totalorder %s20, 0
      %p109 = por %p107, %p108
      %p110 = scmp.ne.s32.totalorder %s96, %s97
      %p111 = scmp.eq.s32.totalorder %s21, 1
      %p112 = por %p110, %p111
      %p114 = scmp.ne.s32.totalorder %s97, %s113
      %p115 = scmp.eq.s32.totalorder %s21, 0
      %p116 = por %p114, %p115
      %p117 = scmp.le.s32.totalorder 1, %s15
      %p118 = scmp.lt.s32.totalorder %s15, 3
      %p119 = pnand %p117, %p118
      %p120 = pneg %p119
      // Predicated region
      $region9: #{tpu_custom_call.1} parent=5 // pred_check
        _
      $region10: #{tpu_custom_call.1} parent=5 // pred_check_branch
        %122 = sbr.rel (%p119) target = $region12
      $region11: #{tpu_custom_call.1} parent=5 // pred_region
        %s123 = ssub.s32 %s15, 1
        // Predicated region
        $region13: #{tpu_custom_call.1} parent=11 // pred_check
          %p124 = pneg %p62
        $region14: #{tpu_custom_call.1} parent=11 // pred_check_branch
          %126 = sbr.rel (%p124) target = $region16
        $region15: #{tpu_custom_call.1} parent=11 // pred_region
          _
        $region16: #{tpu_custom_call.1} parent=11 // pred_fallthru
          _
        // Predicated region
        $region17: #{tpu_custom_call.1} parent=11 // pred_check
          %p127 = pneg %p83
        $region18: #{tpu_custom_call.1} parent=11 // pred_check_branch
          %129 = sbr.rel (%p127) target = $region20
        $region19: #{tpu_custom_call.1} parent=11 // pred_region
          _
        $region20: #{tpu_custom_call.1} parent=11 // pred_fallthru
          _
      $region12: #{tpu_custom_call.1} parent=5 // pred_fallthru
        _
      %p130 = scmp.lt.s32.totalorder %s15, 2
      // Predicated region
      $region21: #{tpu_custom_call.1} parent=5 // pred_check
        %p131 = pneg %p130
      $region22: #{tpu_custom_call.1} parent=5 // pred_check_branch
        %133 = sbr.rel (%p131) target = $region24
      $region23: #{tpu_custom_call.1} parent=5 // pred_region
        // Predicated region
        $region25: #{tpu_custom_call.1} parent=23 // pred_check
          %p134 = pneg %p35
        $region26: #{tpu_custom_call.1} parent=23 // pred_check_branch
          %136 = sbr.rel (%p134) target = $region28
        $region27: #{tpu_custom_call.1} parent=23 // pred_region
          %s137 = sand.u32 %s25, 1
          %s138 = scalar_lea.sflag [#allocation5], %s137
          %s139 = sand.u32 %s25, 1
          %s140 = smul.addr %s139, 64
          %s141 = scalar_lea.vmem [#allocation4], %s140
          %s143 = ssub.s32 1024, 1024
          %144 = vsyncadd %s138, %s143
          %s145 = smul.addr %s15, 8
          %s146 = smul.addr %s145, 128
          %s147 = scalar_lea.hbm %s0, %s146
          %s148 = sshll.u32 %s141, 4
          %s149 = int_to_ptr.vmem [resolvable:$true] %s148
          %154 = dma.hbm_to_vmem [thread:$0]  %s147, 1024, %s149, %s138, 128, 128, 8
        $region28: #{tpu_custom_call.1} parent=23 // pred_fallthru
          _
      $region24: #{tpu_custom_call.1} parent=5 // pred_fallthru
        _
      %p155 = scmp.le.s32.totalorder 1, %s15
      %p156 = scmp.lt.s32.totalorder %s15, 3
      %p157 = pnand %p155, %p156
      %p158 = pneg %p157
      // Predicated region
      $region29: #{tpu_custom_call.1} parent=5 // pred_check
        _
      $region30: #{tpu_custom_call.1} parent=5 // pred_check_branch
        %160 = sbr.rel (%p157) target = $region32
      $region31: #{tpu_custom_call.1} parent=5 // pred_region
        %s161 = ssub.s32 %s15, 1
        %s162 = sand.u32 %s28, 1
        %s163 = scalar_lea.sflag [#allocation5], %s162
        %s164 = sand.u32 %s28, 1
        %s165 = smul.addr %s164, 64
        %s166 = scalar_lea.vmem [#allocation4], %s165
        // Predicated region
        $region33: #{tpu_custom_call.1} parent=31 // pred_check
          %p167 = pneg %p41
        $region34: #{tpu_custom_call.1} parent=31 // pred_check_branch
          %169 = sbr.rel (%p167) target = $region36
        $region35: #{tpu_custom_call.1} parent=31 // pred_region
          %170 = dma.done %s163, 1024
        $region36: #{tpu_custom_call.1} parent=31 // pred_fallthru
          _
        %s171 = sand.u32 %s28, 1
        %s172 = scalar_lea.sflag [#allocation5], %s171
        %s173 = sand.u32 %s28, 1
        %s174 = smul.addr %s173, 64
        %s175 = scalar_lea.vmem [#allocation4], %s174
        %p176 = pneg %p41
        %p177 = pneg %p38
        %p178 = pneg %p62
        %p179 = pneg %p59
        %p180 = pneg %p83
        %p181 = pneg %p80
        %p182 = pneg %p109
        %p183 = pneg %p106
        %s184 = sand.u32 %s96, 1
        %s185 = scalar_lea.sflag [#allocation6], %s184
        %s186 = sand.u32 %s96, 1
        %s187 = smul.addr %s186, 16
        %s188 = scalar_lea.vmem [#allocation7], %s187
        %v190 = vld [vmem:[%s1] sm:$0xf]
        %v191 = vld [vmem:[%s2] sm:$0xff]
        %v192 = vld [vmem:[%s166] sm:$0xff]
        %v193 = vld [vmem:[%s166 + $0x8] sm:$0xff]
        %v194 = vld [vmem:[%s166 + $0x10] sm:$0xff]
        %v195 = vld [vmem:[%s166 + $0x18] sm:$0xff]
        %v196 = vld [vmem:[%s166 + $0x20] sm:$0xff]
        %v197 = vld [vmem:[%s166 + $0x28] sm:$0xff]
        %v198 = vld [vmem:[%s166 + $0x30] sm:$0xff]
        %v199 = vld [vmem:[%s166 + $0x38] sm:$0xff]
        %v200 = vpack.c.bf16 %v193, %v192
        %v201 = vpack.c.bf16 %v195, %v194
        %v202 = vpack.c.bf16 %v197, %v196
        %v203 = vpack.c.bf16 %v199, %v198
        %v208 = vunpack.c.l.b16 %v200
        %v209 = vunpack.c.h.b16 %v200
        %v210 = vunpack.c.l.b16 %v201
        %v211 = vunpack.c.h.b16 %v201
        %v212 = vunpack.c.l.b16 %v202
        %v213 = vunpack.c.h.b16 %v202
        %v214 = vunpack.c.l.b16 %v203
        %v215 = vunpack.c.h.b16 %v203
        %v216 = vpack.c.b16 %v208, %v208
        %v217 = vpack.c.b16 %v209, %v209
        %v218 = vpack.c.b16 %v210, %v210
        %v219 = vpack.c.b16 %v211, %v211
        %v220 = vpack.c.b16 %v212, %v212
        %v221 = vpack.c.b16 %v213, %v213
        %v222 = vpack.c.b16 %v214, %v214
        %v223 = vpack.c.b16 %v215, %v215
        %vm224 = vsmask.f32 256
        %vm225 = vsmask.f32 4368
        %vm226 = vmor %vm224, %vm225
        %v228 = vshrl.u32 %v216, 16
        %v230 = vrot.slane %v228, 7
        %v231 = vshll.u32 %v216, 16
        %v233 = vor.u32 %v230, %v231
        %v234 = vrot.slane %v230, 4
        %v236 = vshrl.u32 %v217, 16
        %v238 = vrot.slane %v236, 7
        %v239 = vshll.u32 %v217, 16
        %v241 = vor.u32 %v238, %v239
        %v242 = vsel %vm226, %v234, %v241
        %v243 = vrot.slane %v238, 4
        %v245 = vshrl.u32 %v218, 16
        %v247 = vrot.slane %v245, 7
        %v248 = vshll.u32 %v218, 16
        %v250 = vor.u32 %v247, %v248
        %v251 = vrot.slane %v247, 4
        %v253 = vshrl.u32 %v219, 16
        %v255 = vrot.slane %v253, 7
        %v256 = vshll.u32 %v219, 16
        %v258 = vor.u32 %v255, %v256
        %v259 = vsel %vm226, %v251, %v258
        %v260 = vrot.slane %v255, 4
        %v262 = vshrl.u32 %v220, 16
        %v264 = vrot.slane %v262, 7
        %v265 = vshll.u32 %v220, 16
        %v267 = vor.u32 %v264, %v265
        %v268 = vrot.slane %v264, 4
        %v270 = vshrl.u32 %v221, 16
        %v272 = vrot.slane %v270, 7
        %v273 = vshll.u32 %v221, 16
        %v275 = vor.u32 %v272, %v273
        %v276 = vsel %vm226, %v268, %v275
        %v277 = vrot.slane %v272, 4
        %v279 = vshrl.u32 %v222, 16
        %v281 = vrot.slane %v279, 7
        %v282 = vshll.u32 %v222, 16
        %v284 = vor.u32 %v281, %v282
        %v285 = vrot.slane %v281, 4
        %v287 = vshrl.u32 %v223, 16
        %v289 = vrot.slane %v287, 7
        %v290 = vshll.u32 %v223, 16
        %v292 = vor.u32 %v289, %v290
        %v293 = vsel %vm226, %v285, %v292
        %v294 = vrot.slane %v289, 4
        %295 = vrot.lane.b32.xlu0 %v233, 1
        %v296 = vpop.permute.xlu0 %295
        %297 = vrot.lane.b32.xlu0 %v242, 1
        %v298 = vpop.permute.xlu0 %297
        %299 = vrot.lane.b32.xlu0 %v243, 1
        %v300 = vpop.permute.xlu0 %299
        %301 = vrot.lane.b32.xlu0 %v250, 1
        %v302 = vpop.permute.xlu0 %301
        %303 = vrot.lane.b32.xlu0 %v259, 1
        %v304 = vpop.permute.xlu0 %303
        %305 = vrot.lane.b32.xlu0 %v260, 1
        %v306 = vpop.permute.xlu0 %305
        %307 = vrot.lane.b32.xlu0 %v267, 1
        %v308 = vpop.permute.xlu0 %307
        %309 = vrot.lane.b32.xlu0 %v276, 1
        %v310 = vpop.permute.xlu0 %309
        %311 = vrot.lane.b32.xlu0 %v277, 1
        %v312 = vpop.permute.xlu0 %311
        %313 = vrot.lane.b32.xlu0 %v284, 1
        %v314 = vpop.permute.xlu0 %313
        %315 = vrot.lane.b32.xlu0 %v293, 1
        %v316 = vpop.permute.xlu0 %315
        %317 = vrot.lane.b32.xlu0 %v294, 1
        %v318 = vpop.permute.xlu0 %317
        %vm331 = vcmask 134152
        %vm332 = vsmask.f32 7938
        %vm333 = vmand %vm331, %vm332
        %v334 = vld [vmem:[#allocation2] sm:$0xf]
        %v335 = vsel %vm333, %v296, %v334
        %336 = vst [vmem:[#allocation2] sm:$0xf] %v335
        %vm337 = vcmask 134152
        %338 = vst.msk [vmem:[#allocation2 + $0x4] sm:$0xf] %vm337, %v298
        %vm339 = vcmask 131080
        %vm340 = vmand %vm339, %vm224
        %v341 = vld [vmem:[#allocation2 + $0x8] sm:$0x1]
        %v342 = vsel %vm340, %v300, %v341
        %343 = vst [vmem:[#allocation2 + $0x8] sm:$0x1] %v342
        %v344 = vld [vmem:[#allocation2 + $0xc] sm:$0xf]
        %v345 = vsel %vm333, %v302, %v344
        %346 = vst [vmem:[#allocation2 + $0xc] sm:$0xf] %v345
        %347 = vst.msk [vmem:[#allocation2 + $0x10] sm:$0xf] %vm337, %v304
        %v348 = vld [vmem:[#allocation2 + $0x14] sm:$0x1]
        %v349 = vsel %vm340, %v306, %v348
        %350 = vst [vmem:[#allocation2 + $0x14] sm:$0x1] %v349
        %v351 = vld [vmem:[#allocation2 + $0x18] sm:$0xf]
        %v352 = vsel %vm333, %v308, %v351
        %353 = vst [vmem:[#allocation2 + $0x18] sm:$0xf] %v352
        %354 = vst.msk [vmem:[#allocation2 + $0x1c] sm:$0xf] %vm337, %v310
        %v355 = vld [vmem:[#allocation2 + $0x20] sm:$0x1]
        %v356 = vsel %vm340, %v312, %v355
        %357 = vst [vmem:[#allocation2 + $0x20] sm:$0x1] %v356
        %v358 = vld [vmem:[#allocation2 + $0x24] sm:$0xf]
        %v359 = vsel %vm333, %v314, %v358
        %360 = vst [vmem:[#allocation2 + $0x24] sm:$0xf] %v359
        %361 = vst.msk [vmem:[#allocation2 + $0x28] sm:$0xf] %vm337, %v316
        %v362 = vld [vmem:[#allocation2 + $0x2c] sm:$0x1]
        %v363 = vsel %vm340, %v318, %v362
        %364 = vst [vmem:[#allocation2 + $0x2c] sm:$0x1] %v363
        %v365 = vrot.slane %v228, 4
        %v366 = vrot.slane %v365, 4
        %v367 = vrot.slane %v245, 4
        %v368 = vrot.slane %v367, 4
        %v369 = vrot.slane %v262, 4
        %v370 = vrot.slane %v369, 4
        %v371 = vrot.slane %v279, 4
        %v372 = vrot.slane %v371, 4
        %373 = vrot.lane.b32.xlu0 %v366, 1
        %v374 = vpop.permute.xlu0 %373
        %375 = vrot.lane.b32.xlu0 %v368, 1
        %v376 = vpop.permute.xlu0 %375
        %377 = vrot.lane.b32.xlu0 %v370, 1
        %v378 = vpop.permute.xlu0 %377
        %379 = vrot.lane.b32.xlu0 %v372, 1
        %v380 = vpop.permute.xlu0 %379
        %v385 = vld [vmem:[#allocation2] sm:$0x1]
        %v386 = vsel %vm340, %v374, %v385
        %387 = vst [vmem:[#allocation2] sm:$0x1] %v386
        %v388 = vld [vmem:[#allocation2 + $0xc] sm:$0x1]
        %v389 = vsel %vm340, %v376, %v388
        %390 = vst [vmem:[#allocation2 + $0xc] sm:$0x1] %v389
        %v391 = vld [vmem:[#allocation2 + $0x18] sm:$0x1]
        %v392 = vsel %vm340, %v378, %v391
        %393 = vst [vmem:[#allocation2 + $0x18] sm:$0x1] %v392
        %v394 = vld [vmem:[#allocation2 + $0x24] sm:$0x1]
        %v395 = vsel %vm340, %v380, %v394
        %396 = vst [vmem:[#allocation2 + $0x24] sm:$0x1] %v395
        %v397 = vrot.slane %v239, 7
        %v398 = vrot.slane %v397, 4
        %v399 = vrot.slane %v256, 7
        %v400 = vrot.slane %v399, 4
        %v401 = vrot.slane %v273, 7
        %v402 = vrot.slane %v401, 4
        %v403 = vrot.slane %v290, 7
        %v404 = vrot.slane %v403, 4
        %405 = vrot.lane.b32.xlu0 %v398, 1
        %v406 = vpop.permute.xlu0 %405
        %407 = vrot.lane.b32.xlu0 %v400, 1
        %v408 = vpop.permute.xlu0 %407
        %409 = vrot.lane.b32.xlu0 %v402, 1
        %v410 = vpop.permute.xlu0 %409
        %411 = vrot.lane.b32.xlu0 %v404, 1
        %v412 = vpop.permute.xlu0 %411
        %vm417 = vmand %vm339, %vm332
        %v418 = vld [vmem:[#allocation2 + $0x8] sm:$0x1]
        %v419 = vsel %vm417, %v406, %v418
        %420 = vst [vmem:[#allocation2 + $0x8] sm:$0x1] %v419
        %v421 = vld [vmem:[#allocation2 + $0x14] sm:$0x1]
        %v422 = vsel %vm417, %v408, %v421
        %423 = vst [vmem:[#allocation2 + $0x14] sm:$0x1] %v422
        %v424 = vld [vmem:[#allocation2 + $0x20] sm:$0x1]
        %v425 = vsel %vm417, %v410, %v424
        %426 = vst [vmem:[#allocation2 + $0x20] sm:$0x1] %v425
        %v427 = vld [vmem:[#allocation2 + $0x2c] sm:$0x1]
        %v428 = vsel %vm417, %v412, %v427
        %429 = vst [vmem:[#allocation2 + $0x2c] sm:$0x1] %v428
        %v430 = vld [vmem:[#allocation2] sm:$0xf]
        %v431 = vld [vmem:[#allocation2 + $0x4] sm:$0xf]
        %v432 = vld [vmem:[#allocation2 + $0x8] sm:$0x1]
        %v433 = vld [vmem:[#allocation2 + $0xc] sm:$0xf]
        %v434 = vld [vmem:[#allocation2 + $0x10] sm:$0xf]
        %v435 = vld [vmem:[#allocation2 + $0x14] sm:$0x1]
        %v436 = vld [vmem:[#allocation2 + $0x18] sm:$0xf]
        %v437 = vld [vmem:[#allocation2 + $0x1c] sm:$0xf]
        %v438 = vld [vmem:[#allocation2 + $0x20] sm:$0x1]
        %v439 = vld [vmem:[#allocation2 + $0x24] sm:$0xf]
        %v440 = vld [vmem:[#allocation2 + $0x28] sm:$0xf]
        %v441 = vld [vmem:[#allocation2 + $0x2c] sm:$0x1]
        %454 = vrot.lane.b32.xlu0 %v430, 126
        %v455 = vpop.permute.xlu0 %454
        %456 = vrot.lane.b32.xlu0 %v431, 126
        %v457 = vpop.permute.xlu0 %456
        %458 = vrot.lane.b32.xlu0 %v432, 126
        %v459 = vpop.permute.xlu0 %458
        %460 = vrot.lane.b32.xlu0 %v433, 126
        %v461 = vpop.permute.xlu0 %460
        %462 = vrot.lane.b32.xlu0 %v434, 126
        %v463 = vpop.permute.xlu0 %462
        %464 = vrot.lane.b32.xlu0 %v435, 126
        %v465 = vpop.permute.xlu0 %464
        %466 = vrot.lane.b32.xlu0 %v436, 126
        %v467 = vpop.permute.xlu0 %466
        %468 = vrot.lane.b32.xlu0 %v437, 126
        %v469 = vpop.permute.xlu0 %468
        %470 = vrot.lane.b32.xlu0 %v438, 126
        %v471 = vpop.permute.xlu0 %470
        %472 = vrot.lane.b32.xlu0 %v439, 126
        %v473 = vpop.permute.xlu0 %472
        %474 = vrot.lane.b32.xlu0 %v440, 126
        %v475 = vpop.permute.xlu0 %474
        %476 = vrot.lane.b32.xlu0 %v441, 126
        %v477 = vpop.permute.xlu0 %476
        %vm490 = vcmask 3072
        %491 = vst.msk [vmem:[#allocation2] sm:$0xf] %vm490, %v455
        %492 = vst.msk [vmem:[#allocation2 + $0x4] sm:$0xf] %vm490, %v457
        %vm493 = vcmask 0
        %494 = vst.msk [vmem:[#allocation2 + $0x8] sm:$0x1] %vm493, %v459
        %495 = vst.msk [vmem:[#allocation2 + $0xc] sm:$0xf] %vm490, %v461
        %496 = vst.msk [vmem:[#allocation2 + $0x10] sm:$0xf] %vm490, %v463
        %497 = vst.msk [vmem:[#allocation2 + $0x14] sm:$0x1] %vm493, %v465
        %498 = vst.msk [vmem:[#allocation2 + $0x18] sm:$0xf] %vm490, %v467
        %499 = vst.msk [vmem:[#allocation2 + $0x1c] sm:$0xf] %vm490, %v469
        %500 = vst.msk [vmem:[#allocation2 + $0x20] sm:$0x1] %vm493, %v471
        %501 = vst.msk [vmem:[#allocation2 + $0x24] sm:$0xf] %vm490, %v473
        %502 = vst.msk [vmem:[#allocation2 + $0x28] sm:$0xf] %vm490, %v475
        %503 = vst.msk [vmem:[#allocation2 + $0x2c] sm:$0x1] %vm493, %v477
        %v504 = vld [vmem:[#allocation2] sm:$0xf]
        %v505 = vld [vmem:[#allocation2 + $0x4] sm:$0xf]
        %v506 = vld [vmem:[#allocation2 + $0x8] sm:$0x1]
        %v507 = vld [vmem:[#allocation2 + $0xc] sm:$0xf]
        %v508 = vld [vmem:[#allocation2 + $0x10] sm:$0xf]
        %v509 = vld [vmem:[#allocation2 + $0x14] sm:$0x1]
        %v510 = vld [vmem:[#allocation2 + $0x18] sm:$0xf]
        %v511 = vld [vmem:[#allocation2 + $0x1c] sm:$0xf]
        %v512 = vld [vmem:[#allocation2 + $0x20] sm:$0x1]
        %v513 = vld [vmem:[#allocation2 + $0x24] sm:$0xf]
        %v514 = vld [vmem:[#allocation2 + $0x28] sm:$0xf]
        %v515 = vld [vmem:[#allocation2 + $0x2c] sm:$0x1]
        %528 = vrot.lane.b32.xlu0 %v504, 2
        %v529 = vpop.permute.xlu0 %528
        %530 = vrot.lane.b32.xlu0 %v505, 2
        %v531 = vpop.permute.xlu0 %530
        %532 = vrot.lane.b32.xlu0 %v506, 2
        %v533 = vpop.permute.xlu0 %532
        %534 = vrot.lane.b32.xlu0 %v507, 2
        %v535 = vpop.permute.xlu0 %534
        %536 = vrot.lane.b32.xlu0 %v508, 2
        %v537 = vpop.permute.xlu0 %536
        %538 = vrot.lane.b32.xlu0 %v509, 2
        %v539 = vpop.permute.xlu0 %538
        %540 = vrot.lane.b32.xlu0 %v510, 2
        %v541 = vpop.permute.xlu0 %540
        %542 = vrot.lane.b32.xlu0 %v511, 2
        %v543 = vpop.permute.xlu0 %542
        %544 = vrot.lane.b32.xlu0 %v512, 2
        %v545 = vpop.permute.xlu0 %544
        %546 = vrot.lane.b32.xlu0 %v513, 2
        %v547 = vpop.permute.xlu0 %546
        %548 = vrot.lane.b32.xlu0 %v514, 2
        %v549 = vpop.permute.xlu0 %548
        %550 = vrot.lane.b32.xlu0 %v515, 2
        %v551 = vpop.permute.xlu0 %550
        %vm564 = vcmask 142472
        %565 = vst.msk [vmem:[#allocation2] sm:$0xf] %vm564, %v529
        %566 = vst.msk [vmem:[#allocation2 + $0x4] sm:$0xf] %vm564, %v531
        %vm567 = vcmask 139400
        %568 = vst.msk [vmem:[#allocation2 + $0x8] sm:$0x1] %vm567, %v533
        %569 = vst.msk [vmem:[#allocation2 + $0xc] sm:$0xf] %vm564, %v535
        %570 = vst.msk [vmem:[#allocation2 + $0x10] sm:$0xf] %vm564, %v537
        %571 = vst.msk [vmem:[#allocation2 + $0x14] sm:$0x1] %vm567, %v539
        %572 = vst.msk [vmem:[#allocation2 + $0x18] sm:$0xf] %vm564, %v541
        %573 = vst.msk [vmem:[#allocation2 + $0x1c] sm:$0xf] %vm564, %v543
        %574 = vst.msk [vmem:[#allocation2 + $0x20] sm:$0x1] %vm567, %v545
        %575 = vst.msk [vmem:[#allocation2 + $0x24] sm:$0xf] %vm564, %v547
        %576 = vst.msk [vmem:[#allocation2 + $0x28] sm:$0xf] %vm564, %v549
        %577 = vst.msk [vmem:[#allocation2 + $0x2c] sm:$0x1] %vm567, %v551
        %v578 = vld [vmem:[#allocation2] sm:$0x1]
        %v579 = vld [vmem:[#allocation2 + $0xc] sm:$0x1]
        %v580 = vld [vmem:[#allocation2 + $0x18] sm:$0x1]
        %v581 = vld [vmem:[#allocation2 + $0x24] sm:$0x1]
        %v586 = vunpack.c.l.b16 %v578
        %v587 = vunpack.c.l.b16 %v579
        %v588 = vunpack.c.l.b16 %v580
        %v589 = vunpack.c.l.b16 %v581
        %v590 = vrot.slane %v587, 7
        %vm591 = vcmask 1041409
        %v592 = vsel %vm591, %v590, %v586
        %v593 = vrot.slane %v588, 6
        %vm594 = vcmask 1042434
        %v595 = vsel %vm594, %v593, %v592
        %v596 = vrot.slane %v589, 5
        %vm597 = vcmask 1043459
        %v598 = vsel %vm597, %v596, %v595
        %v599 = vpack.c.b16 %v598, %v598
        %vm601 = vcmask 123904
        %602 = vst.msk [vmem:[#allocation3] sm:$0x3] %vm601, %v599
        %v603 = vld [vmem:[#allocation2] sm:$0x1]
        %v604 = vld [vmem:[#allocation2 + $0xc] sm:$0x1]
        %v605 = vld [vmem:[#allocation2 + $0x18] sm:$0x1]
        %v606 = vld [vmem:[#allocation2 + $0x24] sm:$0x1]
        %v611 = vunpack.c.l.b16 %v603
        %v612 = vunpack.c.l.b16 %v604
        %v613 = vunpack.c.l.b16 %v605
        %v614 = vunpack.c.l.b16 %v606
        %v615 = vrot.slane %v611, 4
        %v616 = vrot.slane %v612, 3
        %vm617 = vcmask 1045509
        %v618 = vsel %vm617, %v616, %v615
        %v619 = vrot.slane %v613, 2
        %vm620 = vcmask 1046534
        %v621 = vsel %vm620, %v619, %v618
        %v622 = vrot.slane %v614, 1
        %vm623 = vcmask 1047559
        %v624 = vsel %vm623, %v622, %v621
        %v625 = vpack.c.b16 %v624, %v624
        %626 = vrot.lane.b32.xlu0 %v625, 127
        %v627 = vpop.permute.xlu0 %626
        %vm629 = vcmask 125954
        %630 = vst.msk [vmem:[#allocation3] sm:$0xc] %vm629, %v627
        %v631 = vld [vmem:[#allocation2] sm:$0x1]
        %v632 = vld [vmem:[#allocation2 + $0xc] sm:$0x1]
        %v633 = vld [vmem:[#allocation2 + $0x18] sm:$0x1]
        %v634 = vld [vmem:[#allocation2 + $0x24] sm:$0x1]
        %v639 = vunpack.c.l.b16 %v631
        %v640 = vunpack.c.l.b16 %v632
        %v641 = vunpack.c.l.b16 %v633
        %v642 = vunpack.c.l.b16 %v634
        %v643 = vrot.slane %v640, 7
        %v644 = vsel %vm591, %v643, %v639
        %v645 = vrot.slane %v641, 6
        %v646 = vsel %vm594, %v645, %v644
        %v647 = vrot.slane %v642, 5
        %v648 = vsel %vm597, %v647, %v646
        %v649 = vpack.c.b16 %v648, %v648
        %650 = vrot.lane.b32.xlu0 %v649, 126
        %v651 = vpop.permute.xlu0 %650
        %653 = vst.msk [vmem:[#allocation3 + $0x8] sm:$0x3] %vm601, %v651
        %v654 = vld [vmem:[#allocation2] sm:$0x1]
        %v655 = vld [vmem:[#allocation2 + $0xc] sm:$0x1]
        %v656 = vld [vmem:[#allocation2 + $0x18] sm:$0x1]
        %v657 = vld [vmem:[#allocation2 + $0x24] sm:$0x1]
        %v662 = vunpack.c.l.b16 %v654
        %v663 = vunpack.c.l.b16 %v655
        %v664 = vunpack.c.l.b16 %v656
        %v665 = vunpack.c.l.b16 %v657
        %v666 = vrot.slane %v662, 5
        %v667 = vrot.slane %v663, 4
        %v668 = vsel %vm617, %v667, %v666
        %v669 = vrot.slane %v664, 3
        %v670 = vsel %vm620, %v669, %v668
        %v671 = vrot.slane %v665, 2
        %v672 = vsel %vm623, %v671, %v670
        %v673 = vpack.c.b16 %v672, %v672
        %675 = vst.msk [vmem:[#allocation3 + $0x8] sm:$0xc] %vm629, %v673
        %v676 = vld [vmem:[#allocation2] sm:$0x1]
        %v677 = vld [vmem:[#allocation2 + $0xc] sm:$0x1]
        %v678 = vld [vmem:[#allocation2 + $0x18] sm:$0x1]
        %v679 = vld [vmem:[#allocation2 + $0x24] sm:$0x1]
        %v684 = vunpack.c.l.b16 %v676
        %v685 = vunpack.c.l.b16 %v677
        %v686 = vunpack.c.l.b16 %v678
        %v687 = vunpack.c.l.b16 %v679
        %v688 = vrot.slane %v684, 1
        %v689 = vsel %vm591, %v685, %v688
        %v690 = vrot.slane %v686, 7
        %v691 = vsel %vm594, %v690, %v689
        %v692 = vrot.slane %v687, 6
        %v693 = vsel %vm597, %v692, %v691
        %v694 = vpack.c.b16 %v693, %v693
        %695 = vrot.lane.b32.xlu0 %v694, 127
        %v696 = vpop.permute.xlu0 %695
        %698 = vst.msk [vmem:[#allocation3 + $0x10] sm:$0x3] %vm601, %v696
        %v699 = vld [vmem:[#allocation2] sm:$0x1]
        %v700 = vld [vmem:[#allocation2 + $0xc] sm:$0x1]
        %v701 = vld [vmem:[#allocation2 + $0x18] sm:$0x1]
        %v702 = vld [vmem:[#allocation2 + $0x24] sm:$0x1]
        %v707 = vunpack.c.l.b16 %v699
        %v708 = vunpack.c.l.b16 %v700
        %v709 = vunpack.c.l.b16 %v701
        %v710 = vunpack.c.l.b16 %v702
        %v711 = vrot.slane %v707, 5
        %v712 = vrot.slane %v708, 4
        %v713 = vsel %vm617, %v712, %v711
        %v714 = vrot.slane %v709, 3
        %v715 = vsel %vm620, %v714, %v713
        %v716 = vrot.slane %v710, 2
        %v717 = vsel %vm623, %v716, %v715
        %v718 = vpack.c.b16 %v717, %v717
        %719 = vrot.lane.b32.xlu0 %v718, 126
        %v720 = vpop.permute.xlu0 %719
        %722 = vst.msk [vmem:[#allocation3 + $0x10] sm:$0xc] %vm629, %v720
        %v723 = vld [vmem:[#allocation2] sm:$0x2]
        %v724 = vld [vmem:[#allocation2 + $0xc] sm:$0x2]
        %v725 = vld [vmem:[#allocation2 + $0x18] sm:$0x2]
        %v726 = vld [vmem:[#allocation2 + $0x24] sm:$0x2]
        %v731 = vunpack.c.l.b16 %v723
        %v732 = vunpack.c.l.b16 %v724
        %v733 = vunpack.c.l.b16 %v725
        %v734 = vunpack.c.l.b16 %v726
        %v735 = vrot.slane %v731, 2
        %v736 = vrot.slane %v732, 1
        %v737 = vsel %vm591, %v736, %v735
        %v738 = vsel %vm594, %v733, %v737
        %v739 = vrot.slane %v734, 7
        %v740 = vsel %vm597, %v739, %v738
        %v741 = vpack.c.b16 %v740, %v740
        %743 = vst.msk [vmem:[#allocation3 + $0x18] sm:$0x3] %vm601, %v741
        %v744 = vld [vmem:[#allocation2] sm:$0x2]
        %v745 = vld [vmem:[#allocation2 + $0xc] sm:$0x2]
        %v746 = vld [vmem:[#allocation2 + $0x18] sm:$0x2]
        %v747 = vld [vmem:[#allocation2 + $0x24] sm:$0x2]
        %v752 = vunpack.c.l.b16 %v744
        %v753 = vunpack.c.l.b16 %v745
        %v754 = vunpack.c.l.b16 %v746
        %v755 = vunpack.c.l.b16 %v747
        %v756 = vrot.slane %v752, 6
        %v757 = vrot.slane %v753, 5
        %v758 = vsel %vm617, %v757, %v756
        %v759 = vrot.slane %v754, 4
        %v760 = vsel %vm620, %v759, %v758
        %v761 = vrot.slane %v755, 3
        %v762 = vsel %vm623, %v761, %v760
        %v763 = vpack.c.b16 %v762, %v762
        %764 = vrot.lane.b32.xlu0 %v763, 127
        %v765 = vpop.permute.xlu0 %764
        %767 = vst.msk [vmem:[#allocation3 + $0x18] sm:$0xc] %vm629, %v765
        %v768 = vld [vmem:[#allocation2] sm:$0x2]
        %v769 = vld [vmem:[#allocation2 + $0xc] sm:$0x2]
        %v770 = vld [vmem:[#allocation2 + $0x18] sm:$0x2]
        %v771 = vld [vmem:[#allocation2 + $0x24] sm:$0x2]
        %v776 = vunpack.c.l.b16 %v768
        %v777 = vunpack.c.l.b16 %v769
        %v778 = vunpack.c.l.b16 %v770
        %v779 = vunpack.c.l.b16 %v771
        %v780 = vrot.slane %v776, 2
        %v781 = vrot.slane %v777, 1
        %v782 = vsel %vm591, %v781, %v780
        %v783 = vsel %vm594, %v778, %v782
        %v784 = vrot.slane %v779, 7
        %v785 = vsel %vm597, %v784, %v783
        %v786 = vpack.c.b16 %v785, %v785
        %787 = vrot.lane.b32.xlu0 %v786, 126
        %v788 = vpop.permute.xlu0 %787
        %790 = vst.msk [vmem:[#allocation3 + $0x20] sm:$0x3] %vm601, %v788
        %v791 = vld [vmem:[#allocation2] sm:$0x1]
        %v792 = vld [vmem:[#allocation2 + $0xc] sm:$0x1]
        %v793 = vld [vmem:[#allocation2 + $0x18] sm:$0x1]
        %v794 = vld [vmem:[#allocation2 + $0x24] sm:$0x1]
        %v799 = vunpack.c.l.b16 %v791
        %v800 = vunpack.c.l.b16 %v792
        %v801 = vunpack.c.l.b16 %v793
        %v802 = vunpack.c.l.b16 %v794
        %v803 = vrot.slane %v799, 1
        %v804 = vsel %vm591, %v800, %v803
        %v805 = vrot.slane %v801, 7
        %v806 = vsel %vm594, %v805, %v804
        %v807 = vrot.slane %v802, 6
        %v808 = vsel %vm597, %v807, %v806
        %v809 = vpack.c.b16 %v808, %v808
        %810 = vrot.lane.b32.xlu0 %v809, 16
        %v811 = vpop.permute.xlu0 %810
        %vm813 = vcmask 255104
        %814 = vst.msk [vmem:[#allocation3] sm:$0x3] %vm813, %v811
        %v815 = vld [vmem:[#allocation2] sm:$0x1]
        %v816 = vld [vmem:[#allocation2 + $0xc] sm:$0x1]
        %v817 = vld [vmem:[#allocation2 + $0x18] sm:$0x1]
        %v818 = vld [vmem:[#allocation2 + $0x24] sm:$0x1]
        %v823 = vunpack.c.l.b16 %v815
        %v824 = vunpack.c.l.b16 %v816
        %v825 = vunpack.c.l.b16 %v817
        %v826 = vunpack.c.l.b16 %v818
        %v827 = vrot.slane %v823, 5
        %v828 = vrot.slane %v824, 4
        %v829 = vsel %vm617, %v828, %v827
        %v830 = vrot.slane %v825, 3
        %v831 = vsel %vm620, %v830, %v829
        %v832 = vrot.slane %v826, 2
        %v833 = vsel %vm623, %v832, %v831
        %v834 = vpack.c.b16 %v833, %v833
        %835 = vrot.lane.b32.xlu0 %v834, 15
        %v836 = vpop.permute.xlu0 %835
        %vm838 = vcmask 257154
        %839 = vst.msk [vmem:[#allocation3] sm:$0xc] %vm838, %v836
        %v840 = vld [vmem:[#allocation2] sm:$0x1]
        %v841 = vld [vmem:[#allocation2 + $0xc] sm:$0x1]
        %v842 = vld [vmem:[#allocation2 + $0x18] sm:$0x1]
        %v843 = vld [vmem:[#allocation2 + $0x24] sm:$0x1]
        %v848 = vunpack.c.l.b16 %v840
        %v849 = vunpack.c.l.b16 %v841
        %v850 = vunpack.c.l.b16 %v842
        %v851 = vunpack.c.l.b16 %v843
        %v852 = vrot.slane %v848, 1
        %v853 = vsel %vm591, %v849, %v852
        %v854 = vrot.slane %v850, 7
        %v855 = vsel %vm594, %v854, %v853
        %v856 = vrot.slane %v851, 6
        %v857 = vsel %vm597, %v856, %v855
        %v858 = vpack.c.b16 %v857, %v857
        %859 = vrot.lane.b32.xlu0 %v858, 14
        %v860 = vpop.permute.xlu0 %859
        %862 = vst.msk [vmem:[#allocation3 + $0x8] sm:$0x3] %vm813, %v860
        %v863 = vld [vmem:[#allocation2] sm:$0x2]
        %v864 = vld [vmem:[#allocation2 + $0xc] sm:$0x2]
        %v865 = vld [vmem:[#allocation2 + $0x18] sm:$0x2]
        %v866 = vld [vmem:[#allocation2 + $0x24] sm:$0x2]
        %v871 = vunpack.c.l.b16 %v863
        %v872 = vunpack.c.l.b16 %v864
        %v873 = vunpack.c.l.b16 %v865
        %v874 = vunpack.c.l.b16 %v866
        %v875 = vrot.slane %v871, 6
        %v876 = vrot.slane %v872, 5
        %v877 = vsel %vm617, %v876, %v875
        %v878 = vrot.slane %v873, 4
        %v879 = vsel %vm620, %v878, %v877
        %v880 = vrot.slane %v874, 3
        %v881 = vsel %vm623, %v880, %v879
        %v882 = vpack.c.b16 %v881, %v881
        %883 = vrot.lane.b32.xlu0 %v882, 16
        %v884 = vpop.permute.xlu0 %883
        %886 = vst.msk [vmem:[#allocation3 + $0x8] sm:$0xc] %vm838, %v884
        %v887 = vld [vmem:[#allocation2] sm:$0x2]
        %v888 = vld [vmem:[#allocation2 + $0xc] sm:$0x2]
        %v889 = vld [vmem:[#allocation2 + $0x18] sm:$0x2]
        %v890 = vld [vmem:[#allocation2 + $0x24] sm:$0x2]
        %v895 = vunpack.c.l.b16 %v887
        %v896 = vunpack.c.l.b16 %v888
        %v897 = vunpack.c.l.b16 %v889
        %v898 = vunpack.c.l.b16 %v890
        %v899 = vrot.slane %v895, 2
        %v900 = vrot.slane %v896, 1
        %v901 = vsel %vm591, %v900, %v899
        %v902 = vsel %vm594, %v897, %v901
        %v903 = vrot.slane %v898, 7
        %v904 = vsel %vm597, %v903, %v902
        %v905 = vpack.c.b16 %v904, %v904
        %906 = vrot.lane.b32.xlu0 %v905, 15
        %v907 = vpop.permute.xlu0 %906
        %909 = vst.msk [vmem:[#allocation3 + $0x10] sm:$0x3] %vm813, %v907
        %v910 = vld [vmem:[#allocation2] sm:$0x2]
        %v911 = vld [vmem:[#allocation2 + $0xc] sm:$0x2]
        %v912 = vld [vmem:[#allocation2 + $0x18] sm:$0x2]
        %v913 = vld [vmem:[#allocation2 + $0x24] sm:$0x2]
        %v918 = vunpack.c.l.b16 %v910
        %v919 = vunpack.c.l.b16 %v911
        %v920 = vunpack.c.l.b16 %v912
        %v921 = vunpack.c.l.b16 %v913
        %v922 = vrot.slane %v918, 6
        %v923 = vrot.slane %v919, 5
        %v924 = vsel %vm617, %v923, %v922
        %v925 = vrot.slane %v920, 4
        %v926 = vsel %vm620, %v925, %v924
        %v927 = vrot.slane %v921, 3
        %v928 = vsel %vm623, %v927, %v926
        %v929 = vpack.c.b16 %v928, %v928
        %930 = vrot.lane.b32.xlu0 %v929, 14
        %v931 = vpop.permute.xlu0 %930
        %933 = vst.msk [vmem:[#allocation3 + $0x10] sm:$0xc] %vm838, %v931
        %v934 = vld [vmem:[#allocation2] sm:$0x2]
        %v935 = vld [vmem:[#allocation2 + $0xc] sm:$0x2]
        %v936 = vld [vmem:[#allocation2 + $0x18] sm:$0x2]
        %v937 = vld [vmem:[#allocation2 + $0x24] sm:$0x2]
        %v942 = vunpack.c.l.b16 %v934
        %v943 = vunpack.c.l.b16 %v935
        %v944 = vunpack.c.l.b16 %v936
        %v945 = vunpack.c.l.b16 %v937
        %v946 = vrot.slane %v942, 3
        %v947 = vrot.slane %v943, 2
        %v948 = vsel %vm591, %v947, %v946
        %v949 = vrot.slane %v944, 1
        %v950 = vsel %vm594, %v949, %v948
        %v951 = vsel %vm597, %v945, %v950
        %v952 = vpack.c.b16 %v951, %v951
        %953 = vrot.lane.b32.xlu0 %v952, 16
        %v954 = vpop.permute.xlu0 %953
        %956 = vst.msk [vmem:[#allocation3 + $0x18] sm:$0x3] %vm813, %v954
        %v957 = vld [vmem:[#allocation2] sm:$0x2]
        %v958 = vld [vmem:[#allocation2 + $0xc] sm:$0x2]
        %v959 = vld [vmem:[#allocation2 + $0x18] sm:$0x2]
        %v960 = vld [vmem:[#allocation2 + $0x24] sm:$0x2]
        %v965 = vunpack.c.l.b16 %v957
        %v966 = vunpack.c.l.b16 %v958
        %v967 = vunpack.c.l.b16 %v959
        %v968 = vunpack.c.l.b16 %v960
        %v969 = vrot.slane %v965, 7
        %v970 = vrot.slane %v966, 6
        %v971 = vsel %vm617, %v970, %v969
        %v972 = vrot.slane %v967, 5
        %v973 = vsel %vm620, %v972, %v971
        %v974 = vrot.slane %v968, 4
        %v975 = vsel %vm623, %v974, %v973
        %v976 = vpack.c.b16 %v975, %v975
        %977 = vrot.lane.b32.xlu0 %v976, 15
        %v978 = vpop.permute.xlu0 %977
        %980 = vst.msk [vmem:[#allocation3 + $0x18] sm:$0xc] %vm838, %v978
        %v981 = vld [vmem:[#allocation2] sm:$0x2]
        %v982 = vld [vmem:[#allocation2 + $0xc] sm:$0x2]
        %v983 = vld [vmem:[#allocation2 + $0x18] sm:$0x2]
        %v984 = vld [vmem:[#allocation2 + $0x24] sm:$0x2]
        %v989 = vunpack.c.l.b16 %v981
        %v990 = vunpack.c.l.b16 %v982
        %v991 = vunpack.c.l.b16 %v983
        %v992 = vunpack.c.l.b16 %v984
        %v993 = vrot.slane %v989, 3
        %v994 = vrot.slane %v990, 2
        %v995 = vsel %vm591, %v994, %v993
        %v996 = vrot.slane %v991, 1
        %v997 = vsel %vm594, %v996, %v995
        %v998 = vsel %vm597, %v992, %v997
        %v999 = vpack.c.b16 %v998, %v998
        %1000 = vrot.lane.b32.xlu0 %v999, 14
        %v1001 = vpop.permute.xlu0 %1000
        %1003 = vst.msk [vmem:[#allocation3 + $0x20] sm:$0x3] %vm813, %v1001
        %v1004 = vld [vmem:[#allocation2] sm:$0x2]
        %v1005 = vld [vmem:[#allocation2 + $0xc] sm:$0x2]
        %v1006 = vld [vmem:[#allocation2 + $0x18] sm:$0x2]
        %v1007 = vld [vmem:[#allocation2 + $0x24] sm:$0x2]
        %v1012 = vunpack.c.l.b16 %v1004
        %v1013 = vunpack.c.l.b16 %v1005
        %v1014 = vunpack.c.l.b16 %v1006
        %v1015 = vunpack.c.l.b16 %v1007
        %v1016 = vrot.slane %v1012, 2
        %v1017 = vrot.slane %v1013, 1
        %v1018 = vsel %vm591, %v1017, %v1016
        %v1019 = vsel %vm594, %v1014, %v1018
        %v1020 = vrot.slane %v1015, 7
        %v1021 = vsel %vm597, %v1020, %v1019
        %v1022 = vpack.c.b16 %v1021, %v1021
        %1023 = vrot.lane.b32.xlu0 %v1022, 32
        %v1024 = vpop.permute.xlu0 %1023
        %vm1026 = vcmask 386304
        %1027 = vst.msk [vmem:[#allocation3] sm:$0x3] %vm1026, %v1024
        %v1028 = vld [vmem:[#allocation2] sm:$0x2]
        %v1029 = vld [vmem:[#allocation2 + $0xc] sm:$0x2]
        %v1030 = vld [vmem:[#allocation2 + $0x18] sm:$0x2]
        %v1031 = vld [vmem:[#allocation2 + $0x24] sm:$0x2]
        %v1036 = vunpack.c.l.b16 %v1028
        %v1037 = vunpack.c.l.b16 %v1029
        %v1038 = vunpack.c.l.b16 %v1030
        %v1039 = vunpack.c.l.b16 %v1031
        %v1040 = vrot.slane %v1036, 6
        %v1041 = vrot.slane %v1037, 5
        %v1042 = vsel %vm617, %v1041, %v1040
        %v1043 = vrot.slane %v1038, 4
        %v1044 = vsel %vm620, %v1043, %v1042
        %v1045 = vrot.slane %v1039, 3
        %v1046 = vsel %vm623, %v1045, %v1044
        %v1047 = vpack.c.b16 %v1046, %v1046
        %1048 = vrot.lane.b32.xlu0 %v1047, 31
        %v1049 = vpop.permute.xlu0 %1048
        %vm1051 = vcmask 388354
        %1052 = vst.msk [vmem:[#allocation3] sm:$0xc] %vm1051, %v1049
        %v1053 = vld [vmem:[#allocation2] sm:$0x2]
        %v1054 = vld [vmem:[#allocation2 + $0xc] sm:$0x2]
        %v1055 = vld [vmem:[#allocation2 + $0x18] sm:$0x2]
        %v1056 = vld [vmem:[#allocation2 + $0x24] sm:$0x2]
        %v1061 = vunpack.c.l.b16 %v1053
        %v1062 = vunpack.c.l.b16 %v1054
        %v1063 = vunpack.c.l.b16 %v1055
        %v1064 = vunpack.c.l.b16 %v1056
        %v1065 = vrot.slane %v1061, 2
        %v1066 = vrot.slane %v1062, 1
        %v1067 = vsel %vm591, %v1066, %v1065
        %v1068 = vsel %vm594, %v1063, %v1067
        %v1069 = vrot.slane %v1064, 7
        %v1070 = vsel %vm597, %v1069, %v1068
        %v1071 = vpack.c.b16 %v1070, %v1070
        %1072 = vrot.lane.b32.xlu0 %v1071, 30
        %v1073 = vpop.permute.xlu0 %1072
        %1075 = vst.msk [vmem:[#allocation3 + $0x8] sm:$0x3] %vm1026, %v1073
        %v1076 = vld [vmem:[#allocation2] sm:$0x2]
        %v1077 = vld [vmem:[#allocation2 + $0xc] sm:$0x2]
        %v1078 = vld [vmem:[#allocation2 + $0x18] sm:$0x2]
        %v1079 = vld [vmem:[#allocation2 + $0x24] sm:$0x2]
        %v1084 = vunpack.c.l.b16 %v1076
        %v1085 = vunpack.c.l.b16 %v1077
        %v1086 = vunpack.c.l.b16 %v1078
        %v1087 = vunpack.c.l.b16 %v1079
        %v1088 = vrot.slane %v1084, 7
        %v1089 = vrot.slane %v1085, 6
        %v1090 = vsel %vm617, %v1089, %v1088
        %v1091 = vrot.slane %v1086, 5
        %v1092 = vsel %vm620, %v1091, %v1090
        %v1093 = vrot.slane %v1087, 4
        %v1094 = vsel %vm623, %v1093, %v1092
        %v1095 = vpack.c.b16 %v1094, %v1094
        %1096 = vrot.lane.b32.xlu0 %v1095, 32
        %v1097 = vpop.permute.xlu0 %1096
        %1099 = vst.msk [vmem:[#allocation3 + $0x8] sm:$0xc] %vm1051, %v1097
        %v1100 = vld [vmem:[#allocation2] sm:$0x2]
        %v1101 = vld [vmem:[#allocation2 + $0xc] sm:$0x2]
        %v1102 = vld [vmem:[#allocation2 + $0x18] sm:$0x2]
        %v1103 = vld [vmem:[#allocation2 + $0x24] sm:$0x2]
        %v1108 = vunpack.c.l.b16 %v1100
        %v1109 = vunpack.c.l.b16 %v1101
        %v1110 = vunpack.c.l.b16 %v1102
        %v1111 = vunpack.c.l.b16 %v1103
        %v1112 = vrot.slane %v1108, 3
        %v1113 = vrot.slane %v1109, 2
        %v1114 = vsel %vm591, %v1113, %v1112
        %v1115 = vrot.slane %v1110, 1
        %v1116 = vsel %vm594, %v1115, %v1114
        %v1117 = vsel %vm597, %v1111, %v1116
        %v1118 = vpack.c.b16 %v1117, %v1117
        %1119 = vrot.lane.b32.xlu0 %v1118, 31
        %v1120 = vpop.permute.xlu0 %1119
        %1122 = vst.msk [vmem:[#allocation3 + $0x10] sm:$0x3] %vm1026, %v1120
        %v1123 = vld [vmem:[#allocation2] sm:$0x2]
        %v1124 = vld [vmem:[#allocation2 + $0xc] sm:$0x2]
        %v1125 = vld [vmem:[#allocation2 + $0x18] sm:$0x2]
        %v1126 = vld [vmem:[#allocation2 + $0x24] sm:$0x2]
        %v1131 = vunpack.c.l.b16 %v1123
        %v1132 = vunpack.c.l.b16 %v1124
        %v1133 = vunpack.c.l.b16 %v1125
        %v1134 = vunpack.c.l.b16 %v1126
        %v1135 = vrot.slane %v1131, 7
        %v1136 = vrot.slane %v1132, 6
        %v1137 = vsel %vm617, %v1136, %v1135
        %v1138 = vrot.slane %v1133, 5
        %v1139 = vsel %vm620, %v1138, %v1137
        %v1140 = vrot.slane %v1134, 4
        %v1141 = vsel %vm623, %v1140, %v1139
        %v1142 = vpack.c.b16 %v1141, %v1141
        %1143 = vrot.lane.b32.xlu0 %v1142, 30
        %v1144 = vpop.permute.xlu0 %1143
        %1146 = vst.msk [vmem:[#allocation3 + $0x10] sm:$0xc] %vm1051, %v1144
        %v1147 = vld [vmem:[#allocation2] sm:$0x4]
        %v1148 = vld [vmem:[#allocation2 + $0xc] sm:$0x4]
        %v1149 = vld [vmem:[#allocation2 + $0x18] sm:$0x4]
        %v1150 = vld [vmem:[#allocation2 + $0x24] sm:$0x4]
        %v1155 = vunpack.c.l.b16 %v1147
        %v1156 = vunpack.c.l.b16 %v1148
        %v1157 = vunpack.c.l.b16 %v1149
        %v1158 = vunpack.c.l.b16 %v1150
        %v1159 = vrot.slane %v1155, 4
        %v1160 = vrot.slane %v1156, 3
        %v1161 = vsel %vm591, %v1160, %v1159
        %v1162 = vrot.slane %v1157, 2
        %v1163 = vsel %vm594, %v1162, %v1161
        %v1164 = vrot.slane %v1158, 1
        %v1165 = vsel %vm597, %v1164, %v1163
        %v1166 = vpack.c.b16 %v1165, %v1165
        %1167 = vrot.lane.b32.xlu0 %v1166, 32
        %v1168 = vpop.permute.xlu0 %1167
        %1170 = vst.msk [vmem:[#allocation3 + $0x18] sm:$0x3] %vm1026, %v1168
        %v1171 = vld [vmem:[#allocation2] sm:$0x4]
        %v1172 = vld [vmem:[#allocation2 + $0xc] sm:$0x4]
        %v1173 = vld [vmem:[#allocation2 + $0x18] sm:$0x4]
        %v1174 = vld [vmem:[#allocation2 + $0x24] sm:$0x4]
        %v1179 = vunpack.c.l.b16 %v1171
        %v1180 = vunpack.c.l.b16 %v1172
        %v1181 = vunpack.c.l.b16 %v1173
        %v1182 = vunpack.c.l.b16 %v1174
        %v1183 = vrot.slane %v1180, 7
        %v1184 = vsel %vm617, %v1183, %v1179
        %v1185 = vrot.slane %v1181, 6
        %v1186 = vsel %vm620, %v1185, %v1184
        %v1187 = vrot.slane %v1182, 5
        %v1188 = vsel %vm623, %v1187, %v1186
        %v1189 = vpack.c.b16 %v1188, %v1188
        %1190 = vrot.lane.b32.xlu0 %v1189, 31
        %v1191 = vpop.permute.xlu0 %1190
        %1193 = vst.msk [vmem:[#allocation3 + $0x18] sm:$0xc] %vm1051, %v1191
        %v1194 = vld [vmem:[#allocation2] sm:$0x4]
        %v1195 = vld [vmem:[#allocation2 + $0xc] sm:$0x4]
        %v1196 = vld [vmem:[#allocation2 + $0x18] sm:$0x4]
        %v1197 = vld [vmem:[#allocation2 + $0x24] sm:$0x4]
        %v1202 = vunpack.c.l.b16 %v1194
        %v1203 = vunpack.c.l.b16 %v1195
        %v1204 = vunpack.c.l.b16 %v1196
        %v1205 = vunpack.c.l.b16 %v1197
        %v1206 = vrot.slane %v1202, 4
        %v1207 = vrot.slane %v1203, 3
        %v1208 = vsel %vm591, %v1207, %v1206
        %v1209 = vrot.slane %v1204, 2
        %v1210 = vsel %vm594, %v1209, %v1208
        %v1211 = vrot.slane %v1205, 1
        %v1212 = vsel %vm597, %v1211, %v1210
        %v1213 = vpack.c.b16 %v1212, %v1212
        %1214 = vrot.lane.b32.xlu0 %v1213, 30
        %v1215 = vpop.permute.xlu0 %1214
        %1217 = vst.msk [vmem:[#allocation3 + $0x20] sm:$0x3] %vm1026, %v1215
        %v1218 = vld [vmem:[#allocation2] sm:$0x2]
        %v1219 = vld [vmem:[#allocation2 + $0xc] sm:$0x2]
        %v1220 = vld [vmem:[#allocation2 + $0x18] sm:$0x2]
        %v1221 = vld [vmem:[#allocation2 + $0x24] sm:$0x2]
        %v1226 = vunpack.c.l.b16 %v1218
        %v1227 = vunpack.c.l.b16 %v1219
        %v1228 = vunpack.c.l.b16 %v1220
        %v1229 = vunpack.c.l.b16 %v1221
        %v1230 = vrot.slane %v1226, 3
        %v1231 = vrot.slane %v1227, 2
        %v1232 = vsel %vm591, %v1231, %v1230
        %v1233 = vrot.slane %v1228, 1
        %v1234 = vsel %vm594, %v1233, %v1232
        %v1235 = vsel %vm597, %v1229, %v1234
        %v1236 = vpack.c.b16 %v1235, %v1235
        %1237 = vrot.lane.b32.xlu0 %v1236, 48
        %v1238 = vpop.permute.xlu0 %1237
        %vm1240 = vcmask 517504
        %1241 = vst.msk [vmem:[#allocation3] sm:$0x3] %vm1240, %v1238
        %v1242 = vld [vmem:[#allocation2] sm:$0x2]
        %v1243 = vld [vmem:[#allocation2 + $0xc] sm:$0x2]
        %v1244 = vld [vmem:[#allocation2 + $0x18] sm:$0x2]
        %v1245 = vld [vmem:[#allocation2 + $0x24] sm:$0x2]
        %v1250 = vunpack.c.l.b16 %v1242
        %v1251 = vunpack.c.l.b16 %v1243
        %v1252 = vunpack.c.l.b16 %v1244
        %v1253 = vunpack.c.l.b16 %v1245
        %v1254 = vrot.slane %v1250, 7
        %v1255 = vrot.slane %v1251, 6
        %v1256 = vsel %vm617, %v1255, %v1254
        %v1257 = vrot.slane %v1252, 5
        %v1258 = vsel %vm620, %v1257, %v1256
        %v1259 = vrot.slane %v1253, 4
        %v1260 = vsel %vm623, %v1259, %v1258
        %v1261 = vpack.c.b16 %v1260, %v1260
        %1262 = vrot.lane.b32.xlu0 %v1261, 47
        %v1263 = vpop.permute.xlu0 %1262
        %vm1265 = vcmask 519554
        %1266 = vst.msk [vmem:[#allocation3] sm:$0xc] %vm1265, %v1263
        %v1267 = vld [vmem:[#allocation2] sm:$0x2]
        %v1268 = vld [vmem:[#allocation2 + $0xc] sm:$0x2]
        %v1269 = vld [vmem:[#allocation2 + $0x18] sm:$0x2]
        %v1270 = vld [vmem:[#allocation2 + $0x24] sm:$0x2]
        %v1275 = vunpack.c.l.b16 %v1267
        %v1276 = vunpack.c.l.b16 %v1268
        %v1277 = vunpack.c.l.b16 %v1269
        %v1278 = vunpack.c.l.b16 %v1270
        %v1279 = vrot.slane %v1275, 3
        %v1280 = vrot.slane %v1276, 2
        %v1281 = vsel %vm591, %v1280, %v1279
        %v1282 = vrot.slane %v1277, 1
        %v1283 = vsel %vm594, %v1282, %v1281
        %v1284 = vsel %vm597, %v1278, %v1283
        %v1285 = vpack.c.b16 %v1284, %v1284
        %1286 = vrot.lane.b32.xlu0 %v1285, 46
        %v1287 = vpop.permute.xlu0 %1286
        %1289 = vst.msk [vmem:[#allocation3 + $0x8] sm:$0x3] %vm1240, %v1287
        %v1290 = vld [vmem:[#allocation2] sm:$0x4]
        %v1291 = vld [vmem:[#allocation2 + $0xc] sm:$0x4]
        %v1292 = vld [vmem:[#allocation2 + $0x18] sm:$0x4]
        %v1293 = vld [vmem:[#allocation2 + $0x24] sm:$0x4]
        %v1298 = vunpack.c.l.b16 %v1290
        %v1299 = vunpack.c.l.b16 %v1291
        %v1300 = vunpack.c.l.b16 %v1292
        %v1301 = vunpack.c.l.b16 %v1293
        %v1302 = vrot.slane %v1299, 7
        %v1303 = vsel %vm617, %v1302, %v1298
        %v1304 = vrot.slane %v1300, 6
        %v1305 = vsel %vm620, %v1304, %v1303
        %v1306 = vrot.slane %v1301, 5
        %v1307 = vsel %vm623, %v1306, %v1305
        %v1308 = vpack.c.b16 %v1307, %v1307
        %1309 = vrot.lane.b32.xlu0 %v1308, 48
        %v1310 = vpop.permute.xlu0 %1309
        %1312 = vst.msk [vmem:[#allocation3 + $0x8] sm:$0xc] %vm1265, %v1310
        %v1313 = vld [vmem:[#allocation2] sm:$0x4]
        %v1314 = vld [vmem:[#allocation2 + $0xc] sm:$0x4]
        %v1315 = vld [vmem:[#allocation2 + $0x18] sm:$0x4]
        %v1316 = vld [vmem:[#allocation2 + $0x24] sm:$0x4]
        %v1321 = vunpack.c.l.b16 %v1313
        %v1322 = vunpack.c.l.b16 %v1314
        %v1323 = vunpack.c.l.b16 %v1315
        %v1324 = vunpack.c.l.b16 %v1316
        %v1325 = vrot.slane %v1321, 4
        %v1326 = vrot.slane %v1322, 3
        %v1327 = vsel %vm591, %v1326, %v1325
        %v1328 = vrot.slane %v1323, 2
        %v1329 = vsel %vm594, %v1328, %v1327
        %v1330 = vrot.slane %v1324, 1
        %v1331 = vsel %vm597, %v1330, %v1329
        %v1332 = vpack.c.b16 %v1331, %v1331
        %1333 = vrot.lane.b32.xlu0 %v1332, 47
        %v1334 = vpop.permute.xlu0 %1333
        %1336 = vst.msk [vmem:[#allocation3 + $0x10] sm:$0x3] %vm1240, %v1334
        %v1337 = vld [vmem:[#allocation2] sm:$0x4]
        %v1338 = vld [vmem:[#allocation2 + $0xc] sm:$0x4]
        %v1339 = vld [vmem:[#allocation2 + $0x18] sm:$0x4]
        %v1340 = vld [vmem:[#allocation2 + $0x24] sm:$0x4]
        %v1345 = vunpack.c.l.b16 %v1337
        %v1346 = vunpack.c.l.b16 %v1338
        %v1347 = vunpack.c.l.b16 %v1339
        %v1348 = vunpack.c.l.b16 %v1340
        %v1349 = vrot.slane %v1346, 7
        %v1350 = vsel %vm617, %v1349, %v1345
        %v1351 = vrot.slane %v1347, 6
        %v1352 = vsel %vm620, %v1351, %v1350
        %v1353 = vrot.slane %v1348, 5
        %v1354 = vsel %vm623, %v1353, %v1352
        %v1355 = vpack.c.b16 %v1354, %v1354
        %1356 = vrot.lane.b32.xlu0 %v1355, 46
        %v1357 = vpop.permute.xlu0 %1356
        %1359 = vst.msk [vmem:[#allocation3 + $0x10] sm:$0xc] %vm1265, %v1357
        %v1360 = vld [vmem:[#allocation2] sm:$0x4]
        %v1361 = vld [vmem:[#allocation2 + $0xc] sm:$0x4]
        %v1362 = vld [vmem:[#allocation2 + $0x18] sm:$0x4]
        %v1363 = vld [vmem:[#allocation2 + $0x24] sm:$0x4]
        %v1368 = vunpack.c.l.b16 %v1360
        %v1369 = vunpack.c.l.b16 %v1361
        %v1370 = vunpack.c.l.b16 %v1362
        %v1371 = vunpack.c.l.b16 %v1363
        %v1372 = vrot.slane %v1368, 5
        %v1373 = vrot.slane %v1369, 4
        %v1374 = vsel %vm591, %v1373, %v1372
        %v1375 = vrot.slane %v1370, 3
        %v1376 = vsel %vm594, %v1375, %v1374
        %v1377 = vrot.slane %v1371, 2
        %v1378 = vsel %vm597, %v1377, %v1376
        %v1379 = vpack.c.b16 %v1378, %v1378
        %1380 = vrot.lane.b32.xlu0 %v1379, 48
        %v1381 = vpop.permute.xlu0 %1380
        %1383 = vst.msk [vmem:[#allocation3 + $0x18] sm:$0x3] %vm1240, %v1381
        %v1384 = vld [vmem:[#allocation2] sm:$0x4]
        %v1385 = vld [vmem:[#allocation2 + $0xc] sm:$0x4]
        %v1386 = vld [vmem:[#allocation2 + $0x18] sm:$0x4]
        %v1387 = vld [vmem:[#allocation2 + $0x24] sm:$0x4]
        %v1392 = vunpack.c.l.b16 %v1384
        %v1393 = vunpack.c.l.b16 %v1385
        %v1394 = vunpack.c.l.b16 %v1386
        %v1395 = vunpack.c.l.b16 %v1387
        %v1396 = vrot.slane %v1392, 1
        %v1397 = vsel %vm617, %v1393, %v1396
        %v1398 = vrot.slane %v1394, 7
        %v1399 = vsel %vm620, %v1398, %v1397
        %v1400 = vrot.slane %v1395, 6
        %v1401 = vsel %vm623, %v1400, %v1399
        %v1402 = vpack.c.b16 %v1401, %v1401
        %1403 = vrot.lane.b32.xlu0 %v1402, 47
        %v1404 = vpop.permute.xlu0 %1403
        %1406 = vst.msk [vmem:[#allocation3 + $0x18] sm:$0xc] %vm1265, %v1404
        %v1407 = vld [vmem:[#allocation2] sm:$0x4]
        %v1408 = vld [vmem:[#allocation2 + $0xc] sm:$0x4]
        %v1409 = vld [vmem:[#allocation2 + $0x18] sm:$0x4]
        %v1410 = vld [vmem:[#allocation2 + $0x24] sm:$0x4]
        %v1415 = vunpack.c.l.b16 %v1407
        %v1416 = vunpack.c.l.b16 %v1408
        %v1417 = vunpack.c.l.b16 %v1409
        %v1418 = vunpack.c.l.b16 %v1410
        %v1419 = vrot.slane %v1415, 5
        %v1420 = vrot.slane %v1416, 4
        %v1421 = vsel %vm591, %v1420, %v1419
        %v1422 = vrot.slane %v1417, 3
        %v1423 = vsel %vm594, %v1422, %v1421
        %v1424 = vrot.slane %v1418, 2
        %v1425 = vsel %vm597, %v1424, %v1423
        %v1426 = vpack.c.b16 %v1425, %v1425
        %1427 = vrot.lane.b32.xlu0 %v1426, 46
        %v1428 = vpop.permute.xlu0 %1427
        %1430 = vst.msk [vmem:[#allocation3 + $0x20] sm:$0x3] %vm1240, %v1428
        %v1431 = vld [vmem:[#allocation2] sm:$0x4]
        %v1432 = vld [vmem:[#allocation2 + $0xc] sm:$0x4]
        %v1433 = vld [vmem:[#allocation2 + $0x18] sm:$0x4]
        %v1434 = vld [vmem:[#allocation2 + $0x24] sm:$0x4]
        %v1439 = vunpack.c.l.b16 %v1431
        %v1440 = vunpack.c.l.b16 %v1432
        %v1441 = vunpack.c.l.b16 %v1433
        %v1442 = vunpack.c.l.b16 %v1434
        %v1443 = vrot.slane %v1439, 4
        %v1444 = vrot.slane %v1440, 3
        %v1445 = vsel %vm591, %v1444, %v1443
        %v1446 = vrot.slane %v1441, 2
        %v1447 = vsel %vm594, %v1446, %v1445
        %v1448 = vrot.slane %v1442, 1
        %v1449 = vsel %vm597, %v1448, %v1447
        %v1450 = vpack.c.b16 %v1449, %v1449
        %1451 = vrot.lane.b32.xlu0 %v1450, 64
        %v1452 = vpop.permute.xlu0 %1451
        %vm1454 = vcmask 648704
        %1455 = vst.msk [vmem:[#allocation3] sm:$0x3] %vm1454, %v1452
        %v1456 = vld [vmem:[#allocation2] sm:$0x4]
        %v1457 = vld [vmem:[#allocation2 + $0xc] sm:$0x4]
        %v1458 = vld [vmem:[#allocation2 + $0x18] sm:$0x4]
        %v1459 = vld [vmem:[#allocation2 + $0x24] sm:$0x4]
        %v1464 = vunpack.c.l.b16 %v1456
        %v1465 = vunpack.c.l.b16 %v1457
        %v1466 = vunpack.c.l.b16 %v1458
        %v1467 = vunpack.c.l.b16 %v1459
        %v1468 = vrot.slane %v1465, 7
        %v1469 = vsel %vm617, %v1468, %v1464
        %v1470 = vrot.slane %v1466, 6
        %v1471 = vsel %vm620, %v1470, %v1469
        %v1472 = vrot.slane %v1467, 5
        %v1473 = vsel %vm623, %v1472, %v1471
        %v1474 = vpack.c.b16 %v1473, %v1473
        %1475 = vrot.lane.b32.xlu0 %v1474, 63
        %v1476 = vpop.permute.xlu0 %1475
        %vm1478 = vcmask 650754
        %1479 = vst.msk [vmem:[#allocation3] sm:$0xc] %vm1478, %v1476
        %v1480 = vld [vmem:[#allocation2] sm:$0x4]
        %v1481 = vld [vmem:[#allocation2 + $0xc] sm:$0x4]
        %v1482 = vld [vmem:[#allocation2 + $0x18] sm:$0x4]
        %v1483 = vld [vmem:[#allocation2 + $0x24] sm:$0x4]
        %v1488 = vunpack.c.l.b16 %v1480
        %v1489 = vunpack.c.l.b16 %v1481
        %v1490 = vunpack.c.l.b16 %v1482
        %v1491 = vunpack.c.l.b16 %v1483
        %v1492 = vrot.slane %v1488, 4
        %v1493 = vrot.slane %v1489, 3
        %v1494 = vsel %vm591, %v1493, %v1492
        %v1495 = vrot.slane %v1490, 2
        %v1496 = vsel %vm594, %v1495, %v1494
        %v1497 = vrot.slane %v1491, 1
        %v1498 = vsel %vm597, %v1497, %v1496
        %v1499 = vpack.c.b16 %v1498, %v1498
        %1500 = vrot.lane.b32.xlu0 %v1499, 62
        %v1501 = vpop.permute.xlu0 %1500
        %1503 = vst.msk [vmem:[#allocation3 + $0x8] sm:$0x3] %vm1454, %v1501
        %v1504 = vld [vmem:[#allocation2] sm:$0x4]
        %v1505 = vld [vmem:[#allocation2 + $0xc] sm:$0x4]
        %v1506 = vld [vmem:[#allocation2 + $0x18] sm:$0x4]
        %v1507 = vld [vmem:[#allocation2 + $0x24] sm:$0x4]
        %v1512 = vunpack.c.l.b16 %v1504
        %v1513 = vunpack.c.l.b16 %v1505
        %v1514 = vunpack.c.l.b16 %v1506
        %v1515 = vunpack.c.l.b16 %v1507
        %v1516 = vrot.slane %v1512, 1
        %v1517 = vsel %vm617, %v1513, %v1516
        %v1518 = vrot.slane %v1514, 7
        %v1519 = vsel %vm620, %v1518, %v1517
        %v1520 = vrot.slane %v1515, 6
        %v1521 = vsel %vm623, %v1520, %v1519
        %v1522 = vpack.c.b16 %v1521, %v1521
        %1523 = vrot.lane.b32.xlu0 %v1522, 64
        %v1524 = vpop.permute.xlu0 %1523
        %1526 = vst.msk [vmem:[#allocation3 + $0x8] sm:$0xc] %vm1478, %v1524
        %v1527 = vld [vmem:[#allocation2] sm:$0x4]
        %v1528 = vld [vmem:[#allocation2 + $0xc] sm:$0x4]
        %v1529 = vld [vmem:[#allocation2 + $0x18] sm:$0x4]
        %v1530 = vld [vmem:[#allocation2 + $0x24] sm:$0x4]
        %v1535 = vunpack.c.l.b16 %v1527
        %v1536 = vunpack.c.l.b16 %v1528
        %v1537 = vunpack.c.l.b16 %v1529
        %v1538 = vunpack.c.l.b16 %v1530
        %v1539 = vrot.slane %v1535, 5
        %v1540 = vrot.slane %v1536, 4
        %v1541 = vsel %vm591, %v1540, %v1539
        %v1542 = vrot.slane %v1537, 3
        %v1543 = vsel %vm594, %v1542, %v1541
        %v1544 = vrot.slane %v1538, 2
        %v1545 = vsel %vm597, %v1544, %v1543
        %v1546 = vpack.c.b16 %v1545, %v1545
        %1547 = vrot.lane.b32.xlu0 %v1546, 63
        %v1548 = vpop.permute.xlu0 %1547
        %1550 = vst.msk [vmem:[#allocation3 + $0x10] sm:$0x3] %vm1454, %v1548
        %v1551 = vld [vmem:[#allocation2] sm:$0x4]
        %v1552 = vld [vmem:[#allocation2 + $0xc] sm:$0x4]
        %v1553 = vld [vmem:[#allocation2 + $0x18] sm:$0x4]
        %v1554 = vld [vmem:[#allocation2 + $0x24] sm:$0x4]
        %v1559 = vunpack.c.l.b16 %v1551
        %v1560 = vunpack.c.l.b16 %v1552
        %v1561 = vunpack.c.l.b16 %v1553
        %v1562 = vunpack.c.l.b16 %v1554
        %v1563 = vrot.slane %v1559, 1
        %v1564 = vsel %vm617, %v1560, %v1563
        %v1565 = vrot.slane %v1561, 7
        %v1566 = vsel %vm620, %v1565, %v1564
        %v1567 = vrot.slane %v1562, 6
        %v1568 = vsel %vm623, %v1567, %v1566
        %v1569 = vpack.c.b16 %v1568, %v1568
        %1570 = vrot.lane.b32.xlu0 %v1569, 62
        %v1571 = vpop.permute.xlu0 %1570
        %1573 = vst.msk [vmem:[#allocation3 + $0x10] sm:$0xc] %vm1478, %v1571
        %v1574 = vld [vmem:[#allocation2] sm:$0x8]
        %v1575 = vld [vmem:[#allocation2 + $0xc] sm:$0x8]
        %v1576 = vld [vmem:[#allocation2 + $0x18] sm:$0x8]
        %v1577 = vld [vmem:[#allocation2 + $0x24] sm:$0x8]
        %v1582 = vunpack.c.l.b16 %v1574
        %v1583 = vunpack.c.l.b16 %v1575
        %v1584 = vunpack.c.l.b16 %v1576
        %v1585 = vunpack.c.l.b16 %v1577
        %v1586 = vrot.slane %v1582, 6
        %v1587 = vrot.slane %v1583, 5
        %v1588 = vsel %vm591, %v1587, %v1586
        %v1589 = vrot.slane %v1584, 4
        %v1590 = vsel %vm594, %v1589, %v1588
        %v1591 = vrot.slane %v1585, 3
        %v1592 = vsel %vm597, %v1591, %v1590
        %v1593 = vpack.c.b16 %v1592, %v1592
        %1594 = vrot.lane.b32.xlu0 %v1593, 64
        %v1595 = vpop.permute.xlu0 %1594
        %1597 = vst.msk [vmem:[#allocation3 + $0x18] sm:$0x3] %vm1454, %v1595
        %v1598 = vld [vmem:[#allocation2] sm:$0x8]
        %v1599 = vld [vmem:[#allocation2 + $0xc] sm:$0x8]
        %v1600 = vld [vmem:[#allocation2 + $0x18] sm:$0x8]
        %v1601 = vld [vmem:[#allocation2 + $0x24] sm:$0x8]
        %v1606 = vunpack.c.l.b16 %v1598
        %v1607 = vunpack.c.l.b16 %v1599
        %v1608 = vunpack.c.l.b16 %v1600
        %v1609 = vunpack.c.l.b16 %v1601
        %v1610 = vrot.slane %v1606, 2
        %v1611 = vrot.slane %v1607, 1
        %v1612 = vsel %vm617, %v1611, %v1610
        %v1613 = vsel %vm620, %v1608, %v1612
        %v1614 = vrot.slane %v1609, 7
        %v1615 = vsel %vm623, %v1614, %v1613
        %v1616 = vpack.c.b16 %v1615, %v1615
        %1617 = vrot.lane.b32.xlu0 %v1616, 63
        %v1618 = vpop.permute.xlu0 %1617
        %1620 = vst.msk [vmem:[#allocation3 + $0x18] sm:$0xc] %vm1478, %v1618
        %v1621 = vld [vmem:[#allocation2] sm:$0x8]
        %v1622 = vld [vmem:[#allocation2 + $0xc] sm:$0x8]
        %v1623 = vld [vmem:[#allocation2 + $0x18] sm:$0x8]
        %v1624 = vld [vmem:[#allocation2 + $0x24] sm:$0x8]
        %v1629 = vunpack.c.l.b16 %v1621
        %v1630 = vunpack.c.l.b16 %v1622
        %v1631 = vunpack.c.l.b16 %v1623
        %v1632 = vunpack.c.l.b16 %v1624
        %v1633 = vrot.slane %v1629, 6
        %v1634 = vrot.slane %v1630, 5
        %v1635 = vsel %vm591, %v1634, %v1633
        %v1636 = vrot.slane %v1631, 4
        %v1637 = vsel %vm594, %v1636, %v1635
        %v1638 = vrot.slane %v1632, 3
        %v1639 = vsel %vm597, %v1638, %v1637
        %v1640 = vpack.c.b16 %v1639, %v1639
        %1641 = vrot.lane.b32.xlu0 %v1640, 62
        %v1642 = vpop.permute.xlu0 %1641
        %1644 = vst.msk [vmem:[#allocation3 + $0x20] sm:$0x3] %vm1454, %v1642
        %v1645 = vld [vmem:[#allocation2] sm:$0x4]
        %v1646 = vld [vmem:[#allocation2 + $0xc] sm:$0x4]
        %v1647 = vld [vmem:[#allocation2 + $0x18] sm:$0x4]
        %v1648 = vld [vmem:[#allocation2 + $0x24] sm:$0x4]
        %v1653 = vunpack.c.l.b16 %v1645
        %v1654 = vunpack.c.l.b16 %v1646
        %v1655 = vunpack.c.l.b16 %v1647
        %v1656 = vunpack.c.l.b16 %v1648
        %v1657 = vrot.slane %v1653, 5
        %v1658 = vrot.slane %v1654, 4
        %v1659 = vsel %vm591, %v1658, %v1657
        %v1660 = vrot.slane %v1655, 3
        %v1661 = vsel %vm594, %v1660, %v1659
        %v1662 = vrot.slane %v1656, 2
        %v1663 = vsel %vm597, %v1662, %v1661
        %v1664 = vpack.c.b16 %v1663, %v1663
        %1665 = vrot.lane.b32.xlu0 %v1664, 80
        %v1666 = vpop.permute.xlu0 %1665
        %vm1668 = vcmask 779904
        %1669 = vst.msk [vmem:[#allocation3] sm:$0x3] %vm1668, %v1666
        %v1670 = vld [vmem:[#allocation2] sm:$0x4]
        %v1671 = vld [vmem:[#allocation2 + $0xc] sm:$0x4]
        %v1672 = vld [vmem:[#allocation2 + $0x18] sm:$0x4]
        %v1673 = vld [vmem:[#allocation2 + $0x24] sm:$0x4]
        %v1678 = vunpack.c.l.b16 %v1670
        %v1679 = vunpack.c.l.b16 %v1671
        %v1680 = vunpack.c.l.b16 %v1672
        %v1681 = vunpack.c.l.b16 %v1673
        %v1682 = vrot.slane %v1678, 1
        %v1683 = vsel %vm617, %v1679, %v1682
        %v1684 = vrot.slane %v1680, 7
        %v1685 = vsel %vm620, %v1684, %v1683
        %v1686 = vrot.slane %v1681, 6
        %v1687 = vsel %vm623, %v1686, %v1685
        %v1688 = vpack.c.b16 %v1687, %v1687
        %1689 = vrot.lane.b32.xlu0 %v1688, 79
        %v1690 = vpop.permute.xlu0 %1689
        %vm1692 = vcmask 781954
        %1693 = vst.msk [vmem:[#allocation3] sm:$0xc] %vm1692, %v1690
        %v1694 = vld [vmem:[#allocation2] sm:$0x4]
        %v1695 = vld [vmem:[#allocation2 + $0xc] sm:$0x4]
        %v1696 = vld [vmem:[#allocation2 + $0x18] sm:$0x4]
        %v1697 = vld [vmem:[#allocation2 + $0x24] sm:$0x4]
        %v1702 = vunpack.c.l.b16 %v1694
        %v1703 = vunpack.c.l.b16 %v1695
        %v1704 = vunpack.c.l.b16 %v1696
        %v1705 = vunpack.c.l.b16 %v1697
        %v1706 = vrot.slane %v1702, 5
        %v1707 = vrot.slane %v1703, 4
        %v1708 = vsel %vm591, %v1707, %v1706
        %v1709 = vrot.slane %v1704, 3
        %v1710 = vsel %vm594, %v1709, %v1708
        %v1711 = vrot.slane %v1705, 2
        %v1712 = vsel %vm597, %v1711, %v1710
        %v1713 = vpack.c.b16 %v1712, %v1712
        %1714 = vrot.lane.b32.xlu0 %v1713, 78
        %v1715 = vpop.permute.xlu0 %1714
        %1717 = vst.msk [vmem:[#allocation3 + $0x8] sm:$0x3] %vm1668, %v1715
        %v1718 = vld [vmem:[#allocation2] sm:$0x8]
        %v1719 = vld [vmem:[#allocation2 + $0xc] sm:$0x8]
        %v1720 = vld [vmem:[#allocation2 + $0x18] sm:$0x8]
        %v1721 = vld [vmem:[#allocation2 + $0x24] sm:$0x8]
        %v1726 = vunpack.c.l.b16 %v1718
        %v1727 = vunpack.c.l.b16 %v1719
        %v1728 = vunpack.c.l.b16 %v1720
        %v1729 = vunpack.c.l.b16 %v1721
        %v1730 = vrot.slane %v1726, 2
        %v1731 = vrot.slane %v1727, 1
        %v1732 = vsel %vm617, %v1731, %v1730
        %v1733 = vsel %vm620, %v1728, %v1732
        %v1734 = vrot.slane %v1729, 7
        %v1735 = vsel %vm623, %v1734, %v1733
        %v1736 = vpack.c.b16 %v1735, %v1735
        %1737 = vrot.lane.b32.xlu0 %v1736, 80
        %v1738 = vpop.permute.xlu0 %1737
        %1740 = vst.msk [vmem:[#allocation3 + $0x8] sm:$0xc] %vm1692, %v1738
        %v1741 = vld [vmem:[#allocation2] sm:$0x8]
        %v1742 = vld [vmem:[#allocation2 + $0xc] sm:$0x8]
        %v1743 = vld [vmem:[#allocation2 + $0x18] sm:$0x8]
        %v1744 = vld [vmem:[#allocation2 + $0x24] sm:$0x8]
        %v1749 = vunpack.c.l.b16 %v1741
        %v1750 = vunpack.c.l.b16 %v1742
        %v1751 = vunpack.c.l.b16 %v1743
        %v1752 = vunpack.c.l.b16 %v1744
        %v1753 = vrot.slane %v1749, 6
        %v1754 = vrot.slane %v1750, 5
        %v1755 = vsel %vm591, %v1754, %v1753
        %v1756 = vrot.slane %v1751, 4
        %v1757 = vsel %vm594, %v1756, %v1755
        %v1758 = vrot.slane %v1752, 3
        %v1759 = vsel %vm597, %v1758, %v1757
        %v1760 = vpack.c.b16 %v1759, %v1759
        %1761 = vrot.lane.b32.xlu0 %v1760, 79
        %v1762 = vpop.permute.xlu0 %1761
        %1764 = vst.msk [vmem:[#allocation3 + $0x10] sm:$0x3] %vm1668, %v1762
        %v1765 = vld [vmem:[#allocation2] sm:$0x8]
        %v1766 = vld [vmem:[#allocation2 + $0xc] sm:$0x8]
        %v1767 = vld [vmem:[#allocation2 + $0x18] sm:$0x8]
        %v1768 = vld [vmem:[#allocation2 + $0x24] sm:$0x8]
        %v1773 = vunpack.c.l.b16 %v1765
        %v1774 = vunpack.c.l.b16 %v1766
        %v1775 = vunpack.c.l.b16 %v1767
        %v1776 = vunpack.c.l.b16 %v1768
        %v1777 = vrot.slane %v1773, 2
        %v1778 = vrot.slane %v1774, 1
        %v1779 = vsel %vm617, %v1778, %v1777
        %v1780 = vsel %vm620, %v1775, %v1779
        %v1781 = vrot.slane %v1776, 7
        %v1782 = vsel %vm623, %v1781, %v1780
        %v1783 = vpack.c.b16 %v1782, %v1782
        %1784 = vrot.lane.b32.xlu0 %v1783, 78
        %v1785 = vpop.permute.xlu0 %1784
        %1787 = vst.msk [vmem:[#allocation3 + $0x10] sm:$0xc] %vm1692, %v1785
        %v1788 = vld [vmem:[#allocation2] sm:$0x8]
        %v1789 = vld [vmem:[#allocation2 + $0xc] sm:$0x8]
        %v1790 = vld [vmem:[#allocation2 + $0x18] sm:$0x8]
        %v1791 = vld [vmem:[#allocation2 + $0x24] sm:$0x8]
        %v1796 = vunpack.c.l.b16 %v1788
        %v1797 = vunpack.c.l.b16 %v1789
        %v1798 = vunpack.c.l.b16 %v1790
        %v1799 = vunpack.c.l.b16 %v1791
        %v1800 = vrot.slane %v1796, 7
        %v1801 = vrot.slane %v1797, 6
        %v1802 = vsel %vm591, %v1801, %v1800
        %v1803 = vrot.slane %v1798, 5
        %v1804 = vsel %vm594, %v1803, %v1802
        %v1805 = vrot.slane %v1799, 4
        %v1806 = vsel %vm597, %v1805, %v1804
        %v1807 = vpack.c.b16 %v1806, %v1806
        %1808 = vrot.lane.b32.xlu0 %v1807, 80
        %v1809 = vpop.permute.xlu0 %1808
        %1811 = vst.msk [vmem:[#allocation3 + $0x18] sm:$0x3] %vm1668, %v1809
        %v1812 = vld [vmem:[#allocation2] sm:$0x8]
        %v1813 = vld [vmem:[#allocation2 + $0xc] sm:$0x8]
        %v1814 = vld [vmem:[#allocation2 + $0x18] sm:$0x8]
        %v1815 = vld [vmem:[#allocation2 + $0x24] sm:$0x8]
        %v1820 = vunpack.c.l.b16 %v1812
        %v1821 = vunpack.c.l.b16 %v1813
        %v1822 = vunpack.c.l.b16 %v1814
        %v1823 = vunpack.c.l.b16 %v1815
        %v1824 = vrot.slane %v1820, 3
        %v1825 = vrot.slane %v1821, 2
        %v1826 = vsel %vm617, %v1825, %v1824
        %v1827 = vrot.slane %v1822, 1
        %v1828 = vsel %vm620, %v1827, %v1826
        %v1829 = vsel %vm623, %v1823, %v1828
        %v1830 = vpack.c.b16 %v1829, %v1829
        %1831 = vrot.lane.b32.xlu0 %v1830, 79
        %v1832 = vpop.permute.xlu0 %1831
        %1834 = vst.msk [vmem:[#allocation3 + $0x18] sm:$0xc] %vm1692, %v1832
        %v1835 = vld [vmem:[#allocation2] sm:$0x8]
        %v1836 = vld [vmem:[#allocation2 + $0xc] sm:$0x8]
        %v1837 = vld [vmem:[#allocation2 + $0x18] sm:$0x8]
        %v1838 = vld [vmem:[#allocation2 + $0x24] sm:$0x8]
        %v1843 = vunpack.c.l.b16 %v1835
        %v1844 = vunpack.c.l.b16 %v1836
        %v1845 = vunpack.c.l.b16 %v1837
        %v1846 = vunpack.c.l.b16 %v1838
        %v1847 = vrot.slane %v1843, 7
        %v1848 = vrot.slane %v1844, 6
        %v1849 = vsel %vm591, %v1848, %v1847
        %v1850 = vrot.slane %v1845, 5
        %v1851 = vsel %vm594, %v1850, %v1849
        %v1852 = vrot.slane %v1846, 4
        %v1853 = vsel %vm597, %v1852, %v1851
        %v1854 = vpack.c.b16 %v1853, %v1853
        %1855 = vrot.lane.b32.xlu0 %v1854, 78
        %v1856 = vpop.permute.xlu0 %1855
        %1858 = vst.msk [vmem:[#allocation3 + $0x20] sm:$0x3] %vm1668, %v1856
        %v1859 = vld [vmem:[#allocation2] sm:$0x8]
        %v1860 = vld [vmem:[#allocation2 + $0xc] sm:$0x8]
        %v1861 = vld [vmem:[#allocation2 + $0x18] sm:$0x8]
        %v1862 = vld [vmem:[#allocation2 + $0x24] sm:$0x8]
        %v1867 = vunpack.c.l.b16 %v1859
        %v1868 = vunpack.c.l.b16 %v1860
        %v1869 = vunpack.c.l.b16 %v1861
        %v1870 = vunpack.c.l.b16 %v1862
        %v1871 = vrot.slane %v1867, 6
        %v1872 = vrot.slane %v1868, 5
        %v1873 = vsel %vm591, %v1872, %v1871
        %v1874 = vrot.slane %v1869, 4
        %v1875 = vsel %vm594, %v1874, %v1873
        %v1876 = vrot.slane %v1870, 3
        %v1877 = vsel %vm597, %v1876, %v1875
        %v1878 = vpack.c.b16 %v1877, %v1877
        %1879 = vrot.lane.b32.xlu0 %v1878, 96
        %v1880 = vpop.permute.xlu0 %1879
        %vm1882 = vcmask 911104
        %1883 = vst.msk [vmem:[#allocation3] sm:$0x3] %vm1882, %v1880
        %v1884 = vld [vmem:[#allocation2] sm:$0x8]
        %v1885 = vld [vmem:[#allocation2 + $0xc] sm:$0x8]
        %v1886 = vld [vmem:[#allocation2 + $0x18] sm:$0x8]
        %v1887 = vld [vmem:[#allocation2 + $0x24] sm:$0x8]
        %v1892 = vunpack.c.l.b16 %v1884
        %v1893 = vunpack.c.l.b16 %v1885
        %v1894 = vunpack.c.l.b16 %v1886
        %v1895 = vunpack.c.l.b16 %v1887
        %v1896 = vrot.slane %v1892, 2
        %v1897 = vrot.slane %v1893, 1
        %v1898 = vsel %vm617, %v1897, %v1896
        %v1899 = vsel %vm620, %v1894, %v1898
        %v1900 = vrot.slane %v1895, 7
        %v1901 = vsel %vm623, %v1900, %v1899
        %v1902 = vpack.c.b16 %v1901, %v1901
        %1903 = vrot.lane.b32.xlu0 %v1902, 95
        %v1904 = vpop.permute.xlu0 %1903
        %vm1906 = vcmask 913154
        %1907 = vst.msk [vmem:[#allocation3] sm:$0xc] %vm1906, %v1904
        %v1908 = vld [vmem:[#allocation2] sm:$0x8]
        %v1909 = vld [vmem:[#allocation2 + $0xc] sm:$0x8]
        %v1910 = vld [vmem:[#allocation2 + $0x18] sm:$0x8]
        %v1911 = vld [vmem:[#allocation2 + $0x24] sm:$0x8]
        %v1916 = vunpack.c.l.b16 %v1908
        %v1917 = vunpack.c.l.b16 %v1909
        %v1918 = vunpack.c.l.b16 %v1910
        %v1919 = vunpack.c.l.b16 %v1911
        %v1920 = vrot.slane %v1916, 6
        %v1921 = vrot.slane %v1917, 5
        %v1922 = vsel %vm591, %v1921, %v1920
        %v1923 = vrot.slane %v1918, 4
        %v1924 = vsel %vm594, %v1923, %v1922
        %v1925 = vrot.slane %v1919, 3
        %v1926 = vsel %vm597, %v1925, %v1924
        %v1927 = vpack.c.b16 %v1926, %v1926
        %1928 = vrot.lane.b32.xlu0 %v1927, 94
        %v1929 = vpop.permute.xlu0 %1928
        %1931 = vst.msk [vmem:[#allocation3 + $0x8] sm:$0x3] %vm1882, %v1929
        %v1932 = vld [vmem:[#allocation2] sm:$0x8]
        %v1933 = vld [vmem:[#allocation2 + $0xc] sm:$0x8]
        %v1934 = vld [vmem:[#allocation2 + $0x18] sm:$0x8]
        %v1935 = vld [vmem:[#allocation2 + $0x24] sm:$0x8]
        %v1940 = vunpack.c.l.b16 %v1932
        %v1941 = vunpack.c.l.b16 %v1933
        %v1942 = vunpack.c.l.b16 %v1934
        %v1943 = vunpack.c.l.b16 %v1935
        %v1944 = vrot.slane %v1940, 3
        %v1945 = vrot.slane %v1941, 2
        %v1946 = vsel %vm617, %v1945, %v1944
        %v1947 = vrot.slane %v1942, 1
        %v1948 = vsel %vm620, %v1947, %v1946
        %v1949 = vsel %vm623, %v1943, %v1948
        %v1950 = vpack.c.b16 %v1949, %v1949
        %1951 = vrot.lane.b32.xlu0 %v1950, 96
        %v1952 = vpop.permute.xlu0 %1951
        %1954 = vst.msk [vmem:[#allocation3 + $0x8] sm:$0xc] %vm1906, %v1952
        %v1955 = vld [vmem:[#allocation2] sm:$0x8]
        %v1956 = vld [vmem:[#allocation2 + $0xc] sm:$0x8]
        %v1957 = vld [vmem:[#allocation2 + $0x18] sm:$0x8]
        %v1958 = vld [vmem:[#allocation2 + $0x24] sm:$0x8]
        %v1963 = vunpack.c.l.b16 %v1955
        %v1964 = vunpack.c.l.b16 %v1956
        %v1965 = vunpack.c.l.b16 %v1957
        %v1966 = vunpack.c.l.b16 %v1958
        %v1967 = vrot.slane %v1963, 7
        %v1968 = vrot.slane %v1964, 6
        %v1969 = vsel %vm591, %v1968, %v1967
        %v1970 = vrot.slane %v1965, 5
        %v1971 = vsel %vm594, %v1970, %v1969
        %v1972 = vrot.slane %v1966, 4
        %v1973 = vsel %vm597, %v1972, %v1971
        %v1974 = vpack.c.b16 %v1973, %v1973
        %1975 = vrot.lane.b32.xlu0 %v1974, 95
        %v1976 = vpop.permute.xlu0 %1975
        %1978 = vst.msk [vmem:[#allocation3 + $0x10] sm:$0x3] %vm1882, %v1976
        %v1979 = vld [vmem:[#allocation2] sm:$0x8]
        %v1980 = vld [vmem:[#allocation2 + $0xc] sm:$0x8]
        %v1981 = vld [vmem:[#allocation2 + $0x18] sm:$0x8]
        %v1982 = vld [vmem:[#allocation2 + $0x24] sm:$0x8]
        %v1987 = vunpack.c.l.b16 %v1979
        %v1988 = vunpack.c.l.b16 %v1980
        %v1989 = vunpack.c.l.b16 %v1981
        %v1990 = vunpack.c.l.b16 %v1982
        %v1991 = vrot.slane %v1987, 3
        %v1992 = vrot.slane %v1988, 2
        %v1993 = vsel %vm617, %v1992, %v1991
        %v1994 = vrot.slane %v1989, 1
        %v1995 = vsel %vm620, %v1994, %v1993
        %v1996 = vsel %vm623, %v1990, %v1995
        %v1997 = vpack.c.b16 %v1996, %v1996
        %1998 = vrot.lane.b32.xlu0 %v1997, 94
        %v1999 = vpop.permute.xlu0 %1998
        %2001 = vst.msk [vmem:[#allocation3 + $0x10] sm:$0xc] %vm1906, %v1999
        %v2002 = vld [vmem:[#allocation2 + $0x4] sm:$0x1]
        %v2003 = vld [vmem:[#allocation2 + $0x10] sm:$0x1]
        %v2004 = vld [vmem:[#allocation2 + $0x1c] sm:$0x1]
        %v2005 = vld [vmem:[#allocation2 + $0x28] sm:$0x1]
        %v2010 = vunpack.c.l.b16 %v2002
        %v2011 = vunpack.c.l.b16 %v2003
        %v2012 = vunpack.c.l.b16 %v2004
        %v2013 = vunpack.c.l.b16 %v2005
        %v2014 = vrot.slane %v2011, 7
        %v2015 = vsel %vm591, %v2014, %v2010
        %v2016 = vrot.slane %v2012, 6
        %v2017 = vsel %vm594, %v2016, %v2015
        %v2018 = vrot.slane %v2013, 5
        %v2019 = vsel %vm597, %v2018, %v2017
        %v2020 = vpack.c.b16 %v2019, %v2019
        %2021 = vrot.lane.b32.xlu0 %v2020, 96
        %v2022 = vpop.permute.xlu0 %2021
        %2024 = vst.msk [vmem:[#allocation3 + $0x18] sm:$0x3] %vm1882, %v2022
        %v2025 = vld [vmem:[#allocation2 + $0x4] sm:$0x1]
        %v2026 = vld [vmem:[#allocation2 + $0x10] sm:$0x1]
        %v2027 = vld [vmem:[#allocation2 + $0x1c] sm:$0x1]
        %v2028 = vld [vmem:[#allocation2 + $0x28] sm:$0x1]
        %v2033 = vunpack.c.l.b16 %v2025
        %v2034 = vunpack.c.l.b16 %v2026
        %v2035 = vunpack.c.l.b16 %v2027
        %v2036 = vunpack.c.l.b16 %v2028
        %v2037 = vrot.slane %v2033, 4
        %v2038 = vrot.slane %v2034, 3
        %v2039 = vsel %vm617, %v2038, %v2037
        %v2040 = vrot.slane %v2035, 2
        %v2041 = vsel %vm620, %v2040, %v2039
        %v2042 = vrot.slane %v2036, 1
        %v2043 = vsel %vm623, %v2042, %v2041
        %v2044 = vpack.c.b16 %v2043, %v2043
        %2045 = vrot.lane.b32.xlu0 %v2044, 95
        %v2046 = vpop.permute.xlu0 %2045
        %2048 = vst.msk [vmem:[#allocation3 + $0x18] sm:$0xc] %vm1906, %v2046
        %v2049 = vld [vmem:[#allocation2 + $0x4] sm:$0x1]
        %v2050 = vld [vmem:[#allocation2 + $0x10] sm:$0x1]
        %v2051 = vld [vmem:[#allocation2 + $0x1c] sm:$0x1]
        %v2052 = vld [vmem:[#allocation2 + $0x28] sm:$0x1]
        %v2057 = vunpack.c.l.b16 %v2049
        %v2058 = vunpack.c.l.b16 %v2050
        %v2059 = vunpack.c.l.b16 %v2051
        %v2060 = vunpack.c.l.b16 %v2052
        %v2061 = vrot.slane %v2058, 7
        %v2062 = vsel %vm591, %v2061, %v2057
        %v2063 = vrot.slane %v2059, 6
        %v2064 = vsel %vm594, %v2063, %v2062
        %v2065 = vrot.slane %v2060, 5
        %v2066 = vsel %vm597, %v2065, %v2064
        %v2067 = vpack.c.b16 %v2066, %v2066
        %2068 = vrot.lane.b32.xlu0 %v2067, 94
        %v2069 = vpop.permute.xlu0 %2068
        %2071 = vst.msk [vmem:[#allocation3 + $0x20] sm:$0x3] %vm1882, %v2069
        %v2072 = vld [vmem:[#allocation2] sm:$0x8]
        %v2073 = vld [vmem:[#allocation2 + $0xc] sm:$0x8]
        %v2074 = vld [vmem:[#allocation2 + $0x18] sm:$0x8]
        %v2075 = vld [vmem:[#allocation2 + $0x24] sm:$0x8]
        %v2080 = vunpack.c.l.b16 %v2072
        %v2081 = vunpack.c.l.b16 %v2073
        %v2082 = vunpack.c.l.b16 %v2074
        %v2083 = vunpack.c.l.b16 %v2075
        %v2084 = vrot.slane %v2080, 7
        %v2085 = vrot.slane %v2081, 6
        %v2086 = vsel %vm591, %v2085, %v2084
        %v2087 = vrot.slane %v2082, 5
        %v2088 = vsel %vm594, %v2087, %v2086
        %v2089 = vrot.slane %v2083, 4
        %v2090 = vsel %vm597, %v2089, %v2088
        %v2091 = vpack.c.b16 %v2090, %v2090
        %2092 = vrot.lane.b32.xlu0 %v2091, 112
        %v2093 = vpop.permute.xlu0 %2092
        %vm2095 = vcmask 1042304
        %2096 = vst.msk [vmem:[#allocation3] sm:$0x3] %vm2095, %v2093
        %v2097 = vld [vmem:[#allocation2] sm:$0x8]
        %v2098 = vld [vmem:[#allocation2 + $0xc] sm:$0x8]
        %v2099 = vld [vmem:[#allocation2 + $0x18] sm:$0x8]
        %v2100 = vld [vmem:[#allocation2 + $0x24] sm:$0x8]
        %v2105 = vunpack.c.l.b16 %v2097
        %v2106 = vunpack.c.l.b16 %v2098
        %v2107 = vunpack.c.l.b16 %v2099
        %v2108 = vunpack.c.l.b16 %v2100
        %v2109 = vrot.slane %v2105, 3
        %v2110 = vrot.slane %v2106, 2
        %v2111 = vsel %vm617, %v2110, %v2109
        %v2112 = vrot.slane %v2107, 1
        %v2113 = vsel %vm620, %v2112, %v2111
        %v2114 = vsel %vm623, %v2108, %v2113
        %v2115 = vpack.c.b16 %v2114, %v2114
        %2116 = vrot.lane.b32.xlu0 %v2115, 111
        %v2117 = vpop.permute.xlu0 %2116
        %vm2119 = vcmask 1044354
        %2120 = vst.msk [vmem:[#allocation3] sm:$0xc] %vm2119, %v2117
        %v2121 = vld [vmem:[#allocation2] sm:$0x8]
        %v2122 = vld [vmem:[#allocation2 + $0xc] sm:$0x8]
        %v2123 = vld [vmem:[#allocation2 + $0x18] sm:$0x8]
        %v2124 = vld [vmem:[#allocation2 + $0x24] sm:$0x8]
        %v2129 = vunpack.c.l.b16 %v2121
        %v2130 = vunpack.c.l.b16 %v2122
        %v2131 = vunpack.c.l.b16 %v2123
        %v2132 = vunpack.c.l.b16 %v2124
        %v2133 = vrot.slane %v2129, 7
        %v2134 = vrot.slane %v2130, 6
        %v2135 = vsel %vm591, %v2134, %v2133
        %v2136 = vrot.slane %v2131, 5
        %v2137 = vsel %vm594, %v2136, %v2135
        %v2138 = vrot.slane %v2132, 4
        %v2139 = vsel %vm597, %v2138, %v2137
        %v2140 = vpack.c.b16 %v2139, %v2139
        %2141 = vrot.lane.b32.xlu0 %v2140, 110
        %v2142 = vpop.permute.xlu0 %2141
        %2144 = vst.msk [vmem:[#allocation3 + $0x8] sm:$0x3] %vm2095, %v2142
        %v2145 = vld [vmem:[#allocation2 + $0x4] sm:$0x1]
        %v2146 = vld [vmem:[#allocation2 + $0x10] sm:$0x1]
        %v2147 = vld [vmem:[#allocation2 + $0x1c] sm:$0x1]
        %v2148 = vld [vmem:[#allocation2 + $0x28] sm:$0x1]
        %v2153 = vunpack.c.l.b16 %v2145
        %v2154 = vunpack.c.l.b16 %v2146
        %v2155 = vunpack.c.l.b16 %v2147
        %v2156 = vunpack.c.l.b16 %v2148
        %v2157 = vrot.slane %v2153, 4
        %v2158 = vrot.slane %v2154, 3
        %v2159 = vsel %vm617, %v2158, %v2157
        %v2160 = vrot.slane %v2155, 2
        %v2161 = vsel %vm620, %v2160, %v2159
        %v2162 = vrot.slane %v2156, 1
        %v2163 = vsel %vm623, %v2162, %v2161
        %v2164 = vpack.c.b16 %v2163, %v2163
        %2165 = vrot.lane.b32.xlu0 %v2164, 112
        %v2166 = vpop.permute.xlu0 %2165
        %2168 = vst.msk [vmem:[#allocation3 + $0x8] sm:$0xc] %vm2119, %v2166
        %v2169 = vld [vmem:[#allocation2 + $0x4] sm:$0x1]
        %v2170 = vld [vmem:[#allocation2 + $0x10] sm:$0x1]
        %v2171 = vld [vmem:[#allocation2 + $0x1c] sm:$0x1]
        %v2172 = vld [vmem:[#allocation2 + $0x28] sm:$0x1]
        %v2177 = vunpack.c.l.b16 %v2169
        %v2178 = vunpack.c.l.b16 %v2170
        %v2179 = vunpack.c.l.b16 %v2171
        %v2180 = vunpack.c.l.b16 %v2172
        %v2181 = vrot.slane %v2178, 7
        %v2182 = vsel %vm591, %v2181, %v2177
        %v2183 = vrot.slane %v2179, 6
        %v2184 = vsel %vm594, %v2183, %v2182
        %v2185 = vrot.slane %v2180, 5
        %v2186 = vsel %vm597, %v2185, %v2184
        %v2187 = vpack.c.b16 %v2186, %v2186
        %2188 = vrot.lane.b32.xlu0 %v2187, 111
        %v2189 = vpop.permute.xlu0 %2188
        %2191 = vst.msk [vmem:[#allocation3 + $0x10] sm:$0x3] %vm2095, %v2189
        %v2192 = vld [vmem:[#allocation2 + $0x4] sm:$0x1]
        %v2193 = vld [vmem:[#allocation2 + $0x10] sm:$0x1]
        %v2194 = vld [vmem:[#allocation2 + $0x1c] sm:$0x1]
        %v2195 = vld [vmem:[#allocation2 + $0x28] sm:$0x1]
        %v2200 = vunpack.c.l.b16 %v2192
        %v2201 = vunpack.c.l.b16 %v2193
        %v2202 = vunpack.c.l.b16 %v2194
        %v2203 = vunpack.c.l.b16 %v2195
        %v2204 = vrot.slane %v2200, 4
        %v2205 = vrot.slane %v2201, 3
        %v2206 = vsel %vm617, %v2205, %v2204
        %v2207 = vrot.slane %v2202, 2
        %v2208 = vsel %vm620, %v2207, %v2206
        %v2209 = vrot.slane %v2203, 1
        %v2210 = vsel %vm623, %v2209, %v2208
        %v2211 = vpack.c.b16 %v2210, %v2210
        %2212 = vrot.lane.b32.xlu0 %v2211, 110
        %v2213 = vpop.permute.xlu0 %2212
        %2215 = vst.msk [vmem:[#allocation3 + $0x10] sm:$0xc] %vm2119, %v2213
        %v2216 = vld [vmem:[#allocation2 + $0x4] sm:$0x1]
        %v2217 = vld [vmem:[#allocation2 + $0x10] sm:$0x1]
        %v2218 = vld [vmem:[#allocation2 + $0x1c] sm:$0x1]
        %v2219 = vld [vmem:[#allocation2 + $0x28] sm:$0x1]
        %v2224 = vunpack.c.l.b16 %v2216
        %v2225 = vunpack.c.l.b16 %v2217
        %v2226 = vunpack.c.l.b16 %v2218
        %v2227 = vunpack.c.l.b16 %v2219
        %v2228 = vrot.slane %v2224, 1
        %v2229 = vsel %vm591, %v2225, %v2228
        %v2230 = vrot.slane %v2226, 7
        %v2231 = vsel %vm594, %v2230, %v2229
        %v2232 = vrot.slane %v2227, 6
        %v2233 = vsel %vm597, %v2232, %v2231
        %v2234 = vpack.c.b16 %v2233, %v2233
        %2235 = vrot.lane.b32.xlu0 %v2234, 112
        %v2236 = vpop.permute.xlu0 %2235
        %2238 = vst.msk [vmem:[#allocation3 + $0x18] sm:$0x3] %vm2095, %v2236
        %v2239 = vld [vmem:[#allocation2 + $0x4] sm:$0x1]
        %v2240 = vld [vmem:[#allocation2 + $0x10] sm:$0x1]
        %v2241 = vld [vmem:[#allocation2 + $0x1c] sm:$0x1]
        %v2242 = vld [vmem:[#allocation2 + $0x28] sm:$0x1]
        %v2247 = vunpack.c.l.b16 %v2239
        %v2248 = vunpack.c.l.b16 %v2240
        %v2249 = vunpack.c.l.b16 %v2241
        %v2250 = vunpack.c.l.b16 %v2242
        %v2251 = vrot.slane %v2247, 5
        %v2252 = vrot.slane %v2248, 4
        %v2253 = vsel %vm617, %v2252, %v2251
        %v2254 = vrot.slane %v2249, 3
        %v2255 = vsel %vm620, %v2254, %v2253
        %v2256 = vrot.slane %v2250, 2
        %v2257 = vsel %vm623, %v2256, %v2255
        %v2258 = vpack.c.b16 %v2257, %v2257
        %2259 = vrot.lane.b32.xlu0 %v2258, 111
        %v2260 = vpop.permute.xlu0 %2259
        %2262 = vst.msk [vmem:[#allocation3 + $0x18] sm:$0xc] %vm2119, %v2260
        %v2263 = vld [vmem:[#allocation2 + $0x4] sm:$0x1]
        %v2264 = vld [vmem:[#allocation2 + $0x10] sm:$0x1]
        %v2265 = vld [vmem:[#allocation2 + $0x1c] sm:$0x1]
        %v2266 = vld [vmem:[#allocation2 + $0x28] sm:$0x1]
        %v2271 = vunpack.c.l.b16 %v2263
        %v2272 = vunpack.c.l.b16 %v2264
        %v2273 = vunpack.c.l.b16 %v2265
        %v2274 = vunpack.c.l.b16 %v2266
        %v2275 = vrot.slane %v2271, 1
        %v2276 = vsel %vm591, %v2272, %v2275
        %v2277 = vrot.slane %v2273, 7
        %v2278 = vsel %vm594, %v2277, %v2276
        %v2279 = vrot.slane %v2274, 6
        %v2280 = vsel %vm597, %v2279, %v2278
        %v2281 = vpack.c.b16 %v2280, %v2280
        %2282 = vrot.lane.b32.xlu0 %v2281, 110
        %v2283 = vpop.permute.xlu0 %2282
        %2285 = vst.msk [vmem:[#allocation3 + $0x20] sm:$0x3] %vm2095, %v2283
        %v2286 = vld [vmem:[#allocation2 + $0x4] sm:$0x1]
        %v2287 = vld [vmem:[#allocation2 + $0x10] sm:$0x1]
        %v2288 = vld [vmem:[#allocation2 + $0x1c] sm:$0x1]
        %v2289 = vld [vmem:[#allocation2 + $0x28] sm:$0x1]
        %v2294 = vunpack.c.l.b16 %v2286
        %v2295 = vunpack.c.l.b16 %v2287
        %v2296 = vunpack.c.l.b16 %v2288
        %v2297 = vunpack.c.l.b16 %v2289
        %v2298 = vrot.slane %v2295, 7
        %v2299 = vsel %vm591, %v2298, %v2294
        %v2300 = vrot.slane %v2296, 6
        %v2301 = vsel %vm594, %v2300, %v2299
        %v2302 = vrot.slane %v2297, 5
        %v2303 = vsel %vm597, %v2302, %v2301
        %v2304 = vpack.c.b16 %v2303, %v2303
        %2306 = vst.msk [vmem:[#allocation3 + $0x4] sm:$0x3] %vm601, %v2304
        %v2307 = vld [vmem:[#allocation2 + $0x4] sm:$0x1]
        %v2308 = vld [vmem:[#allocation2 + $0x10] sm:$0x1]
        %v2309 = vld [vmem:[#allocation2 + $0x1c] sm:$0x1]
        %v2310 = vld [vmem:[#allocation2 + $0x28] sm:$0x1]
        %v2315 = vunpack.c.l.b16 %v2307
        %v2316 = vunpack.c.l.b16 %v2308
        %v2317 = vunpack.c.l.b16 %v2309
        %v2318 = vunpack.c.l.b16 %v2310
        %v2319 = vrot.slane %v2315, 4
        %v2320 = vrot.slane %v2316, 3
        %v2321 = vsel %vm617, %v2320, %v2319
        %v2322 = vrot.slane %v2317, 2
        %v2323 = vsel %vm620, %v2322, %v2321
        %v2324 = vrot.slane %v2318, 1
        %v2325 = vsel %vm623, %v2324, %v2323
        %v2326 = vpack.c.b16 %v2325, %v2325
        %2327 = vrot.lane.b32.xlu0 %v2326, 127
        %v2328 = vpop.permute.xlu0 %2327
        %2330 = vst.msk [vmem:[#allocation3 + $0x4] sm:$0xc] %vm629, %v2328
        %v2331 = vld [vmem:[#allocation2 + $0x4] sm:$0x1]
        %v2332 = vld [vmem:[#allocation2 + $0x10] sm:$0x1]
        %v2333 = vld [vmem:[#allocation2 + $0x1c] sm:$0x1]
        %v2334 = vld [vmem:[#allocation2 + $0x28] sm:$0x1]
        %v2339 = vunpack.c.l.b16 %v2331
        %v2340 = vunpack.c.l.b16 %v2332
        %v2341 = vunpack.c.l.b16 %v2333
        %v2342 = vunpack.c.l.b16 %v2334
        %v2343 = vrot.slane %v2340, 7
        %v2344 = vsel %vm591, %v2343, %v2339
        %v2345 = vrot.slane %v2341, 6
        %v2346 = vsel %vm594, %v2345, %v2344
        %v2347 = vrot.slane %v2342, 5
        %v2348 = vsel %vm597, %v2347, %v2346
        %v2349 = vpack.c.b16 %v2348, %v2348
        %2350 = vrot.lane.b32.xlu0 %v2349, 126
        %v2351 = vpop.permute.xlu0 %2350
        %2353 = vst.msk [vmem:[#allocation3 + $0xc] sm:$0x3] %vm601, %v2351
        %v2354 = vld [vmem:[#allocation2 + $0x4] sm:$0x1]
        %v2355 = vld [vmem:[#allocation2 + $0x10] sm:$0x1]
        %v2356 = vld [vmem:[#allocation2 + $0x1c] sm:$0x1]
        %v2357 = vld [vmem:[#allocation2 + $0x28] sm:$0x1]
        %v2362 = vunpack.c.l.b16 %v2354
        %v2363 = vunpack.c.l.b16 %v2355
        %v2364 = vunpack.c.l.b16 %v2356
        %v2365 = vunpack.c.l.b16 %v2357
        %v2366 = vrot.slane %v2362, 5
        %v2367 = vrot.slane %v2363, 4
        %v2368 = vsel %vm617, %v2367, %v2366
        %v2369 = vrot.slane %v2364, 3
        %v2370 = vsel %vm620, %v2369, %v2368
        %v2371 = vrot.slane %v2365, 2
        %v2372 = vsel %vm623, %v2371, %v2370
        %v2373 = vpack.c.b16 %v2372, %v2372
        %2375 = vst.msk [vmem:[#allocation3 + $0xc] sm:$0xc] %vm629, %v2373
        %v2376 = vld [vmem:[#allocation2 + $0x4] sm:$0x1]
        %v2377 = vld [vmem:[#allocation2 + $0x10] sm:$0x1]
        %v2378 = vld [vmem:[#allocation2 + $0x1c] sm:$0x1]
        %v2379 = vld [vmem:[#allocation2 + $0x28] sm:$0x1]
        %v2384 = vunpack.c.l.b16 %v2376
        %v2385 = vunpack.c.l.b16 %v2377
        %v2386 = vunpack.c.l.b16 %v2378
        %v2387 = vunpack.c.l.b16 %v2379
        %v2388 = vrot.slane %v2384, 1
        %v2389 = vsel %vm591, %v2385, %v2388
        %v2390 = vrot.slane %v2386, 7
        %v2391 = vsel %vm594, %v2390, %v2389
        %v2392 = vrot.slane %v2387, 6
        %v2393 = vsel %vm597, %v2392, %v2391
        %v2394 = vpack.c.b16 %v2393, %v2393
        %2395 = vrot.lane.b32.xlu0 %v2394, 127
        %v2396 = vpop.permute.xlu0 %2395
        %2398 = vst.msk [vmem:[#allocation3 + $0x14] sm:$0x3] %vm601, %v2396
        %v2399 = vld [vmem:[#allocation2 + $0x4] sm:$0x1]
        %v2400 = vld [vmem:[#allocation2 + $0x10] sm:$0x1]
        %v2401 = vld [vmem:[#allocation2 + $0x1c] sm:$0x1]
        %v2402 = vld [vmem:[#allocation2 + $0x28] sm:$0x1]
        %v2407 = vunpack.c.l.b16 %v2399
        %v2408 = vunpack.c.l.b16 %v2400
        %v2409 = vunpack.c.l.b16 %v2401
        %v2410 = vunpack.c.l.b16 %v2402
        %v2411 = vrot.slane %v2407, 5
        %v2412 = vrot.slane %v2408, 4
        %v2413 = vsel %vm617, %v2412, %v2411
        %v2414 = vrot.slane %v2409, 3
        %v2415 = vsel %vm620, %v2414, %v2413
        %v2416 = vrot.slane %v2410, 2
        %v2417 = vsel %vm623, %v2416, %v2415
        %v2418 = vpack.c.b16 %v2417, %v2417
        %2419 = vrot.lane.b32.xlu0 %v2418, 126
        %v2420 = vpop.permute.xlu0 %2419
        %2422 = vst.msk [vmem:[#allocation3 + $0x14] sm:$0xc] %vm629, %v2420
        %v2423 = vld [vmem:[#allocation2 + $0x4] sm:$0x2]
        %v2424 = vld [vmem:[#allocation2 + $0x10] sm:$0x2]
        %v2425 = vld [vmem:[#allocation2 + $0x1c] sm:$0x2]
        %v2426 = vld [vmem:[#allocation2 + $0x28] sm:$0x2]
        %v2431 = vunpack.c.l.b16 %v2423
        %v2432 = vunpack.c.l.b16 %v2424
        %v2433 = vunpack.c.l.b16 %v2425
        %v2434 = vunpack.c.l.b16 %v2426
        %v2435 = vrot.slane %v2431, 2
        %v2436 = vrot.slane %v2432, 1
        %v2437 = vsel %vm591, %v2436, %v2435
        %v2438 = vsel %vm594, %v2433, %v2437
        %v2439 = vrot.slane %v2434, 7
        %v2440 = vsel %vm597, %v2439, %v2438
        %v2441 = vpack.c.b16 %v2440, %v2440
        %2443 = vst.msk [vmem:[#allocation3 + $0x1c] sm:$0x3] %vm601, %v2441
        %v2444 = vld [vmem:[#allocation2 + $0x4] sm:$0x2]
        %v2445 = vld [vmem:[#allocation2 + $0x10] sm:$0x2]
        %v2446 = vld [vmem:[#allocation2 + $0x1c] sm:$0x2]
        %v2447 = vld [vmem:[#allocation2 + $0x28] sm:$0x2]
        %v2452 = vunpack.c.l.b16 %v2444
        %v2453 = vunpack.c.l.b16 %v2445
        %v2454 = vunpack.c.l.b16 %v2446
        %v2455 = vunpack.c.l.b16 %v2447
        %v2456 = vrot.slane %v2452, 6
        %v2457 = vrot.slane %v2453, 5
        %v2458 = vsel %vm617, %v2457, %v2456
        %v2459 = vrot.slane %v2454, 4
        %v2460 = vsel %vm620, %v2459, %v2458
        %v2461 = vrot.slane %v2455, 3
        %v2462 = vsel %vm623, %v2461, %v2460
        %v2463 = vpack.c.b16 %v2462, %v2462
        %2464 = vrot.lane.b32.xlu0 %v2463, 127
        %v2465 = vpop.permute.xlu0 %2464
        %2467 = vst.msk [vmem:[#allocation3 + $0x1c] sm:$0xc] %vm629, %v2465
        %v2468 = vld [vmem:[#allocation2 + $0x4] sm:$0x2]
        %v2469 = vld [vmem:[#allocation2 + $0x10] sm:$0x2]
        %v2470 = vld [vmem:[#allocation2 + $0x1c] sm:$0x2]
        %v2471 = vld [vmem:[#allocation2 + $0x28] sm:$0x2]
        %v2476 = vunpack.c.l.b16 %v2468
        %v2477 = vunpack.c.l.b16 %v2469
        %v2478 = vunpack.c.l.b16 %v2470
        %v2479 = vunpack.c.l.b16 %v2471
        %v2480 = vrot.slane %v2476, 2
        %v2481 = vrot.slane %v2477, 1
        %v2482 = vsel %vm591, %v2481, %v2480
        %v2483 = vsel %vm594, %v2478, %v2482
        %v2484 = vrot.slane %v2479, 7
        %v2485 = vsel %vm597, %v2484, %v2483
        %v2486 = vpack.c.b16 %v2485, %v2485
        %2487 = vrot.lane.b32.xlu0 %v2486, 126
        %v2488 = vpop.permute.xlu0 %2487
        %2490 = vst.msk [vmem:[#allocation3 + $0x24] sm:$0x3] %vm601, %v2488
        %v2491 = vld [vmem:[#allocation2 + $0x4] sm:$0x1]
        %v2492 = vld [vmem:[#allocation2 + $0x10] sm:$0x1]
        %v2493 = vld [vmem:[#allocation2 + $0x1c] sm:$0x1]
        %v2494 = vld [vmem:[#allocation2 + $0x28] sm:$0x1]
        %v2499 = vunpack.c.l.b16 %v2491
        %v2500 = vunpack.c.l.b16 %v2492
        %v2501 = vunpack.c.l.b16 %v2493
        %v2502 = vunpack.c.l.b16 %v2494
        %v2503 = vrot.slane %v2499, 1
        %v2504 = vsel %vm591, %v2500, %v2503
        %v2505 = vrot.slane %v2501, 7
        %v2506 = vsel %vm594, %v2505, %v2504
        %v2507 = vrot.slane %v2502, 6
        %v2508 = vsel %vm597, %v2507, %v2506
        %v2509 = vpack.c.b16 %v2508, %v2508
        %2510 = vrot.lane.b32.xlu0 %v2509, 16
        %v2511 = vpop.permute.xlu0 %2510
        %2513 = vst.msk [vmem:[#allocation3 + $0x4] sm:$0x3] %vm813, %v2511
        %v2514 = vld [vmem:[#allocation2 + $0x4] sm:$0x1]
        %v2515 = vld [vmem:[#allocation2 + $0x10] sm:$0x1]
        %v2516 = vld [vmem:[#allocation2 + $0x1c] sm:$0x1]
        %v2517 = vld [vmem:[#allocation2 + $0x28] sm:$0x1]
        %v2522 = vunpack.c.l.b16 %v2514
        %v2523 = vunpack.c.l.b16 %v2515
        %v2524 = vunpack.c.l.b16 %v2516
        %v2525 = vunpack.c.l.b16 %v2517
        %v2526 = vrot.slane %v2522, 5
        %v2527 = vrot.slane %v2523, 4
        %v2528 = vsel %vm617, %v2527, %v2526
        %v2529 = vrot.slane %v2524, 3
        %v2530 = vsel %vm620, %v2529, %v2528
        %v2531 = vrot.slane %v2525, 2
        %v2532 = vsel %vm623, %v2531, %v2530
        %v2533 = vpack.c.b16 %v2532, %v2532
        %2534 = vrot.lane.b32.xlu0 %v2533, 15
        %v2535 = vpop.permute.xlu0 %2534
        %2537 = vst.msk [vmem:[#allocation3 + $0x4] sm:$0xc] %vm838, %v2535
        %v2538 = vld [vmem:[#allocation2 + $0x4] sm:$0x1]
        %v2539 = vld [vmem:[#allocation2 + $0x10] sm:$0x1]
        %v2540 = vld [vmem:[#allocation2 + $0x1c] sm:$0x1]
        %v2541 = vld [vmem:[#allocation2 + $0x28] sm:$0x1]
        %v2546 = vunpack.c.l.b16 %v2538
        %v2547 = vunpack.c.l.b16 %v2539
        %v2548 = vunpack.c.l.b16 %v2540
        %v2549 = vunpack.c.l.b16 %v2541
        %v2550 = vrot.slane %v2546, 1
        %v2551 = vsel %vm591, %v2547, %v2550
        %v2552 = vrot.slane %v2548, 7
        %v2553 = vsel %vm594, %v2552, %v2551
        %v2554 = vrot.slane %v2549, 6
        %v2555 = vsel %vm597, %v2554, %v2553
        %v2556 = vpack.c.b16 %v2555, %v2555
        %2557 = vrot.lane.b32.xlu0 %v2556, 14
        %v2558 = vpop.permute.xlu0 %2557
        %2560 = vst.msk [vmem:[#allocation3 + $0xc] sm:$0x3] %vm813, %v2558
        %v2561 = vld [vmem:[#allocation2 + $0x4] sm:$0x2]
        %v2562 = vld [vmem:[#allocation2 + $0x10] sm:$0x2]
        %v2563 = vld [vmem:[#allocation2 + $0x1c] sm:$0x2]
        %v2564 = vld [vmem:[#allocation2 + $0x28] sm:$0x2]
        %v2569 = vunpack.c.l.b16 %v2561
        %v2570 = vunpack.c.l.b16 %v2562
        %v2571 = vunpack.c.l.b16 %v2563
        %v2572 = vunpack.c.l.b16 %v2564
        %v2573 = vrot.slane %v2569, 6
        %v2574 = vrot.slane %v2570, 5
        %v2575 = vsel %vm617, %v2574, %v2573
        %v2576 = vrot.slane %v2571, 4
        %v2577 = vsel %vm620, %v2576, %v2575
        %v2578 = vrot.slane %v2572, 3
        %v2579 = vsel %vm623, %v2578, %v2577
        %v2580 = vpack.c.b16 %v2579, %v2579
        %2581 = vrot.lane.b32.xlu0 %v2580, 16
        %v2582 = vpop.permute.xlu0 %2581
        %2584 = vst.msk [vmem:[#allocation3 + $0xc] sm:$0xc] %vm838, %v2582
        %v2585 = vld [vmem:[#allocation2 + $0x4] sm:$0x2]
        %v2586 = vld [vmem:[#allocation2 + $0x10] sm:$0x2]
        %v2587 = vld [vmem:[#allocation2 + $0x1c] sm:$0x2]
        %v2588 = vld [vmem:[#allocation2 + $0x28] sm:$0x2]
        %v2593 = vunpack.c.l.b16 %v2585
        %v2594 = vunpack.c.l.b16 %v2586
        %v2595 = vunpack.c.l.b16 %v2587
        %v2596 = vunpack.c.l.b16 %v2588
        %v2597 = vrot.slane %v2593, 2
        %v2598 = vrot.slane %v2594, 1
        %v2599 = vsel %vm591, %v2598, %v2597
        %v2600 = vsel %vm594, %v2595, %v2599
        %v2601 = vrot.slane %v2596, 7
        %v2602 = vsel %vm597, %v2601, %v2600
        %v2603 = vpack.c.b16 %v2602, %v2602
        %2604 = vrot.lane.b32.xlu0 %v2603, 15
        %v2605 = vpop.permute.xlu0 %2604
        %2607 = vst.msk [vmem:[#allocation3 + $0x14] sm:$0x3] %vm813, %v2605
        %v2608 = vld [vmem:[#allocation2 + $0x4] sm:$0x2]
        %v2609 = vld [vmem:[#allocation2 + $0x10] sm:$0x2]
        %v2610 = vld [vmem:[#allocation2 + $0x1c] sm:$0x2]
        %v2611 = vld [vmem:[#allocation2 + $0x28] sm:$0x2]
        %v2616 = vunpack.c.l.b16 %v2608
        %v2617 = vunpack.c.l.b16 %v2609
        %v2618 = vunpack.c.l.b16 %v2610
        %v2619 = vunpack.c.l.b16 %v2611
        %v2620 = vrot.slane %v2616, 6
        %v2621 = vrot.slane %v2617, 5
        %v2622 = vsel %vm617, %v2621, %v2620
        %v2623 = vrot.slane %v2618, 4
        %v2624 = vsel %vm620, %v2623, %v2622
        %v2625 = vrot.slane %v2619, 3
        %v2626 = vsel %vm623, %v2625, %v2624
        %v2627 = vpack.c.b16 %v2626, %v2626
        %2628 = vrot.lane.b32.xlu0 %v2627, 14
        %v2629 = vpop.permute.xlu0 %2628
        %2631 = vst.msk [vmem:[#allocation3 + $0x14] sm:$0xc] %vm838, %v2629
        %v2632 = vld [vmem:[#allocation2 + $0x4] sm:$0x2]
        %v2633 = vld [vmem:[#allocation2 + $0x10] sm:$0x2]
        %v2634 = vld [vmem:[#allocation2 + $0x1c] sm:$0x2]
        %v2635 = vld [vmem:[#allocation2 + $0x28] sm:$0x2]
        %v2640 = vunpack.c.l.b16 %v2632
        %v2641 = vunpack.c.l.b16 %v2633
        %v2642 = vunpack.c.l.b16 %v2634
        %v2643 = vunpack.c.l.b16 %v2635
        %v2644 = vrot.slane %v2640, 3
        %v2645 = vrot.slane %v2641, 2
        %v2646 = vsel %vm591, %v2645, %v2644
        %v2647 = vrot.slane %v2642, 1
        %v2648 = vsel %vm594, %v2647, %v2646
        %v2649 = vsel %vm597, %v2643, %v2648
        %v2650 = vpack.c.b16 %v2649, %v2649
        %2651 = vrot.lane.b32.xlu0 %v2650, 16
        %v2652 = vpop.permute.xlu0 %2651
        %2654 = vst.msk [vmem:[#allocation3 + $0x1c] sm:$0x3] %vm813, %v2652
        %v2655 = vld [vmem:[#allocation2 + $0x4] sm:$0x2]
        %v2656 = vld [vmem:[#allocation2 + $0x10] sm:$0x2]
        %v2657 = vld [vmem:[#allocation2 + $0x1c] sm:$0x2]
        %v2658 = vld [vmem:[#allocation2 + $0x28] sm:$0x2]
        %v2663 = vunpack.c.l.b16 %v2655
        %v2664 = vunpack.c.l.b16 %v2656
        %v2665 = vunpack.c.l.b16 %v2657
        %v2666 = vunpack.c.l.b16 %v2658
        %v2667 = vrot.slane %v2663, 7
        %v2668 = vrot.slane %v2664, 6
        %v2669 = vsel %vm617, %v2668, %v2667
        %v2670 = vrot.slane %v2665, 5
        %v2671 = vsel %vm620, %v2670, %v2669
        %v2672 = vrot.slane %v2666, 4
        %v2673 = vsel %vm623, %v2672, %v2671
        %v2674 = vpack.c.b16 %v2673, %v2673
        %2675 = vrot.lane.b32.xlu0 %v2674, 15
        %v2676 = vpop.permute.xlu0 %2675
        %2678 = vst.msk [vmem:[#allocation3 + $0x1c] sm:$0xc] %vm838, %v2676
        %v2679 = vld [vmem:[#allocation2 + $0x4] sm:$0x2]
        %v2680 = vld [vmem:[#allocation2 + $0x10] sm:$0x2]
        %v2681 = vld [vmem:[#allocation2 + $0x1c] sm:$0x2]
        %v2682 = vld [vmem:[#allocation2 + $0x28] sm:$0x2]
        %v2687 = vunpack.c.l.b16 %v2679
        %v2688 = vunpack.c.l.b16 %v2680
        %v2689 = vunpack.c.l.b16 %v2681
        %v2690 = vunpack.c.l.b16 %v2682
        %v2691 = vrot.slane %v2687, 3
        %v2692 = vrot.slane %v2688, 2
        %v2693 = vsel %vm591, %v2692, %v2691
        %v2694 = vrot.slane %v2689, 1
        %v2695 = vsel %vm594, %v2694, %v2693
        %v2696 = vsel %vm597, %v2690, %v2695
        %v2697 = vpack.c.b16 %v2696, %v2696
        %2698 = vrot.lane.b32.xlu0 %v2697, 14
        %v2699 = vpop.permute.xlu0 %2698
        %2701 = vst.msk [vmem:[#allocation3 + $0x24] sm:$0x3] %vm813, %v2699
        %v2702 = vld [vmem:[#allocation2 + $0x4] sm:$0x2]
        %v2703 = vld [vmem:[#allocation2 + $0x10] sm:$0x2]
        %v2704 = vld [vmem:[#allocation2 + $0x1c] sm:$0x2]
        %v2705 = vld [vmem:[#allocation2 + $0x28] sm:$0x2]
        %v2710 = vunpack.c.l.b16 %v2702
        %v2711 = vunpack.c.l.b16 %v2703
        %v2712 = vunpack.c.l.b16 %v2704
        %v2713 = vunpack.c.l.b16 %v2705
        %v2714 = vrot.slane %v2710, 2
        %v2715 = vrot.slane %v2711, 1
        %v2716 = vsel %vm591, %v2715, %v2714
        %v2717 = vsel %vm594, %v2712, %v2716
        %v2718 = vrot.slane %v2713, 7
        %v2719 = vsel %vm597, %v2718, %v2717
        %v2720 = vpack.c.b16 %v2719, %v2719
        %2721 = vrot.lane.b32.xlu0 %v2720, 32
        %v2722 = vpop.permute.xlu0 %2721
        %2724 = vst.msk [vmem:[#allocation3 + $0x4] sm:$0x3] %vm1026, %v2722
        %v2725 = vld [vmem:[#allocation2 + $0x4] sm:$0x2]
        %v2726 = vld [vmem:[#allocation2 + $0x10] sm:$0x2]
        %v2727 = vld [vmem:[#allocation2 + $0x1c] sm:$0x2]
        %v2728 = vld [vmem:[#allocation2 + $0x28] sm:$0x2]
        %v2733 = vunpack.c.l.b16 %v2725
        %v2734 = vunpack.c.l.b16 %v2726
        %v2735 = vunpack.c.l.b16 %v2727
        %v2736 = vunpack.c.l.b16 %v2728
        %v2737 = vrot.slane %v2733, 6
        %v2738 = vrot.slane %v2734, 5
        %v2739 = vsel %vm617, %v2738, %v2737
        %v2740 = vrot.slane %v2735, 4
        %v2741 = vsel %vm620, %v2740, %v2739
        %v2742 = vrot.slane %v2736, 3
        %v2743 = vsel %vm623, %v2742, %v2741
        %v2744 = vpack.c.b16 %v2743, %v2743
        %2745 = vrot.lane.b32.xlu0 %v2744, 31
        %v2746 = vpop.permute.xlu0 %2745
        %2748 = vst.msk [vmem:[#allocation3 + $0x4] sm:$0xc] %vm1051, %v2746
        %v2749 = vld [vmem:[#allocation2 + $0x4] sm:$0x2]
        %v2750 = vld [vmem:[#allocation2 + $0x10] sm:$0x2]
        %v2751 = vld [vmem:[#allocation2 + $0x1c] sm:$0x2]
        %v2752 = vld [vmem:[#allocation2 + $0x28] sm:$0x2]
        %v2757 = vunpack.c.l.b16 %v2749
        %v2758 = vunpack.c.l.b16 %v2750
        %v2759 = vunpack.c.l.b16 %v2751
        %v2760 = vunpack.c.l.b16 %v2752
        %v2761 = vrot.slane %v2757, 2
        %v2762 = vrot.slane %v2758, 1
        %v2763 = vsel %vm591, %v2762, %v2761
        %v2764 = vsel %vm594, %v2759, %v2763
        %v2765 = vrot.slane %v2760, 7
        %v2766 = vsel %vm597, %v2765, %v2764
        %v2767 = vpack.c.b16 %v2766, %v2766
        %2768 = vrot.lane.b32.xlu0 %v2767, 30
        %v2769 = vpop.permute.xlu0 %2768
        %2771 = vst.msk [vmem:[#allocation3 + $0xc] sm:$0x3] %vm1026, %v2769
        %v2772 = vld [vmem:[#allocation2 + $0x4] sm:$0x2]
        %v2773 = vld [vmem:[#allocation2 + $0x10] sm:$0x2]
        %v2774 = vld [vmem:[#allocation2 + $0x1c] sm:$0x2]
        %v2775 = vld [vmem:[#allocation2 + $0x28] sm:$0x2]
        %v2780 = vunpack.c.l.b16 %v2772
        %v2781 = vunpack.c.l.b16 %v2773
        %v2782 = vunpack.c.l.b16 %v2774
        %v2783 = vunpack.c.l.b16 %v2775
        %v2784 = vrot.slane %v2780, 7
        %v2785 = vrot.slane %v2781, 6
        %v2786 = vsel %vm617, %v2785, %v2784
        %v2787 = vrot.slane %v2782, 5
        %v2788 = vsel %vm620, %v2787, %v2786
        %v2789 = vrot.slane %v2783, 4
        %v2790 = vsel %vm623, %v2789, %v2788
        %v2791 = vpack.c.b16 %v2790, %v2790
        %2792 = vrot.lane.b32.xlu0 %v2791, 32
        %v2793 = vpop.permute.xlu0 %2792
        %2795 = vst.msk [vmem:[#allocation3 + $0xc] sm:$0xc] %vm1051, %v2793
        %v2796 = vld [vmem:[#allocation2 + $0x4] sm:$0x2]
        %v2797 = vld [vmem:[#allocation2 + $0x10] sm:$0x2]
        %v2798 = vld [vmem:[#allocation2 + $0x1c] sm:$0x2]
        %v2799 = vld [vmem:[#allocation2 + $0x28] sm:$0x2]
        %v2804 = vunpack.c.l.b16 %v2796
        %v2805 = vunpack.c.l.b16 %v2797
        %v2806 = vunpack.c.l.b16 %v2798
        %v2807 = vunpack.c.l.b16 %v2799
        %v2808 = vrot.slane %v2804, 3
        %v2809 = vrot.slane %v2805, 2
        %v2810 = vsel %vm591, %v2809, %v2808
        %v2811 = vrot.slane %v2806, 1
        %v2812 = vsel %vm594, %v2811, %v2810
        %v2813 = vsel %vm597, %v2807, %v2812
        %v2814 = vpack.c.b16 %v2813, %v2813
        %2815 = vrot.lane.b32.xlu0 %v2814, 31
        %v2816 = vpop.permute.xlu0 %2815
        %2818 = vst.msk [vmem:[#allocation3 + $0x14] sm:$0x3] %vm1026, %v2816
        %v2819 = vld [vmem:[#allocation2 + $0x4] sm:$0x2]
        %v2820 = vld [vmem:[#allocation2 + $0x10] sm:$0x2]
        %v2821 = vld [vmem:[#allocation2 + $0x1c] sm:$0x2]
        %v2822 = vld [vmem:[#allocation2 + $0x28] sm:$0x2]
        %v2827 = vunpack.c.l.b16 %v2819
        %v2828 = vunpack.c.l.b16 %v2820
        %v2829 = vunpack.c.l.b16 %v2821
        %v2830 = vunpack.c.l.b16 %v2822
        %v2831 = vrot.slane %v2827, 7
        %v2832 = vrot.slane %v2828, 6
        %v2833 = vsel %vm617, %v2832, %v2831
        %v2834 = vrot.slane %v2829, 5
        %v2835 = vsel %vm620, %v2834, %v2833
        %v2836 = vrot.slane %v2830, 4
        %v2837 = vsel %vm623, %v2836, %v2835
        %v2838 = vpack.c.b16 %v2837, %v2837
        %2839 = vrot.lane.b32.xlu0 %v2838, 30
        %v2840 = vpop.permute.xlu0 %2839
        %2842 = vst.msk [vmem:[#allocation3 + $0x14] sm:$0xc] %vm1051, %v2840
        %v2843 = vld [vmem:[#allocation2 + $0x4] sm:$0x4]
        %v2844 = vld [vmem:[#allocation2 + $0x10] sm:$0x4]
        %v2845 = vld [vmem:[#allocation2 + $0x1c] sm:$0x4]
        %v2846 = vld [vmem:[#allocation2 + $0x28] sm:$0x4]
        %v2851 = vunpack.c.l.b16 %v2843
        %v2852 = vunpack.c.l.b16 %v2844
        %v2853 = vunpack.c.l.b16 %v2845
        %v2854 = vunpack.c.l.b16 %v2846
        %v2855 = vrot.slane %v2851, 4
        %v2856 = vrot.slane %v2852, 3
        %v2857 = vsel %vm591, %v2856, %v2855
        %v2858 = vrot.slane %v2853, 2
        %v2859 = vsel %vm594, %v2858, %v2857
        %v2860 = vrot.slane %v2854, 1
        %v2861 = vsel %vm597, %v2860, %v2859
        %v2862 = vpack.c.b16 %v2861, %v2861
        %2863 = vrot.lane.b32.xlu0 %v2862, 32
        %v2864 = vpop.permute.xlu0 %2863
        %2866 = vst.msk [vmem:[#allocation3 + $0x1c] sm:$0x3] %vm1026, %v2864
        %v2867 = vld [vmem:[#allocation2 + $0x4] sm:$0x4]
        %v2868 = vld [vmem:[#allocation2 + $0x10] sm:$0x4]
        %v2869 = vld [vmem:[#allocation2 + $0x1c] sm:$0x4]
        %v2870 = vld [vmem:[#allocation2 + $0x28] sm:$0x4]
        %v2875 = vunpack.c.l.b16 %v2867
        %v2876 = vunpack.c.l.b16 %v2868
        %v2877 = vunpack.c.l.b16 %v2869
        %v2878 = vunpack.c.l.b16 %v2870
        %v2879 = vrot.slane %v2876, 7
        %v2880 = vsel %vm617, %v2879, %v2875
        %v2881 = vrot.slane %v2877, 6
        %v2882 = vsel %vm620, %v2881, %v2880
        %v2883 = vrot.slane %v2878, 5
        %v2884 = vsel %vm623, %v2883, %v2882
        %v2885 = vpack.c.b16 %v2884, %v2884
        %2886 = vrot.lane.b32.xlu0 %v2885, 31
        %v2887 = vpop.permute.xlu0 %2886
        %2889 = vst.msk [vmem:[#allocation3 + $0x1c] sm:$0xc] %vm1051, %v2887
        %v2890 = vld [vmem:[#allocation2 + $0x4] sm:$0x4]
        %v2891 = vld [vmem:[#allocation2 + $0x10] sm:$0x4]
        %v2892 = vld [vmem:[#allocation2 + $0x1c] sm:$0x4]
        %v2893 = vld [vmem:[#allocation2 + $0x28] sm:$0x4]
        %v2898 = vunpack.c.l.b16 %v2890
        %v2899 = vunpack.c.l.b16 %v2891
        %v2900 = vunpack.c.l.b16 %v2892
        %v2901 = vunpack.c.l.b16 %v2893
        %v2902 = vrot.slane %v2898, 4
        %v2903 = vrot.slane %v2899, 3
        %v2904 = vsel %vm591, %v2903, %v2902
        %v2905 = vrot.slane %v2900, 2
        %v2906 = vsel %vm594, %v2905, %v2904
        %v2907 = vrot.slane %v2901, 1
        %v2908 = vsel %vm597, %v2907, %v2906
        %v2909 = vpack.c.b16 %v2908, %v2908
        %2910 = vrot.lane.b32.xlu0 %v2909, 30
        %v2911 = vpop.permute.xlu0 %2910
        %2913 = vst.msk [vmem:[#allocation3 + $0x24] sm:$0x3] %vm1026, %v2911
        %v2914 = vld [vmem:[#allocation2 + $0x4] sm:$0x2]
        %v2915 = vld [vmem:[#allocation2 + $0x10] sm:$0x2]
        %v2916 = vld [vmem:[#allocation2 + $0x1c] sm:$0x2]
        %v2917 = vld [vmem:[#allocation2 + $0x28] sm:$0x2]
        %v2922 = vunpack.c.l.b16 %v2914
        %v2923 = vunpack.c.l.b16 %v2915
        %v2924 = vunpack.c.l.b16 %v2916
        %v2925 = vunpack.c.l.b16 %v2917
        %v2926 = vrot.slane %v2922, 3
        %v2927 = vrot.slane %v2923, 2
        %v2928 = vsel %vm591, %v2927, %v2926
        %v2929 = vrot.slane %v2924, 1
        %v2930 = vsel %vm594, %v2929, %v2928
        %v2931 = vsel %vm597, %v2925, %v2930
        %v2932 = vpack.c.b16 %v2931, %v2931
        %2933 = vrot.lane.b32.xlu0 %v2932, 48
        %v2934 = vpop.permute.xlu0 %2933
        %2936 = vst.msk [vmem:[#allocation3 + $0x4] sm:$0x3] %vm1240, %v2934
        %v2937 = vld [vmem:[#allocation2 + $0x4] sm:$0x2]
        %v2938 = vld [vmem:[#allocation2 + $0x10] sm:$0x2]
        %v2939 = vld [vmem:[#allocation2 + $0x1c] sm:$0x2]
        %v2940 = vld [vmem:[#allocation2 + $0x28] sm:$0x2]
        %v2945 = vunpack.c.l.b16 %v2937
        %v2946 = vunpack.c.l.b16 %v2938
        %v2947 = vunpack.c.l.b16 %v2939
        %v2948 = vunpack.c.l.b16 %v2940
        %v2949 = vrot.slane %v2945, 7
        %v2950 = vrot.slane %v2946, 6
        %v2951 = vsel %vm617, %v2950, %v2949
        %v2952 = vrot.slane %v2947, 5
        %v2953 = vsel %vm620, %v2952, %v2951
        %v2954 = vrot.slane %v2948, 4
        %v2955 = vsel %vm623, %v2954, %v2953
        %v2956 = vpack.c.b16 %v2955, %v2955
        %2957 = vrot.lane.b32.xlu0 %v2956, 47
        %v2958 = vpop.permute.xlu0 %2957
        %2960 = vst.msk [vmem:[#allocation3 + $0x4] sm:$0xc] %vm1265, %v2958
        %v2961 = vld [vmem:[#allocation2 + $0x4] sm:$0x2]
        %v2962 = vld [vmem:[#allocation2 + $0x10] sm:$0x2]
        %v2963 = vld [vmem:[#allocation2 + $0x1c] sm:$0x2]
        %v2964 = vld [vmem:[#allocation2 + $0x28] sm:$0x2]
        %v2969 = vunpack.c.l.b16 %v2961
        %v2970 = vunpack.c.l.b16 %v2962
        %v2971 = vunpack.c.l.b16 %v2963
        %v2972 = vunpack.c.l.b16 %v2964
        %v2973 = vrot.slane %v2969, 3
        %v2974 = vrot.slane %v2970, 2
        %v2975 = vsel %vm591, %v2974, %v2973
        %v2976 = vrot.slane %v2971, 1
        %v2977 = vsel %vm594, %v2976, %v2975
        %v2978 = vsel %vm597, %v2972, %v2977
        %v2979 = vpack.c.b16 %v2978, %v2978
        %2980 = vrot.lane.b32.xlu0 %v2979, 46
        %v2981 = vpop.permute.xlu0 %2980
        %2983 = vst.msk [vmem:[#allocation3 + $0xc] sm:$0x3] %vm1240, %v2981
        %v2984 = vld [vmem:[#allocation2 + $0x4] sm:$0x4]
        %v2985 = vld [vmem:[#allocation2 + $0x10] sm:$0x4]
        %v2986 = vld [vmem:[#allocation2 + $0x1c] sm:$0x4]
        %v2987 = vld [vmem:[#allocation2 + $0x28] sm:$0x4]
        %v2992 = vunpack.c.l.b16 %v2984
        %v2993 = vunpack.c.l.b16 %v2985
        %v2994 = vunpack.c.l.b16 %v2986
        %v2995 = vunpack.c.l.b16 %v2987
        %v2996 = vrot.slane %v2993, 7
        %v2997 = vsel %vm617, %v2996, %v2992
        %v2998 = vrot.slane %v2994, 6
        %v2999 = vsel %vm620, %v2998, %v2997
        %v3000 = vrot.slane %v2995, 5
        %v3001 = vsel %vm623, %v3000, %v2999
        %v3002 = vpack.c.b16 %v3001, %v3001
        %3003 = vrot.lane.b32.xlu0 %v3002, 48
        %v3004 = vpop.permute.xlu0 %3003
        %3006 = vst.msk [vmem:[#allocation3 + $0xc] sm:$0xc] %vm1265, %v3004
        %v3007 = vld [vmem:[#allocation2 + $0x4] sm:$0x4]
        %v3008 = vld [vmem:[#allocation2 + $0x10] sm:$0x4]
        %v3009 = vld [vmem:[#allocation2 + $0x1c] sm:$0x4]
        %v3010 = vld [vmem:[#allocation2 + $0x28] sm:$0x4]
        %v3015 = vunpack.c.l.b16 %v3007
        %v3016 = vunpack.c.l.b16 %v3008
        %v3017 = vunpack.c.l.b16 %v3009
        %v3018 = vunpack.c.l.b16 %v3010
        %v3019 = vrot.slane %v3015, 4
        %v3020 = vrot.slane %v3016, 3
        %v3021 = vsel %vm591, %v3020, %v3019
        %v3022 = vrot.slane %v3017, 2
        %v3023 = vsel %vm594, %v3022, %v3021
        %v3024 = vrot.slane %v3018, 1
        %v3025 = vsel %vm597, %v3024, %v3023
        %v3026 = vpack.c.b16 %v3025, %v3025
        %3027 = vrot.lane.b32.xlu0 %v3026, 47
        %v3028 = vpop.permute.xlu0 %3027
        %3030 = vst.msk [vmem:[#allocation3 + $0x14] sm:$0x3] %vm1240, %v3028
        %v3031 = vld [vmem:[#allocation2 + $0x4] sm:$0x4]
        %v3032 = vld [vmem:[#allocation2 + $0x10] sm:$0x4]
        %v3033 = vld [vmem:[#allocation2 + $0x1c] sm:$0x4]
        %v3034 = vld [vmem:[#allocation2 + $0x28] sm:$0x4]
        %v3039 = vunpack.c.l.b16 %v3031
        %v3040 = vunpack.c.l.b16 %v3032
        %v3041 = vunpack.c.l.b16 %v3033
        %v3042 = vunpack.c.l.b16 %v3034
        %v3043 = vrot.slane %v3040, 7
        %v3044 = vsel %vm617, %v3043, %v3039
        %v3045 = vrot.slane %v3041, 6
        %v3046 = vsel %vm620, %v3045, %v3044
        %v3047 = vrot.slane %v3042, 5
        %v3048 = vsel %vm623, %v3047, %v3046
        %v3049 = vpack.c.b16 %v3048, %v3048
        %3050 = vrot.lane.b32.xlu0 %v3049, 46
        %v3051 = vpop.permute.xlu0 %3050
        %3053 = vst.msk [vmem:[#allocation3 + $0x14] sm:$0xc] %vm1265, %v3051
        %v3054 = vld [vmem:[#allocation2 + $0x4] sm:$0x4]
        %v3055 = vld [vmem:[#allocation2 + $0x10] sm:$0x4]
        %v3056 = vld [vmem:[#allocation2 + $0x1c] sm:$0x4]
        %v3057 = vld [vmem:[#allocation2 + $0x28] sm:$0x4]
        %v3062 = vunpack.c.l.b16 %v3054
        %v3063 = vunpack.c.l.b16 %v3055
        %v3064 = vunpack.c.l.b16 %v3056
        %v3065 = vunpack.c.l.b16 %v3057
        %v3066 = vrot.slane %v3062, 5
        %v3067 = vrot.slane %v3063, 4
        %v3068 = vsel %vm591, %v3067, %v3066
        %v3069 = vrot.slane %v3064, 3
        %v3070 = vsel %vm594, %v3069, %v3068
        %v3071 = vrot.slane %v3065, 2
        %v3072 = vsel %vm597, %v3071, %v3070
        %v3073 = vpack.c.b16 %v3072, %v3072
        %3074 = vrot.lane.b32.xlu0 %v3073, 48
        %v3075 = vpop.permute.xlu0 %3074
        %3077 = vst.msk [vmem:[#allocation3 + $0x1c] sm:$0x3] %vm1240, %v3075
        %v3078 = vld [vmem:[#allocation2 + $0x4] sm:$0x4]
        %v3079 = vld [vmem:[#allocation2 + $0x10] sm:$0x4]
        %v3080 = vld [vmem:[#allocation2 + $0x1c] sm:$0x4]
        %v3081 = vld [vmem:[#allocation2 + $0x28] sm:$0x4]
        %v3086 = vunpack.c.l.b16 %v3078
        %v3087 = vunpack.c.l.b16 %v3079
        %v3088 = vunpack.c.l.b16 %v3080
        %v3089 = vunpack.c.l.b16 %v3081
        %v3090 = vrot.slane %v3086, 1
        %v3091 = vsel %vm617, %v3087, %v3090
        %v3092 = vrot.slane %v3088, 7
        %v3093 = vsel %vm620, %v3092, %v3091
        %v3094 = vrot.slane %v3089, 6
        %v3095 = vsel %vm623, %v3094, %v3093
        %v3096 = vpack.c.b16 %v3095, %v3095
        %3097 = vrot.lane.b32.xlu0 %v3096, 47
        %v3098 = vpop.permute.xlu0 %3097
        %3100 = vst.msk [vmem:[#allocation3 + $0x1c] sm:$0xc] %vm1265, %v3098
        %v3101 = vld [vmem:[#allocation2 + $0x4] sm:$0x4]
        %v3102 = vld [vmem:[#allocation2 + $0x10] sm:$0x4]
        %v3103 = vld [vmem:[#allocation2 + $0x1c] sm:$0x4]
        %v3104 = vld [vmem:[#allocation2 + $0x28] sm:$0x4]
        %v3109 = vunpack.c.l.b16 %v3101
        %v3110 = vunpack.c.l.b16 %v3102
        %v3111 = vunpack.c.l.b16 %v3103
        %v3112 = vunpack.c.l.b16 %v3104
        %v3113 = vrot.slane %v3109, 5
        %v3114 = vrot.slane %v3110, 4
        %v3115 = vsel %vm591, %v3114, %v3113
        %v3116 = vrot.slane %v3111, 3
        %v3117 = vsel %vm594, %v3116, %v3115
        %v3118 = vrot.slane %v3112, 2
        %v3119 = vsel %vm597, %v3118, %v3117
        %v3120 = vpack.c.b16 %v3119, %v3119
        %3121 = vrot.lane.b32.xlu0 %v3120, 46
        %v3122 = vpop.permute.xlu0 %3121
        %3124 = vst.msk [vmem:[#allocation3 + $0x24] sm:$0x3] %vm1240, %v3122
        %v3125 = vld [vmem:[#allocation2 + $0x4] sm:$0x4]
        %v3126 = vld [vmem:[#allocation2 + $0x10] sm:$0x4]
        %v3127 = vld [vmem:[#allocation2 + $0x1c] sm:$0x4]
        %v3128 = vld [vmem:[#allocation2 + $0x28] sm:$0x4]
        %v3133 = vunpack.c.l.b16 %v3125
        %v3134 = vunpack.c.l.b16 %v3126
        %v3135 = vunpack.c.l.b16 %v3127
        %v3136 = vunpack.c.l.b16 %v3128
        %v3137 = vrot.slane %v3133, 4
        %v3138 = vrot.slane %v3134, 3
        %v3139 = vsel %vm591, %v3138, %v3137
        %v3140 = vrot.slane %v3135, 2
        %v3141 = vsel %vm594, %v3140, %v3139
        %v3142 = vrot.slane %v3136, 1
        %v3143 = vsel %vm597, %v3142, %v3141
        %v3144 = vpack.c.b16 %v3143, %v3143
        %3145 = vrot.lane.b32.xlu0 %v3144, 64
        %v3146 = vpop.permute.xlu0 %3145
        %3148 = vst.msk [vmem:[#allocation3 + $0x4] sm:$0x3] %vm1454, %v3146
        %v3149 = vld [vmem:[#allocation2 + $0x4] sm:$0x4]
        %v3150 = vld [vmem:[#allocation2 + $0x10] sm:$0x4]
        %v3151 = vld [vmem:[#allocation2 + $0x1c] sm:$0x4]
        %v3152 = vld [vmem:[#allocation2 + $0x28] sm:$0x4]
        %v3157 = vunpack.c.l.b16 %v3149
        %v3158 = vunpack.c.l.b16 %v3150
        %v3159 = vunpack.c.l.b16 %v3151
        %v3160 = vunpack.c.l.b16 %v3152
        %v3161 = vrot.slane %v3158, 7
        %v3162 = vsel %vm617, %v3161, %v3157
        %v3163 = vrot.slane %v3159, 6
        %v3164 = vsel %vm620, %v3163, %v3162
        %v3165 = vrot.slane %v3160, 5
        %v3166 = vsel %vm623, %v3165, %v3164
        %v3167 = vpack.c.b16 %v3166, %v3166
        %3168 = vrot.lane.b32.xlu0 %v3167, 63
        %v3169 = vpop.permute.xlu0 %3168
        %3171 = vst.msk [vmem:[#allocation3 + $0x4] sm:$0xc] %vm1478, %v3169
        %v3172 = vld [vmem:[#allocation2 + $0x4] sm:$0x4]
        %v3173 = vld [vmem:[#allocation2 + $0x10] sm:$0x4]
        %v3174 = vld [vmem:[#allocation2 + $0x1c] sm:$0x4]
        %v3175 = vld [vmem:[#allocation2 + $0x28] sm:$0x4]
        %v3180 = vunpack.c.l.b16 %v3172
        %v3181 = vunpack.c.l.b16 %v3173
        %v3182 = vunpack.c.l.b16 %v3174
        %v3183 = vunpack.c.l.b16 %v3175
        %v3184 = vrot.slane %v3180, 4
        %v3185 = vrot.slane %v3181, 3
        %v3186 = vsel %vm591, %v3185, %v3184
        %v3187 = vrot.slane %v3182, 2
        %v3188 = vsel %vm594, %v3187, %v3186
        %v3189 = vrot.slane %v3183, 1
        %v3190 = vsel %vm597, %v3189, %v3188
        %v3191 = vpack.c.b16 %v3190, %v3190
        %3192 = vrot.lane.b32.xlu0 %v3191, 62
        %v3193 = vpop.permute.xlu0 %3192
        %3195 = vst.msk [vmem:[#allocation3 + $0xc] sm:$0x3] %vm1454, %v3193
        %v3196 = vld [vmem:[#allocation2 + $0x4] sm:$0x4]
        %v3197 = vld [vmem:[#allocation2 + $0x10] sm:$0x4]
        %v3198 = vld [vmem:[#allocation2 + $0x1c] sm:$0x4]
        %v3199 = vld [vmem:[#allocation2 + $0x28] sm:$0x4]
        %v3204 = vunpack.c.l.b16 %v3196
        %v3205 = vunpack.c.l.b16 %v3197
        %v3206 = vunpack.c.l.b16 %v3198
        %v3207 = vunpack.c.l.b16 %v3199
        %v3208 = vrot.slane %v3204, 1
        %v3209 = vsel %vm617, %v3205, %v3208
        %v3210 = vrot.slane %v3206, 7
        %v3211 = vsel %vm620, %v3210, %v3209
        %v3212 = vrot.slane %v3207, 6
        %v3213 = vsel %vm623, %v3212, %v3211
        %v3214 = vpack.c.b16 %v3213, %v3213
        %3215 = vrot.lane.b32.xlu0 %v3214, 64
        %v3216 = vpop.permute.xlu0 %3215
        %3218 = vst.msk [vmem:[#allocation3 + $0xc] sm:$0xc] %vm1478, %v3216
        %v3219 = vld [vmem:[#allocation2 + $0x4] sm:$0x4]
        %v3220 = vld [vmem:[#allocation2 + $0x10] sm:$0x4]
        %v3221 = vld [vmem:[#allocation2 + $0x1c] sm:$0x4]
        %v3222 = vld [vmem:[#allocation2 + $0x28] sm:$0x4]
        %v3227 = vunpack.c.l.b16 %v3219
        %v3228 = vunpack.c.l.b16 %v3220
        %v3229 = vunpack.c.l.b16 %v3221
        %v3230 = vunpack.c.l.b16 %v3222
        %v3231 = vrot.slane %v3227, 5
        %v3232 = vrot.slane %v3228, 4
        %v3233 = vsel %vm591, %v3232, %v3231
        %v3234 = vrot.slane %v3229, 3
        %v3235 = vsel %vm594, %v3234, %v3233
        %v3236 = vrot.slane %v3230, 2
        %v3237 = vsel %vm597, %v3236, %v3235
        %v3238 = vpack.c.b16 %v3237, %v3237
        %3239 = vrot.lane.b32.xlu0 %v3238, 63
        %v3240 = vpop.permute.xlu0 %3239
        %3242 = vst.msk [vmem:[#allocation3 + $0x14] sm:$0x3] %vm1454, %v3240
        %v3243 = vld [vmem:[#allocation2 + $0x4] sm:$0x4]
        %v3244 = vld [vmem:[#allocation2 + $0x10] sm:$0x4]
        %v3245 = vld [vmem:[#allocation2 + $0x1c] sm:$0x4]
        %v3246 = vld [vmem:[#allocation2 + $0x28] sm:$0x4]
        %v3251 = vunpack.c.l.b16 %v3243
        %v3252 = vunpack.c.l.b16 %v3244
        %v3253 = vunpack.c.l.b16 %v3245
        %v3254 = vunpack.c.l.b16 %v3246
        %v3255 = vrot.slane %v3251, 1
        %v3256 = vsel %vm617, %v3252, %v3255
        %v3257 = vrot.slane %v3253, 7
        %v3258 = vsel %vm620, %v3257, %v3256
        %v3259 = vrot.slane %v3254, 6
        %v3260 = vsel %vm623, %v3259, %v3258
        %v3261 = vpack.c.b16 %v3260, %v3260
        %3262 = vrot.lane.b32.xlu0 %v3261, 62
        %v3263 = vpop.permute.xlu0 %3262
        %3265 = vst.msk [vmem:[#allocation3 + $0x14] sm:$0xc] %vm1478, %v3263
        %v3266 = vld [vmem:[#allocation2 + $0x4] sm:$0x8]
        %v3267 = vld [vmem:[#allocation2 + $0x10] sm:$0x8]
        %v3268 = vld [vmem:[#allocation2 + $0x1c] sm:$0x8]
        %v3269 = vld [vmem:[#allocation2 + $0x28] sm:$0x8]
        %v3274 = vunpack.c.l.b16 %v3266
        %v3275 = vunpack.c.l.b16 %v3267
        %v3276 = vunpack.c.l.b16 %v3268
        %v3277 = vunpack.c.l.b16 %v3269
        %v3278 = vrot.slane %v3274, 6
        %v3279 = vrot.slane %v3275, 5
        %v3280 = vsel %vm591, %v3279, %v3278
        %v3281 = vrot.slane %v3276, 4
        %v3282 = vsel %vm594, %v3281, %v3280
        %v3283 = vrot.slane %v3277, 3
        %v3284 = vsel %vm597, %v3283, %v3282
        %v3285 = vpack.c.b16 %v3284, %v3284
        %3286 = vrot.lane.b32.xlu0 %v3285, 64
        %v3287 = vpop.permute.xlu0 %3286
        %3289 = vst.msk [vmem:[#allocation3 + $0x1c] sm:$0x3] %vm1454, %v3287
        %v3290 = vld [vmem:[#allocation2 + $0x4] sm:$0x8]
        %v3291 = vld [vmem:[#allocation2 + $0x10] sm:$0x8]
        %v3292 = vld [vmem:[#allocation2 + $0x1c] sm:$0x8]
        %v3293 = vld [vmem:[#allocation2 + $0x28] sm:$0x8]
        %v3298 = vunpack.c.l.b16 %v3290
        %v3299 = vunpack.c.l.b16 %v3291
        %v3300 = vunpack.c.l.b16 %v3292
        %v3301 = vunpack.c.l.b16 %v3293
        %v3302 = vrot.slane %v3298, 2
        %v3303 = vrot.slane %v3299, 1
        %v3304 = vsel %vm617, %v3303, %v3302
        %v3305 = vsel %vm620, %v3300, %v3304
        %v3306 = vrot.slane %v3301, 7
        %v3307 = vsel %vm623, %v3306, %v3305
        %v3308 = vpack.c.b16 %v3307, %v3307
        %3309 = vrot.lane.b32.xlu0 %v3308, 63
        %v3310 = vpop.permute.xlu0 %3309
        %3312 = vst.msk [vmem:[#allocation3 + $0x1c] sm:$0xc] %vm1478, %v3310
        %v3313 = vld [vmem:[#allocation2 + $0x4] sm:$0x8]
        %v3314 = vld [vmem:[#allocation2 + $0x10] sm:$0x8]
        %v3315 = vld [vmem:[#allocation2 + $0x1c] sm:$0x8]
        %v3316 = vld [vmem:[#allocation2 + $0x28] sm:$0x8]
        %v3321 = vunpack.c.l.b16 %v3313
        %v3322 = vunpack.c.l.b16 %v3314
        %v3323 = vunpack.c.l.b16 %v3315
        %v3324 = vunpack.c.l.b16 %v3316
        %v3325 = vrot.slane %v3321, 6
        %v3326 = vrot.slane %v3322, 5
        %v3327 = vsel %vm591, %v3326, %v3325
        %v3328 = vrot.slane %v3323, 4
        %v3329 = vsel %vm594, %v3328, %v3327
        %v3330 = vrot.slane %v3324, 3
        %v3331 = vsel %vm597, %v3330, %v3329
        %v3332 = vpack.c.b16 %v3331, %v3331
        %3333 = vrot.lane.b32.xlu0 %v3332, 62
        %v3334 = vpop.permute.xlu0 %3333
        %3336 = vst.msk [vmem:[#allocation3 + $0x24] sm:$0x3] %vm1454, %v3334
        %v3337 = vld [vmem:[#allocation2 + $0x4] sm:$0x4]
        %v3338 = vld [vmem:[#allocation2 + $0x10] sm:$0x4]
        %v3339 = vld [vmem:[#allocation2 + $0x1c] sm:$0x4]
        %v3340 = vld [vmem:[#allocation2 + $0x28] sm:$0x4]
        %v3345 = vunpack.c.l.b16 %v3337
        %v3346 = vunpack.c.l.b16 %v3338
        %v3347 = vunpack.c.l.b16 %v3339
        %v3348 = vunpack.c.l.b16 %v3340
        %v3349 = vrot.slane %v3345, 5
        %v3350 = vrot.slane %v3346, 4
        %v3351 = vsel %vm591, %v3350, %v3349
        %v3352 = vrot.slane %v3347, 3
        %v3353 = vsel %vm594, %v3352, %v3351
        %v3354 = vrot.slane %v3348, 2
        %v3355 = vsel %vm597, %v3354, %v3353
        %v3356 = vpack.c.b16 %v3355, %v3355
        %3357 = vrot.lane.b32.xlu0 %v3356, 80
        %v3358 = vpop.permute.xlu0 %3357
        %3360 = vst.msk [vmem:[#allocation3 + $0x4] sm:$0x3] %vm1668, %v3358
        %v3361 = vld [vmem:[#allocation2 + $0x4] sm:$0x4]
        %v3362 = vld [vmem:[#allocation2 + $0x10] sm:$0x4]
        %v3363 = vld [vmem:[#allocation2 + $0x1c] sm:$0x4]
        %v3364 = vld [vmem:[#allocation2 + $0x28] sm:$0x4]
        %v3369 = vunpack.c.l.b16 %v3361
        %v3370 = vunpack.c.l.b16 %v3362
        %v3371 = vunpack.c.l.b16 %v3363
        %v3372 = vunpack.c.l.b16 %v3364
        %v3373 = vrot.slane %v3369, 1
        %v3374 = vsel %vm617, %v3370, %v3373
        %v3375 = vrot.slane %v3371, 7
        %v3376 = vsel %vm620, %v3375, %v3374
        %v3377 = vrot.slane %v3372, 6
        %v3378 = vsel %vm623, %v3377, %v3376
        %v3379 = vpack.c.b16 %v3378, %v3378
        %3380 = vrot.lane.b32.xlu0 %v3379, 79
        %v3381 = vpop.permute.xlu0 %3380
        %3383 = vst.msk [vmem:[#allocation3 + $0x4] sm:$0xc] %vm1692, %v3381
        %v3384 = vld [vmem:[#allocation2 + $0x4] sm:$0x4]
        %v3385 = vld [vmem:[#allocation2 + $0x10] sm:$0x4]
        %v3386 = vld [vmem:[#allocation2 + $0x1c] sm:$0x4]
        %v3387 = vld [vmem:[#allocation2 + $0x28] sm:$0x4]
        %v3392 = vunpack.c.l.b16 %v3384
        %v3393 = vunpack.c.l.b16 %v3385
        %v3394 = vunpack.c.l.b16 %v3386
        %v3395 = vunpack.c.l.b16 %v3387
        %v3396 = vrot.slane %v3392, 5
        %v3397 = vrot.slane %v3393, 4
        %v3398 = vsel %vm591, %v3397, %v3396
        %v3399 = vrot.slane %v3394, 3
        %v3400 = vsel %vm594, %v3399, %v3398
        %v3401 = vrot.slane %v3395, 2
        %v3402 = vsel %vm597, %v3401, %v3400
        %v3403 = vpack.c.b16 %v3402, %v3402
        %3404 = vrot.lane.b32.xlu0 %v3403, 78
        %v3405 = vpop.permute.xlu0 %3404
        %3407 = vst.msk [vmem:[#allocation3 + $0xc] sm:$0x3] %vm1668, %v3405
        %v3408 = vld [vmem:[#allocation2 + $0x4] sm:$0x8]
        %v3409 = vld [vmem:[#allocation2 + $0x10] sm:$0x8]
        %v3410 = vld [vmem:[#allocation2 + $0x1c] sm:$0x8]
        %v3411 = vld [vmem:[#allocation2 + $0x28] sm:$0x8]
        %v3416 = vunpack.c.l.b16 %v3408
        %v3417 = vunpack.c.l.b16 %v3409
        %v3418 = vunpack.c.l.b16 %v3410
        %v3419 = vunpack.c.l.b16 %v3411
        %v3420 = vrot.slane %v3416, 2
        %v3421 = vrot.slane %v3417, 1
        %v3422 = vsel %vm617, %v3421, %v3420
        %v3423 = vsel %vm620, %v3418, %v3422
        %v3424 = vrot.slane %v3419, 7
        %v3425 = vsel %vm623, %v3424, %v3423
        %v3426 = vpack.c.b16 %v3425, %v3425
        %3427 = vrot.lane.b32.xlu0 %v3426, 80
        %v3428 = vpop.permute.xlu0 %3427
        %3430 = vst.msk [vmem:[#allocation3 + $0xc] sm:$0xc] %vm1692, %v3428
        %v3431 = vld [vmem:[#allocation2 + $0x4] sm:$0x8]
        %v3432 = vld [vmem:[#allocation2 + $0x10] sm:$0x8]
        %v3433 = vld [vmem:[#allocation2 + $0x1c] sm:$0x8]
        %v3434 = vld [vmem:[#allocation2 + $0x28] sm:$0x8]
        %v3439 = vunpack.c.l.b16 %v3431
        %v3440 = vunpack.c.l.b16 %v3432
        %v3441 = vunpack.c.l.b16 %v3433
        %v3442 = vunpack.c.l.b16 %v3434
        %v3443 = vrot.slane %v3439, 6
        %v3444 = vrot.slane %v3440, 5
        %v3445 = vsel %vm591, %v3444, %v3443
        %v3446 = vrot.slane %v3441, 4
        %v3447 = vsel %vm594, %v3446, %v3445
        %v3448 = vrot.slane %v3442, 3
        %v3449 = vsel %vm597, %v3448, %v3447
        %v3450 = vpack.c.b16 %v3449, %v3449
        %3451 = vrot.lane.b32.xlu0 %v3450, 79
        %v3452 = vpop.permute.xlu0 %3451
        %3454 = vst.msk [vmem:[#allocation3 + $0x14] sm:$0x3] %vm1668, %v3452
        %v3455 = vld [vmem:[#allocation2 + $0x4] sm:$0x8]
        %v3456 = vld [vmem:[#allocation2 + $0x10] sm:$0x8]
        %v3457 = vld [vmem:[#allocation2 + $0x1c] sm:$0x8]
        %v3458 = vld [vmem:[#allocation2 + $0x28] sm:$0x8]
        %v3463 = vunpack.c.l.b16 %v3455
        %v3464 = vunpack.c.l.b16 %v3456
        %v3465 = vunpack.c.l.b16 %v3457
        %v3466 = vunpack.c.l.b16 %v3458
        %v3467 = vrot.slane %v3463, 2
        %v3468 = vrot.slane %v3464, 1
        %v3469 = vsel %vm617, %v3468, %v3467
        %v3470 = vsel %vm620, %v3465, %v3469
        %v3471 = vrot.slane %v3466, 7
        %v3472 = vsel %vm623, %v3471, %v3470
        %v3473 = vpack.c.b16 %v3472, %v3472
        %3474 = vrot.lane.b32.xlu0 %v3473, 78
        %v3475 = vpop.permute.xlu0 %3474
        %3477 = vst.msk [vmem:[#allocation3 + $0x14] sm:$0xc] %vm1692, %v3475
        %v3478 = vld [vmem:[#allocation2 + $0x4] sm:$0x8]
        %v3479 = vld [vmem:[#allocation2 + $0x10] sm:$0x8]
        %v3480 = vld [vmem:[#allocation2 + $0x1c] sm:$0x8]
        %v3481 = vld [vmem:[#allocation2 + $0x28] sm:$0x8]
        %v3486 = vunpack.c.l.b16 %v3478
        %v3487 = vunpack.c.l.b16 %v3479
        %v3488 = vunpack.c.l.b16 %v3480
        %v3489 = vunpack.c.l.b16 %v3481
        %v3490 = vrot.slane %v3486, 7
        %v3491 = vrot.slane %v3487, 6
        %v3492 = vsel %vm591, %v3491, %v3490
        %v3493 = vrot.slane %v3488, 5
        %v3494 = vsel %vm594, %v3493, %v3492
        %v3495 = vrot.slane %v3489, 4
        %v3496 = vsel %vm597, %v3495, %v3494
        %v3497 = vpack.c.b16 %v3496, %v3496
        %3498 = vrot.lane.b32.xlu0 %v3497, 80
        %v3499 = vpop.permute.xlu0 %3498
        %3501 = vst.msk [vmem:[#allocation3 + $0x1c] sm:$0x3] %vm1668, %v3499
        %v3502 = vld [vmem:[#allocation2 + $0x4] sm:$0x8]
        %v3503 = vld [vmem:[#allocation2 + $0x10] sm:$0x8]
        %v3504 = vld [vmem:[#allocation2 + $0x1c] sm:$0x8]
        %v3505 = vld [vmem:[#allocation2 + $0x28] sm:$0x8]
        %v3510 = vunpack.c.l.b16 %v3502
        %v3511 = vunpack.c.l.b16 %v3503
        %v3512 = vunpack.c.l.b16 %v3504
        %v3513 = vunpack.c.l.b16 %v3505
        %v3514 = vrot.slane %v3510, 3
        %v3515 = vrot.slane %v3511, 2
        %v3516 = vsel %vm617, %v3515, %v3514
        %v3517 = vrot.slane %v3512, 1
        %v3518 = vsel %vm620, %v3517, %v3516
        %v3519 = vsel %vm623, %v3513, %v3518
        %v3520 = vpack.c.b16 %v3519, %v3519
        %3521 = vrot.lane.b32.xlu0 %v3520, 79
        %v3522 = vpop.permute.xlu0 %3521
        %3524 = vst.msk [vmem:[#allocation3 + $0x1c] sm:$0xc] %vm1692, %v3522
        %v3525 = vld [vmem:[#allocation2 + $0x4] sm:$0x8]
        %v3526 = vld [vmem:[#allocation2 + $0x10] sm:$0x8]
        %v3527 = vld [vmem:[#allocation2 + $0x1c] sm:$0x8]
        %v3528 = vld [vmem:[#allocation2 + $0x28] sm:$0x8]
        %v3533 = vunpack.c.l.b16 %v3525
        %v3534 = vunpack.c.l.b16 %v3526
        %v3535 = vunpack.c.l.b16 %v3527
        %v3536 = vunpack.c.l.b16 %v3528
        %v3537 = vrot.slane %v3533, 7
        %v3538 = vrot.slane %v3534, 6
        %v3539 = vsel %vm591, %v3538, %v3537
        %v3540 = vrot.slane %v3535, 5
        %v3541 = vsel %vm594, %v3540, %v3539
        %v3542 = vrot.slane %v3536, 4
        %v3543 = vsel %vm597, %v3542, %v3541
        %v3544 = vpack.c.b16 %v3543, %v3543
        %3545 = vrot.lane.b32.xlu0 %v3544, 78
        %v3546 = vpop.permute.xlu0 %3545
        %3548 = vst.msk [vmem:[#allocation3 + $0x24] sm:$0x3] %vm1668, %v3546
        %v3549 = vld [vmem:[#allocation2 + $0x4] sm:$0x8]
        %v3550 = vld [vmem:[#allocation2 + $0x10] sm:$0x8]
        %v3551 = vld [vmem:[#allocation2 + $0x1c] sm:$0x8]
        %v3552 = vld [vmem:[#allocation2 + $0x28] sm:$0x8]
        %v3557 = vunpack.c.l.b16 %v3549
        %v3558 = vunpack.c.l.b16 %v3550
        %v3559 = vunpack.c.l.b16 %v3551
        %v3560 = vunpack.c.l.b16 %v3552
        %v3561 = vrot.slane %v3557, 6
        %v3562 = vrot.slane %v3558, 5
        %v3563 = vsel %vm591, %v3562, %v3561
        %v3564 = vrot.slane %v3559, 4
        %v3565 = vsel %vm594, %v3564, %v3563
        %v3566 = vrot.slane %v3560, 3
        %v3567 = vsel %vm597, %v3566, %v3565
        %v3568 = vpack.c.b16 %v3567, %v3567
        %3569 = vrot.lane.b32.xlu0 %v3568, 96
        %v3570 = vpop.permute.xlu0 %3569
        %3572 = vst.msk [vmem:[#allocation3 + $0x4] sm:$0x3] %vm1882, %v3570
        %v3573 = vld [vmem:[#allocation2 + $0x4] sm:$0x8]
        %v3574 = vld [vmem:[#allocation2 + $0x10] sm:$0x8]
        %v3575 = vld [vmem:[#allocation2 + $0x1c] sm:$0x8]
        %v3576 = vld [vmem:[#allocation2 + $0x28] sm:$0x8]
        %v3581 = vunpack.c.l.b16 %v3573
        %v3582 = vunpack.c.l.b16 %v3574
        %v3583 = vunpack.c.l.b16 %v3575
        %v3584 = vunpack.c.l.b16 %v3576
        %v3585 = vrot.slane %v3581, 2
        %v3586 = vrot.slane %v3582, 1
        %v3587 = vsel %vm617, %v3586, %v3585
        %v3588 = vsel %vm620, %v3583, %v3587
        %v3589 = vrot.slane %v3584, 7
        %v3590 = vsel %vm623, %v3589, %v3588
        %v3591 = vpack.c.b16 %v3590, %v3590
        %3592 = vrot.lane.b32.xlu0 %v3591, 95
        %v3593 = vpop.permute.xlu0 %3592
        %3595 = vst.msk [vmem:[#allocation3 + $0x4] sm:$0xc] %vm1906, %v3593
        %v3596 = vld [vmem:[#allocation2 + $0x4] sm:$0x8]
        %v3597 = vld [vmem:[#allocation2 + $0x10] sm:$0x8]
        %v3598 = vld [vmem:[#allocation2 + $0x1c] sm:$0x8]
        %v3599 = vld [vmem:[#allocation2 + $0x28] sm:$0x8]
        %v3604 = vunpack.c.l.b16 %v3596
        %v3605 = vunpack.c.l.b16 %v3597
        %v3606 = vunpack.c.l.b16 %v3598
        %v3607 = vunpack.c.l.b16 %v3599
        %v3608 = vrot.slane %v3604, 6
        %v3609 = vrot.slane %v3605, 5
        %v3610 = vsel %vm591, %v3609, %v3608
        %v3611 = vrot.slane %v3606, 4
        %v3612 = vsel %vm594, %v3611, %v3610
        %v3613 = vrot.slane %v3607, 3
        %v3614 = vsel %vm597, %v3613, %v3612
        %v3615 = vpack.c.b16 %v3614, %v3614
        %3616 = vrot.lane.b32.xlu0 %v3615, 94
        %v3617 = vpop.permute.xlu0 %3616
        %3619 = vst.msk [vmem:[#allocation3 + $0xc] sm:$0x3] %vm1882, %v3617
        %v3620 = vld [vmem:[#allocation2 + $0x4] sm:$0x8]
        %v3621 = vld [vmem:[#allocation2 + $0x10] sm:$0x8]
        %v3622 = vld [vmem:[#allocation2 + $0x1c] sm:$0x8]
        %v3623 = vld [vmem:[#allocation2 + $0x28] sm:$0x8]
        %v3628 = vunpack.c.l.b16 %v3620
        %v3629 = vunpack.c.l.b16 %v3621
        %v3630 = vunpack.c.l.b16 %v3622
        %v3631 = vunpack.c.l.b16 %v3623
        %v3632 = vrot.slane %v3628, 3
        %v3633 = vrot.slane %v3629, 2
        %v3634 = vsel %vm617, %v3633, %v3632
        %v3635 = vrot.slane %v3630, 1
        %v3636 = vsel %vm620, %v3635, %v3634
        %v3637 = vsel %vm623, %v3631, %v3636
        %v3638 = vpack.c.b16 %v3637, %v3637
        %3639 = vrot.lane.b32.xlu0 %v3638, 96
        %v3640 = vpop.permute.xlu0 %3639
        %3642 = vst.msk [vmem:[#allocation3 + $0xc] sm:$0xc] %vm1906, %v3640
        %v3643 = vld [vmem:[#allocation2 + $0x4] sm:$0x8]
        %v3644 = vld [vmem:[#allocation2 + $0x10] sm:$0x8]
        %v3645 = vld [vmem:[#allocation2 + $0x1c] sm:$0x8]
        %v3646 = vld [vmem:[#allocation2 + $0x28] sm:$0x8]
        %v3651 = vunpack.c.l.b16 %v3643
        %v3652 = vunpack.c.l.b16 %v3644
        %v3653 = vunpack.c.l.b16 %v3645
        %v3654 = vunpack.c.l.b16 %v3646
        %v3655 = vrot.slane %v3651, 7
        %v3656 = vrot.slane %v3652, 6
        %v3657 = vsel %vm591, %v3656, %v3655
        %v3658 = vrot.slane %v3653, 5
        %v3659 = vsel %vm594, %v3658, %v3657
        %v3660 = vrot.slane %v3654, 4
        %v3661 = vsel %vm597, %v3660, %v3659
        %v3662 = vpack.c.b16 %v3661, %v3661
        %3663 = vrot.lane.b32.xlu0 %v3662, 95
        %v3664 = vpop.permute.xlu0 %3663
        %3666 = vst.msk [vmem:[#allocation3 + $0x14] sm:$0x3] %vm1882, %v3664
        %v3667 = vld [vmem:[#allocation2 + $0x4] sm:$0x8]
        %v3668 = vld [vmem:[#allocation2 + $0x10] sm:$0x8]
        %v3669 = vld [vmem:[#allocation2 + $0x1c] sm:$0x8]
        %v3670 = vld [vmem:[#allocation2 + $0x28] sm:$0x8]
        %v3675 = vunpack.c.l.b16 %v3667
        %v3676 = vunpack.c.l.b16 %v3668
        %v3677 = vunpack.c.l.b16 %v3669
        %v3678 = vunpack.c.l.b16 %v3670
        %v3679 = vrot.slane %v3675, 3
        %v3680 = vrot.slane %v3676, 2
        %v3681 = vsel %vm617, %v3680, %v3679
        %v3682 = vrot.slane %v3677, 1
        %v3683 = vsel %vm620, %v3682, %v3681
        %v3684 = vsel %vm623, %v3678, %v3683
        %v3685 = vpack.c.b16 %v3684, %v3684
        %3686 = vrot.lane.b32.xlu0 %v3685, 94
        %v3687 = vpop.permute.xlu0 %3686
        %3689 = vst.msk [vmem:[#allocation3 + $0x14] sm:$0xc] %vm1906, %v3687
        %v3690 = vld [vmem:[#allocation2 + $0x8] sm:$0x1]
        %v3691 = vld [vmem:[#allocation2 + $0x14] sm:$0x1]
        %v3692 = vld [vmem:[#allocation2 + $0x20] sm:$0x1]
        %v3693 = vld [vmem:[#allocation2 + $0x2c] sm:$0x1]
        %v3698 = vunpack.c.l.b16 %v3690
        %v3699 = vunpack.c.l.b16 %v3691
        %v3700 = vunpack.c.l.b16 %v3692
        %v3701 = vunpack.c.l.b16 %v3693
        %v3702 = vrot.slane %v3699, 7
        %v3703 = vsel %vm591, %v3702, %v3698
        %v3704 = vrot.slane %v3700, 6
        %v3705 = vsel %vm594, %v3704, %v3703
        %v3706 = vrot.slane %v3701, 5
        %v3707 = vsel %vm597, %v3706, %v3705
        %v3708 = vpack.c.b16 %v3707, %v3707
        %3709 = vrot.lane.b32.xlu0 %v3708, 96
        %v3710 = vpop.permute.xlu0 %3709
        %3712 = vst.msk [vmem:[#allocation3 + $0x1c] sm:$0x3] %vm1882, %v3710
        %v3713 = vld [vmem:[#allocation2 + $0x8] sm:$0x1]
        %v3714 = vld [vmem:[#allocation2 + $0x14] sm:$0x1]
        %v3715 = vld [vmem:[#allocation2 + $0x20] sm:$0x1]
        %v3716 = vld [vmem:[#allocation2 + $0x2c] sm:$0x1]
        %v3721 = vunpack.c.l.b16 %v3713
        %v3722 = vunpack.c.l.b16 %v3714
        %v3723 = vunpack.c.l.b16 %v3715
        %v3724 = vunpack.c.l.b16 %v3716
        %v3725 = vrot.slane %v3721, 4
        %v3726 = vrot.slane %v3722, 3
        %v3727 = vsel %vm617, %v3726, %v3725
        %v3728 = vrot.slane %v3723, 2
        %v3729 = vsel %vm620, %v3728, %v3727
        %v3730 = vrot.slane %v3724, 1
        %v3731 = vsel %vm623, %v3730, %v3729
        %v3732 = vpack.c.b16 %v3731, %v3731
        %3733 = vrot.lane.b32.xlu0 %v3732, 95
        %v3734 = vpop.permute.xlu0 %3733
        %3736 = vst.msk [vmem:[#allocation3 + $0x1c] sm:$0xc] %vm1906, %v3734
        %v3737 = vld [vmem:[#allocation2 + $0x8] sm:$0x1]
        %v3738 = vld [vmem:[#allocation2 + $0x14] sm:$0x1]
        %v3739 = vld [vmem:[#allocation2 + $0x20] sm:$0x1]
        %v3740 = vld [vmem:[#allocation2 + $0x2c] sm:$0x1]
        %v3745 = vunpack.c.l.b16 %v3737
        %v3746 = vunpack.c.l.b16 %v3738
        %v3747 = vunpack.c.l.b16 %v3739
        %v3748 = vunpack.c.l.b16 %v3740
        %v3749 = vrot.slane %v3746, 7
        %v3750 = vsel %vm591, %v3749, %v3745
        %v3751 = vrot.slane %v3747, 6
        %v3752 = vsel %vm594, %v3751, %v3750
        %v3753 = vrot.slane %v3748, 5
        %v3754 = vsel %vm597, %v3753, %v3752
        %v3755 = vpack.c.b16 %v3754, %v3754
        %3756 = vrot.lane.b32.xlu0 %v3755, 94
        %v3757 = vpop.permute.xlu0 %3756
        %3759 = vst.msk [vmem:[#allocation3 + $0x24] sm:$0x3] %vm1882, %v3757
        %v3760 = vld [vmem:[#allocation2 + $0x4] sm:$0x8]
        %v3761 = vld [vmem:[#allocation2 + $0x10] sm:$0x8]
        %v3762 = vld [vmem:[#allocation2 + $0x1c] sm:$0x8]
        %v3763 = vld [vmem:[#allocation2 + $0x28] sm:$0x8]
        %v3768 = vunpack.c.l.b16 %v3760
        %v3769 = vunpack.c.l.b16 %v3761
        %v3770 = vunpack.c.l.b16 %v3762
        %v3771 = vunpack.c.l.b16 %v3763
        %v3772 = vrot.slane %v3768, 7
        %v3773 = vrot.slane %v3769, 6
        %v3774 = vsel %vm591, %v3773, %v3772
        %v3775 = vrot.slane %v3770, 5
        %v3776 = vsel %vm594, %v3775, %v3774
        %v3777 = vrot.slane %v3771, 4
        %v3778 = vsel %vm597, %v3777, %v3776
        %v3779 = vpack.c.b16 %v3778, %v3778
        %3780 = vrot.lane.b32.xlu0 %v3779, 112
        %v3781 = vpop.permute.xlu0 %3780
        %3783 = vst.msk [vmem:[#allocation3 + $0x4] sm:$0x3] %vm2095, %v3781
        %v3784 = vld [vmem:[#allocation2 + $0x4] sm:$0x8]
        %v3785 = vld [vmem:[#allocation2 + $0x10] sm:$0x8]
        %v3786 = vld [vmem:[#allocation2 + $0x1c] sm:$0x8]
        %v3787 = vld [vmem:[#allocation2 + $0x28] sm:$0x8]
        %v3792 = vunpack.c.l.b16 %v3784
        %v3793 = vunpack.c.l.b16 %v3785
        %v3794 = vunpack.c.l.b16 %v3786
        %v3795 = vunpack.c.l.b16 %v3787
        %v3796 = vrot.slane %v3792, 3
        %v3797 = vrot.slane %v3793, 2
        %v3798 = vsel %vm617, %v3797, %v3796
        %v3799 = vrot.slane %v3794, 1
        %v3800 = vsel %vm620, %v3799, %v3798
        %v3801 = vsel %vm623, %v3795, %v3800
        %v3802 = vpack.c.b16 %v3801, %v3801
        %3803 = vrot.lane.b32.xlu0 %v3802, 111
        %v3804 = vpop.permute.xlu0 %3803
        %3806 = vst.msk [vmem:[#allocation3 + $0x4] sm:$0xc] %vm2119, %v3804
        %v3807 = vld [vmem:[#allocation2 + $0x4] sm:$0x8]
        %v3808 = vld [vmem:[#allocation2 + $0x10] sm:$0x8]
        %v3809 = vld [vmem:[#allocation2 + $0x1c] sm:$0x8]
        %v3810 = vld [vmem:[#allocation2 + $0x28] sm:$0x8]
        %v3815 = vunpack.c.l.b16 %v3807
        %v3816 = vunpack.c.l.b16 %v3808
        %v3817 = vunpack.c.l.b16 %v3809
        %v3818 = vunpack.c.l.b16 %v3810
        %v3819 = vrot.slane %v3815, 7
        %v3820 = vrot.slane %v3816, 6
        %v3821 = vsel %vm591, %v3820, %v3819
        %v3822 = vrot.slane %v3817, 5
        %v3823 = vsel %vm594, %v3822, %v3821
        %v3824 = vrot.slane %v3818, 4
        %v3825 = vsel %vm597, %v3824, %v3823
        %v3826 = vpack.c.b16 %v3825, %v3825
        %3827 = vrot.lane.b32.xlu0 %v3826, 110
        %v3828 = vpop.permute.xlu0 %3827
        %3830 = vst.msk [vmem:[#allocation3 + $0xc] sm:$0x3] %vm2095, %v3828
        %v3831 = vld [vmem:[#allocation2 + $0x8] sm:$0x1]
        %v3832 = vld [vmem:[#allocation2 + $0x14] sm:$0x1]
        %v3833 = vld [vmem:[#allocation2 + $0x20] sm:$0x1]
        %v3834 = vld [vmem:[#allocation2 + $0x2c] sm:$0x1]
        %v3839 = vunpack.c.l.b16 %v3831
        %v3840 = vunpack.c.l.b16 %v3832
        %v3841 = vunpack.c.l.b16 %v3833
        %v3842 = vunpack.c.l.b16 %v3834
        %v3843 = vrot.slane %v3839, 4
        %v3844 = vrot.slane %v3840, 3
        %v3845 = vsel %vm617, %v3844, %v3843
        %v3846 = vrot.slane %v3841, 2
        %v3847 = vsel %vm620, %v3846, %v3845
        %v3848 = vrot.slane %v3842, 1
        %v3849 = vsel %vm623, %v3848, %v3847
        %v3850 = vpack.c.b16 %v3849, %v3849
        %3851 = vrot.lane.b32.xlu0 %v3850, 112
        %v3852 = vpop.permute.xlu0 %3851
        %3854 = vst.msk [vmem:[#allocation3 + $0xc] sm:$0xc] %vm2119, %v3852
        %v3855 = vld [vmem:[#allocation2 + $0x8] sm:$0x1]
        %v3856 = vld [vmem:[#allocation2 + $0x14] sm:$0x1]
        %v3857 = vld [vmem:[#allocation2 + $0x20] sm:$0x1]
        %v3858 = vld [vmem:[#allocation2 + $0x2c] sm:$0x1]
        %v3863 = vunpack.c.l.b16 %v3855
        %v3864 = vunpack.c.l.b16 %v3856
        %v3865 = vunpack.c.l.b16 %v3857
        %v3866 = vunpack.c.l.b16 %v3858
        %v3867 = vrot.slane %v3864, 7
        %v3868 = vsel %vm591, %v3867, %v3863
        %v3869 = vrot.slane %v3865, 6
        %v3870 = vsel %vm594, %v3869, %v3868
        %v3871 = vrot.slane %v3866, 5
        %v3872 = vsel %vm597, %v3871, %v3870
        %v3873 = vpack.c.b16 %v3872, %v3872
        %3874 = vrot.lane.b32.xlu0 %v3873, 111
        %v3875 = vpop.permute.xlu0 %3874
        %3877 = vst.msk [vmem:[#allocation3 + $0x14] sm:$0x3] %vm2095, %v3875
        %v3878 = vld [vmem:[#allocation2 + $0x8] sm:$0x1]
        %v3879 = vld [vmem:[#allocation2 + $0x14] sm:$0x1]
        %v3880 = vld [vmem:[#allocation2 + $0x20] sm:$0x1]
        %v3881 = vld [vmem:[#allocation2 + $0x2c] sm:$0x1]
        %v3886 = vunpack.c.l.b16 %v3878
        %v3887 = vunpack.c.l.b16 %v3879
        %v3888 = vunpack.c.l.b16 %v3880
        %v3889 = vunpack.c.l.b16 %v3881
        %v3890 = vrot.slane %v3886, 4
        %v3891 = vrot.slane %v3887, 3
        %v3892 = vsel %vm617, %v3891, %v3890
        %v3893 = vrot.slane %v3888, 2
        %v3894 = vsel %vm620, %v3893, %v3892
        %v3895 = vrot.slane %v3889, 1
        %v3896 = vsel %vm623, %v3895, %v3894
        %v3897 = vpack.c.b16 %v3896, %v3896
        %3898 = vrot.lane.b32.xlu0 %v3897, 110
        %v3899 = vpop.permute.xlu0 %3898
        %3901 = vst.msk [vmem:[#allocation3 + $0x14] sm:$0xc] %vm2119, %v3899
        %v3902 = vld [vmem:[#allocation2 + $0x8] sm:$0x1]
        %v3903 = vld [vmem:[#allocation2 + $0x14] sm:$0x1]
        %v3904 = vld [vmem:[#allocation2 + $0x20] sm:$0x1]
        %v3905 = vld [vmem:[#allocation2 + $0x2c] sm:$0x1]
        %v3910 = vunpack.c.l.b16 %v3902
        %v3911 = vunpack.c.l.b16 %v3903
        %v3912 = vunpack.c.l.b16 %v3904
        %v3913 = vunpack.c.l.b16 %v3905
        %v3914 = vrot.slane %v3910, 1
        %v3915 = vsel %vm591, %v3911, %v3914
        %v3916 = vrot.slane %v3912, 7
        %v3917 = vsel %vm594, %v3916, %v3915
        %v3918 = vrot.slane %v3913, 6
        %v3919 = vsel %vm597, %v3918, %v3917
        %v3920 = vpack.c.b16 %v3919, %v3919
        %3921 = vrot.lane.b32.xlu0 %v3920, 112
        %v3922 = vpop.permute.xlu0 %3921
        %3924 = vst.msk [vmem:[#allocation3 + $0x1c] sm:$0x3] %vm2095, %v3922
        %v3925 = vld [vmem:[#allocation2 + $0x8] sm:$0x1]
        %v3926 = vld [vmem:[#allocation2 + $0x14] sm:$0x1]
        %v3927 = vld [vmem:[#allocation2 + $0x20] sm:$0x1]
        %v3928 = vld [vmem:[#allocation2 + $0x2c] sm:$0x1]
        %v3933 = vunpack.c.l.b16 %v3925
        %v3934 = vunpack.c.l.b16 %v3926
        %v3935 = vunpack.c.l.b16 %v3927
        %v3936 = vunpack.c.l.b16 %v3928
        %v3937 = vrot.slane %v3933, 5
        %v3938 = vrot.slane %v3934, 4
        %v3939 = vsel %vm617, %v3938, %v3937
        %v3940 = vrot.slane %v3935, 3
        %v3941 = vsel %vm620, %v3940, %v3939
        %v3942 = vrot.slane %v3936, 2
        %v3943 = vsel %vm623, %v3942, %v3941
        %v3944 = vpack.c.b16 %v3943, %v3943
        %3945 = vrot.lane.b32.xlu0 %v3944, 111
        %v3946 = vpop.permute.xlu0 %3945
        %3948 = vst.msk [vmem:[#allocation3 + $0x1c] sm:$0xc] %vm2119, %v3946
        %v3949 = vld [vmem:[#allocation2 + $0x8] sm:$0x1]
        %v3950 = vld [vmem:[#allocation2 + $0x14] sm:$0x1]
        %v3951 = vld [vmem:[#allocation2 + $0x20] sm:$0x1]
        %v3952 = vld [vmem:[#allocation2 + $0x2c] sm:$0x1]
        %v3957 = vunpack.c.l.b16 %v3949
        %v3958 = vunpack.c.l.b16 %v3950
        %v3959 = vunpack.c.l.b16 %v3951
        %v3960 = vunpack.c.l.b16 %v3952
        %v3961 = vrot.slane %v3957, 1
        %v3962 = vsel %vm591, %v3958, %v3961
        %v3963 = vrot.slane %v3959, 7
        %v3964 = vsel %vm594, %v3963, %v3962
        %v3965 = vrot.slane %v3960, 6
        %v3966 = vsel %vm597, %v3965, %v3964
        %v3967 = vpack.c.b16 %v3966, %v3966
        %3968 = vrot.lane.b32.xlu0 %v3967, 110
        %v3969 = vpop.permute.xlu0 %3968
        %3971 = vst.msk [vmem:[#allocation3 + $0x24] sm:$0x3] %vm2095, %v3969
        %v3972 = vld [vmem:[#allocation3] sm:$0xff]
        %v3973 = vld [vmem:[#allocation3 + $0x8] sm:$0xff]
        %v3974 = vld [vmem:[#allocation3 + $0x10] sm:$0xff]
        %v3975 = vld [vmem:[#allocation3 + $0x18] sm:$0xff]
        %v3976 = vld [vmem:[#allocation3 + $0x20] sm:$0x33]
        %3978 = vset.pattern.permute.xlu0 0
        %3979 = vperm.xlu0 %3978, %v191
        %v3980 = vpop.permute.xlu0 %3979
        %v3987 = vunpack.c.l.b16 %v3972
        %v3988 = vunpack.c.h.b16 %v3972
        %v3989 = vunpack.c.l.b16 %v3973
        %v3990 = vunpack.c.h.b16 %v3973
        %v3991 = vunpack.c.l.b16 %v3974
        %v3992 = vunpack.c.h.b16 %v3974
        %v3993 = vunpack.c.l.b16 %v3975
        %v3994 = vunpack.c.h.b16 %v3975
        %v3995 = vunpack.c.l.b16 %v3976
        %v3996 = vunpack.c.h.b16 %v3976
        %v3997 = vpack.c.b16 %v3989, %v3987
        %v3998 = vpack.c.b16 %v3990, %v3988
        %v3999 = vpack.c.b16 %v3993, %v3991
        %v4000 = vpack.c.b16 %v3994, %v3992
        %v4001 = vpack.c.b16 %v3995, %v3995
        %v4002 = vpack.c.b16 %v3996, %v3996
        %vm4007 = vcmask 293888
        %v4009 = vsel %vm4007, %v190, 0
        %vm4011 = vcmask 1041408
        %v4013 = vsel %vm4011, %v4001, 0
        %v4016 = vsel %vm4011, %v4002, 0
        %4018 = vmatprep.subr.bf16.mxu0 0
        %4019 = vmatpush1.bf16.msra.mxu0 0
        %4020 = vmatprep.subr.bf16.mxu0 0
        %4021 = vmatpush1.bf16.msra.mxu0 0
        %4022 = vmatprep.subr.bf16.mxu0 0
        %4023 = vmatpush1.bf16.msra.mxu0 0
        %4024 = vmatprep.subr.bf16.mxu0 0
        %4025 = vmatpush1.bf16.msra.mxu0 0
        %4026 = vmatprep.subr.bf16.mxu0 0
        %4027 = vmatpush1.bf16.msra.mxu0 0
        %4028 = vmatprep.subr.bf16.mxu0 %v4016
        %4029 = vmatpush1.bf16.msra.mxu0 %v4013
        %4030 = vmatprep.subr.bf16.mxu0 %v4000
        %4031 = vmatpush1.bf16.msra.mxu0 %v3999
        %4032 = vmatprep.subr.bf16.mxu0 %v3998
        %4033 = vmatpush1.bf16.msra.mxu0 %v3997
        %4034 = vmatprep.subr.bf16.mxu0 0
        %4035 = vmatpush2.bf16.msra.mxu0 0
        %4036 = vmatprep.subr.bf16.mxu0 0
        %4037 = vmatpush2.bf16.msra.mxu0 0
        %4038 = vmatprep.subr.bf16.mxu0 0
        %4039 = vmatpush2.bf16.msra.mxu0 0
        %4040 = vmatprep.subr.bf16.mxu0 0
        %4041 = vmatpush2.bf16.msra.mxu0 0
        %4042 = vmatprep.subr.bf16.mxu0 0
        %4043 = vmatpush2.bf16.msra.mxu0 0
        %4044 = vmatprep.subr.bf16.mxu0 0
        %4045 = vmatpush2.bf16.msra.mxu0 0
        %4046 = vmatprep.subr.bf16.mxu0 0
        %4047 = vmatpush2.bf16.msra.mxu0 0
        %4048 = vmatprep.subr.bf16.mxu0 0
        %4049 = vmatpush2.bf16.msra.mxu0 0
        %4050 = vmatprep.mubr.bf16.mxu0 0
        %4051 = vmatmul.mubr.bf16.gmra.mxu0 %v4009
        %v4052 = vpop.f32.mrf.mxu0
        %v4053 = vadd.f32 %v3980, %v4052
        %v4054 = vpop.f32.mrf.mxu0
        %v4055 = vadd.f32 %v3980, %v4054
        %v4056 = vpop.f32.mrf.mxu0
        %v4057 = vpop.f32.mrf.mxu0
        %4058 = vdwg.mxu0
        %4059 = vst [vmem:[%s188] sm:$0xff] %v4053
        %4060 = vst [vmem:[%s188 + $0x8] sm:$0xff] %v4055
        %s4061 = sand.u32 %s96, 1
        %s4062 = scalar_lea.sflag [#allocation6], %s4061
        %s4063 = sand.u32 %s96, 1
        %s4064 = smul.addr %s4063, 16
        %s4065 = scalar_lea.vmem [#allocation7], %s4064
        // Predicated region
        $region37: #{tpu_custom_call.1} parent=31 // pred_check
          %p4066 = pneg %p106
        $region38: #{tpu_custom_call.1} parent=31 // pred_check_branch
          %4068 = sbr.rel (%p4066) target = $region40
        $region39: #{tpu_custom_call.1} parent=31 // pred_region
          %s4070 = ssub.s32 256, 256
          %4071 = vsyncadd %s4062, %s4070
          %s4072 = smul.addr %s20, 2
          %s4073 = smul.addr %s4072, 128
          %s4074 = scalar_lea.hbm %s3, %s4073
          %s4076 = sshll.u32 %s4065, 4
          %s4077 = int_to_ptr.vmem [resolvable:$true] %s4076
          %4079 = dma.vmem_to_hbm [thread:$0]  %s4077, 256, %s4074, %s4062
        $region40: #{tpu_custom_call.1} parent=31 // pred_fallthru
          _
      $region32: #{tpu_custom_call.1} parent=5 // pred_fallthru
        _
      %p4080 = scmp.le.s32.totalorder 2, %s15
      // Predicated region
      $region41: #{tpu_custom_call.1} parent=5 // pred_check
        %p4081 = pneg %p4080
      $region42: #{tpu_custom_call.1} parent=5 // pred_check_branch
        %4083 = sbr.rel (%p4081) target = $region44
      $region43: #{tpu_custom_call.1} parent=5 // pred_region
        %s4084 = ssub.s32 %s15, 2
        // Predicated region
        $region45: #{tpu_custom_call.1} parent=43 // pred_check
          %p4085 = pneg %p112
        $region46: #{tpu_custom_call.1} parent=43 // pred_check_branch
          %4087 = sbr.rel (%p4085) target = $region48
        $region47: #{tpu_custom_call.1} parent=43 // pred_region
          %s4088 = sand.u32 %s97, 1
          %s4089 = scalar_lea.sflag [#allocation6], %s4088
          %s4090 = sand.u32 %s97, 1
          %s4091 = smul.addr %s4090, 16
          %s4092 = scalar_lea.vmem [#allocation7], %s4091
          %4093 = dma.done %s4089, 256
        $region48: #{tpu_custom_call.1} parent=43 // pred_fallthru
          _
      $region44: #{tpu_custom_call.1} parent=5 // pred_fallthru
        _
    $region6: #{tpu_custom_call.1} parent=1 // loop_footer
      %s19 = sadd.s32 1, %s15
    $region7: #{tpu_custom_call.1} parent=1 // loop_footer_branch
      %14 = sbr.rel target = $region3
    $region8: #{tpu_custom_call.1} parent=1 // loop_exit
      _
    %4094 = vsyncpa [#allocation5], 1
    %s4095 = scalar_lea.sflag [#allocation5], 1
    %4096 = vsyncpa %s4095, 1
    %4097 = vsyncpa [#allocation6], 1
    %s4098 = scalar_lea.sflag [#allocation6], 1
    %4099 = vsyncpa %s4098, 1

</llo_original>
